<compile_context>
chip_gen: v7x
topology: tpu7x:2x2x1
jax: 0.10.0
libtpu: 0.0.40
codegen_flags: <defaults>
</compile_context>

<pallas_src>
import jax
import jax.numpy as jnp
from jax import lax
from jax.experimental import pallas as pl
from jax.experimental.pallas import tpu as pltpu

NEG_SLOPE = 0.2       # GATConv default LeakyReLU negative_slope
MASK_BIAS = -1e30     # additive bias for non-edges (f32, pre-LeakyReLU; underflows to 0)


# --------------------------------------------------------------------- in-kernel GAT
def _gat_heads(xp, att_src, att_dst, score_bias):
    """Dense multi-head GAT attention, batched over the leading head axis.

    xp        : [H, N, C]          projected node features (f32)
    att_src   : [H, C]             per-head source attention vector
    att_dst   : [H, C]             per-head target attention vector
    score_bias: [H, N, N]/[1,N,N]  additive score bias = edge-attr scores
                                    + MASK_BIAS * (1 - adjacency)  (self-loops incl.)
    returns   : [H, N, C]  softmax_j(leakyrelu(a_dst[i] + a_src[j] + bias[i,j])) @ xp
    """
    # Per-node scores on the VPU (no M=1 MXU matmuls, no per-head result-FIFO pops).
    s_dst = jnp.sum(xp * att_dst[:, None, :], axis=-1, keepdims=True)    # [H, N, 1]
    s_src = jnp.sum(xp * att_src[:, None, :], axis=-1)[:, None, :]       # [H, 1, N]
    s = s_dst + s_src + score_bias                                       # [H, N, N]
    s = jnp.where(s >= 0.0, s, NEG_SLOPE * s)                            # LeakyReLU(0.2)
    s = s - jnp.max(s, axis=-1, keepdims=True)                           # softmax over j
    p = jnp.exp(s)                                                       # non-edges -> 0
    p = p * pl.reciprocal(jnp.sum(p, axis=-1, keepdims=True), approx=True)  # EUP divide
    # Aggregation: one head-batched f32 matmul [H,N,N] @ [H,N,C].
    dn = (((2,), (1,)), ((0,), (0,)))
    return lax.dot_general(p, xp, dn, preferred_element_type=jnp.float32)


def _split_heads(x_flat, heads):
    """[N, H*C] -> [H, N, C] via static lane slices (tiny; stays in vregs)."""
    c = x_flat.shape[1] // heads
    return jnp.stack([x_flat[:, h * c:(h + 1) * c] for h in range(heads)], axis=0)


def _gnn_kernel(x_ref, b1_ref, graph_ref, wf_ref, w2_ref, att23_ref,
                w3_ref, cw1_ref, misc_ref, out_ref):
    hb = b1_ref.shape[1]            # 3 * heads (branches folded into the head batch)
    heads = att23_ref.shape[1]
    hidden = wf_ref.shape[2]
    half = cw1_ref.shape[2]
    ncls = out_ref.shape[1]
    dn_bat = (((2,), (1,)), ((0,), (0,)))

    x = x_ref[...]                                           # [N, 1]

    # ---- layer 1: 3 edge-featured GAT branches as ONE head batch of size 3*H ----
    w1 = b1_ref[0]                                           # [HB, C1]   (in_ch == 1)
    xp1 = x[None, :, :] * w1[:, None, :]                     # rank-1 projection (VPU)
    agg1 = _gat_heads(xp1, b1_ref[1], b1_ref[2], graph_ref[0:hb])        # [HB, N, C1]

    # ---- fusion Linear + ReLU: the head concat is folded into the contraction ---
    # (per-branch GAT biases were folded host-side into misc[0]; Dropout = identity)
    fuse = lax.dot_general(agg1, wf_ref[...], dn_bat,
                           preferred_element_type=jnp.float32)           # [HB,N,hidden]
    hfuse = jnp.maximum(jnp.sum(fuse, axis=0) + misc_ref[0:1, :hidden], 0.0)

    mbias = graph_ref[hb][None]                              # [1, N, N] full-graph mask

    # ---- conv2: one wide projection; split heads only for the score reduce ------
    xp2 = _split_heads(jnp.dot(hfuse, w2_ref[...],
                               preferred_element_type=jnp.float32), heads)
    agg2 = _gat_heads(xp2, att23_ref[0], att23_ref[1], mbias)            # [H, N, C2]
    h2 = jnp.maximum(agg2 + att23_ref[2][:, None, :], 0.0)               # bias + ReLU

    # ---- conv3: head-major-input weight folds conv2's head concat ---------------
    p3 = lax.dot_general(h2, w3_ref[...], dn_bat,
                         preferred_element_type=jnp.float32)             # [H, N, H*C2]
    xp3 = _split_heads(jnp.sum(p3, axis=0), heads)
    agg3 = _gat_heads(xp3, att23_ref[3], att23_ref[4], mbias)
    h3 = jnp.maximum(agg3 + att23_ref[5][:, None, :], 0.0)               # [H, N, C2]

    # ---- classifier: Linear -> ReLU -> (Dropout=id) -> Linear -> log_softmax ----
    zp = lax.dot_general(h3, cw1_ref[...], dn_bat,
                         preferred_element_type=jnp.float32)             # [H, N, half]
    z = jnp.maximum(jnp.sum(zp, axis=0) + misc_ref[1:2, :half], 0.0)
    logits = jnp.dot(z, misc_ref[3:3 + half, :ncls],
                     preferred_element_type=jnp.float32) + misc_ref[2:3, :ncls]
    m = jnp.max(logits, axis=-1, keepdims=True)
    lse = m + jnp.log(jnp.sum(jnp.exp(logits - m), axis=-1, keepdims=True))
    out_ref[...] = logits - lse


# --------------------------------------------------------------- graph glue (plain JAX)
def _dense_graph_with_attr(edge_index, edge_attr, mask, num_nodes):
    """Dense adjacency + dense edge attrs for the masked edge subset, including
    GATConv's remove_self_loops + add_self_loops(fill_value='mean')."""
    src, dst = edge_index[0], edge_index[1]
    m = mask.astype(jnp.float32) * (src != dst).astype(jnp.float32)
    adj = jnp.zeros((num_nodes, num_nodes), jnp.float32).at[dst, src].add(m)
    adj = jnp.minimum(adj, 1.0)
    ea = jnp.zeros((num_nodes, num_nodes, edge_attr.shape[1]), jnp.float32)
    ea = ea.at[dst, src].add(edge_attr * m[:, None])
    deg = jnp.sum(adj, axis=1, keepdims=True)
    loop_attr = jnp.sum(ea, axis=1) / jnp.maximum(deg, 1.0)   # fill_value='mean'
    idx = jnp.arange(num_nodes)
    adj = adj.at[idx, idx].set(1.0)
    ea = ea.at[idx, idx, :].set(loop_attr)
    return adj, ea


def _dense_adj_no_attr(edge_index, num_nodes):
    src, dst = edge_index[0], edge_index[1]
    adj = jnp.zeros((num_nodes, num_nodes), jnp.float32).at[dst, src].add(1.0)
    adj = jnp.minimum(adj, 1.0)
    idx = jnp.arange(num_nodes)
    adj = adj.at[idx, idx].set(1.0)   # add_self_loops
    return adj


def _edge_scores(ea_dense, lin_edge_w, att_edge):
    """Per-head additive attention contribution of dense edge attributes.
    lin_edge_w: [edge_dim, H*C], att_edge: [H, C] -> [H, N, N]."""
    heads, c = att_edge.shape
    m = (lin_edge_w.reshape(lin_edge_w.shape[0], heads, c) * att_edge[None]).sum(-1)
    return jnp.einsum("ijk,kh->hij", ea_dense, m)


# --------------------------------------------------------------------------- parameters
def init_params(key, hidden=32, num_classes=5, heads=4, in_ch=1, edge_dim=3):
    c1 = hidden // 8
    c2 = hidden // 4
    keys = iter(jax.random.split(key, 32))

    def nrm(shape, scale=0.2):
        return scale * jax.random.normal(next(keys), shape, jnp.float32)

    def gat_edge(fin, c):
        return dict(w=nrm((fin, heads * c)),
                    att_src=nrm((heads, c)), att_dst=nrm((heads, c)),
                    att_edge=nrm((heads, c)), lin_edge=nrm((edge_dim, heads * c)),
                    bias=jnp.zeros((1, heads * c), jnp.float32))

    def gat(fin, c):
        return dict(w=nrm((fin, heads * c)),
                    att_src=nrm((heads, c)), att_dst=nrm((heads, c)),
                    bias=jnp.zeros((1, heads * c), jnp.float32))

    return dict(
        temporal=gat_edge(in_ch, c1),
        gap=gat_edge(in_ch, c1),
        proximity=gat_edge(in_ch, c1),
        fusion_w=nrm((3 * heads * c1, hidden)),
        fusion_b=jnp.zeros((1, hidden), jnp.float32),
        conv2=gat(hidden, c2),
        conv3=gat(hidden, c2),
        cls_w1=nrm((hidden, hidden // 2)),
        cls_b1=jnp.zeros((1, hidden // 2), jnp.float32),
        cls_w2=nrm((hidden // 2, num_classes)),
        cls_b2=jnp.zeros((1, num_classes), jnp.float32),
    )


# ------------------------------------------------------------------------------ forward
@jax.jit
def gap_aware_gnn_forward(params, x, edge_index, edge_attr,
                          direct_temporal_mask, gap_temporal_mask, proximity_mask):
    n, in_ch = x.shape
    assert in_ch == 1, "GapAwareGNN uses 1-channel node features (GATConv(1, ...))"
    heads, c1 = params["temporal"]["att_src"].shape
    c2 = params["conv2"]["att_src"].shape[1]
    hidden = params["fusion_w"].shape[1]
    half = params["cls_w1"].shape[1]
    num_classes = params["cls_w2"].shape[1]
    e = edge_index.shape[1]
    hb = 3 * heads

    if edge_attr is None:
        edge_attr = jnp.zeros((e, params["temporal"]["lin_edge"].shape[0]), jnp.float32)

    branch_params = (params["temporal"], params["gap"], params["proximity"])
    masks = (direct_temporal_mask, gap_temporal_mask, proximity_mask)

    w1_l, asrc_l, adst_l, sbias_l, b1flat_l = [], [], [], [], []
    for p, mk in zip(branch_params, masks):
        mk = jnp.zeros((e,), bool) if mk is None else mk
        adj_b, ea = _dense_graph_with_attr(edge_index, edge_attr, mk, n)
        esc = _edge_scores(ea, p["lin_edge"], p["att_edge"])              # [H, N, N]
        # `mask is None or mask.sum() == 0` branch of the PyTorch module: the branch
        # output must be exactly zeros.  Scale w, bias AND the edge scores by the
        # validity flag (aggregation = softmax(self-loops) @ 0 == 0); no host sync,
        # no lax.cond, fully jit-able.
        valid = (jnp.sum(mk) > 0).astype(jnp.float32)
        w1_l.append(p["w"].reshape(in_ch, heads, c1)[0] * valid)          # [H, C1]
        asrc_l.append(p["att_src"])
        adst_l.append(p["att_dst"])
        sbias_l.append(esc * valid + MASK_BIAS * (1.0 - adj_b)[None])     # [H, N, N]
        b1flat_l.append(p["bias"][0] * valid)                             # [H*C1]

    # slab 1: layer-1 per-head vectors [3, 3H, C1]  (rows: w, att_src, att_dst)
    slab_b1 = jnp.stack([jnp.concatenate(w1_l, 0),
                         jnp.concatenate(asrc_l, 0),
                         jnp.concatenate(adst_l, 0)], axis=0)
    # slab 2: additive score biases [3H + 1, N, N]  (branch biases + full-graph mask)
    adj_full = _dense_adj_no_attr(edge_index, n)
    slab_graph = jnp.concatenate(
        [jnp.concatenate(sbias_l, 0), (MASK_BIAS * (1.0 - adj_full))[None]], axis=0)

    # fold the per-branch GAT output biases + fusion bias into one effective bias
    fb_eff = jnp.concatenate(b1flat_l, 0) @ params["fusion_w"] + params["fusion_b"][0]

    # head-major weights so every head concat folds into the following contraction
    wf_hm = params["fusion_w"].reshape(hb, c1, hidden)            # [3H, C1, hidden]
    w3_hm = params["conv3"]["w"].reshape(heads, c2, heads * c2)   # [H, C2, H*C2]
    cw1_hm = params["cls_w1"].reshape(heads, c2, half)            # [H, C2, hidden//2]

    # slab 3: conv2/conv3 attention vectors + biases [6, H, C2]
    slab_att23 = jnp.stack([params["conv2"]["att_src"], params["conv2"]["att_dst"],
                            params["conv2"]["bias"].reshape(heads, c2),
                            params["conv3"]["att_src"], params["conv3"]["att_dst"],
                            params["conv3"]["bias"].reshape(heads, c2)], axis=0)

    # slab 4: remaining small tensors, lane-padded to one common width
    mw = max(hidden, half, num_classes)
    pad = lambda v: jnp.pad(v, ((0, 0), (0, mw - v.shape[1])))
    misc = jnp.concatenate([pad(fb_eff[None, :]),        # row 0          : fusion bias
                            pad(params["cls_b1"]),       # row 1          : cls bias 1
                            pad(params["cls_b2"]),       # row 2          : cls bias 2
                            pad(params["cls_w2"])],      # rows 3:3+half  : cls weight 2
                           axis=0)

    args = (x, slab_b1, slab_graph, wf_hm, params["conv2"]["w"], slab_att23,
            w3_hm, cw1_hm, misc)

    vmem = pl.BlockSpec(memory_space=pltpu.MemorySpace.VMEM)
    # No grid: single invocation, whole-array VMEM refs, no 1-step pipeline overhead.
    return pl.pallas_call(
        _gnn_kernel,
        out_shape=jax.ShapeDtypeStruct((n, num_classes), jnp.float32),
        in_specs=[vmem] * len(args),
        out_specs=vmem,
    )(*args)


# --------------------------------------------------------------------------------- main
if __name__ == "__main__":
    key = jax.random.PRNGKey(0)
    kx, kattr, kparam = jax.random.split(key, 3)

    N = 8
    HIDDEN = 32
    NUM_CLASSES = 5

    x = jax.random.normal(kx, (N, 1), jnp.float32)               # node features [N, 1]
    src = jnp.array([0, 1, 2, 3, 4, 5, 6, 7, 0, 2, 4, 6], dtype=jnp.int32)
    dst = jnp.array([1, 2, 3, 4, 5, 6, 7, 0, 3, 5, 7, 1], dtype=jnp.int32)
    edge_index = jnp.stack([src, dst])                           # [2, E]
    E = src.shape[0]
    edge_attr = jax.random.normal(kattr, (E, 3), jnp.float32)    # [E, 3]

    direct_temporal_mask = jnp.array([1, 1, 1, 1, 0, 0, 0, 0, 0, 0, 0, 0], dtype=bool)
    gap_temporal_mask = jnp.array([0, 0, 0, 0, 1, 1, 1, 1, 0, 0, 0, 0], dtype=bool)
    proximity_mask = jnp.array([0, 0, 0, 0, 0, 0, 0, 0, 1, 1, 1, 1], dtype=bool)

    params = init_params(kparam, hidden=HIDDEN, num_classes=NUM_CLASSES)

    out = gap_aware_gnn_forward(params, x, edge_index, edge_attr,
                                direct_temporal_mask, gap_temporal_mask,
                                proximity_mask)
    out = jax.block_until_ready(out)
    assert out.shape == (N, NUM_CLASSES)
    assert bool(jnp.all(jnp.isfinite(out)))
    print("KERNEL_OK")
</pallas_src>

<mosaic_0001>
module attributes {stable_mosaic.version = 11 : i64} {
  func.func @_gnn_kernel(%arg0: memref<8x1xf32, #tpu.memory_space<vmem>>, %arg1: memref<3x12x4xf32, #tpu.memory_space<vmem>>, %arg2: memref<13x8x8xf32, #tpu.memory_space<vmem>>, %arg3: memref<12x4x32xf32, #tpu.memory_space<vmem>>, %arg4: memref<32x32xf32, #tpu.memory_space<vmem>>, %arg5: memref<6x4x8xf32, #tpu.memory_space<vmem>>, %arg6: memref<4x8x32xf32, #tpu.memory_space<vmem>>, %arg7: memref<4x8x16xf32, #tpu.memory_space<vmem>>, %arg8: memref<19x32xf32, #tpu.memory_space<vmem>>, %arg9: memref<8x5xf32, #tpu.memory_space<vmem>>) attributes {dimension_semantics = [], scalar_prefetch = 0 : i64, scratch_operands = 0 : i64, tpu.core_type = #tpu.core_type<tc>} {
    %c0 = arith.constant 0 : index
    %c0_0 = arith.constant 0 : index
    %0 = vector.load %arg0[%c0, %c0_0] : memref<8x1xf32, #tpu.memory_space<vmem>>, vector<8x1xf32>
    %c0_1 = arith.constant 0 : index
    %c0_2 = arith.constant 0 : index
    %c0_3 = arith.constant 0 : index
    %1 = vector.load %arg1[%c0_1, %c0_2, %c0_3] : memref<3x12x4xf32, #tpu.memory_space<vmem>>, vector<1x12x4xf32>
    %2 = vector.shape_cast %1 : vector<1x12x4xf32> to vector<12x4xf32>
    %3 = vector.shape_cast %0 : vector<8x1xf32> to vector<1x8x1xf32>
    %4 = vector.shape_cast %2 : vector<12x4xf32> to vector<12x1x4xf32>
    %5 = vector.broadcast %3 : vector<1x8x1xf32> to vector<12x8x4xf32>
    %6 = vector.broadcast %4 : vector<12x1x4xf32> to vector<12x8x4xf32>
    %7 = arith.mulf %5, %6 : vector<12x8x4xf32>
    %c1 = arith.constant 1 : index
    %c0_4 = arith.constant 0 : index
    %c0_5 = arith.constant 0 : index
    %8 = vector.load %arg1[%c1, %c0_4, %c0_5] : memref<3x12x4xf32, #tpu.memory_space<vmem>>, vector<1x12x4xf32>
    %9 = vector.shape_cast %8 : vector<1x12x4xf32> to vector<12x4xf32>
    %c2 = arith.constant 2 : index
    %c0_6 = arith.constant 0 : index
    %c0_7 = arith.constant 0 : index
    %10 = vector.load %arg1[%c2, %c0_6, %c0_7] : memref<3x12x4xf32, #tpu.memory_space<vmem>>, vector<1x12x4xf32>
    %11 = vector.shape_cast %10 : vector<1x12x4xf32> to vector<12x4xf32>
    %c0_8 = arith.constant 0 : index
    %c0_9 = arith.constant 0 : index
    %c0_10 = arith.constant 0 : index
    %12 = vector.load %arg2[%c0_8, %c0_9, %c0_10] : memref<13x8x8xf32, #tpu.memory_space<vmem>>, vector<12x8x8xf32>
    %13 = vector.shape_cast %11 : vector<12x4xf32> to vector<12x1x4xf32>
    %14 = vector.broadcast %13 : vector<12x1x4xf32> to vector<12x8x4xf32>
    %15 = arith.mulf %7, %14 : vector<12x8x4xf32>
    %cst = arith.constant dense<0.000000e+00> : vector<12x8xf32>
    %16 = vector.multi_reduction <add>, %15, %cst [2] : vector<12x8x4xf32> to vector<12x8xf32>
    %17 = vector.shape_cast %16 : vector<12x8xf32> to vector<12x8x1xf32>
    %18 = vector.shape_cast %9 : vector<12x4xf32> to vector<12x1x4xf32>
    %19 = vector.broadcast %18 : vector<12x1x4xf32> to vector<12x8x4xf32>
    %20 = arith.mulf %7, %19 : vector<12x8x4xf32>
    %cst_11 = arith.constant dense<0.000000e+00> : vector<12x8xf32>
    %21 = vector.multi_reduction <add>, %20, %cst_11 [2] : vector<12x8x4xf32> to vector<12x8xf32>
    %22 = vector.shape_cast %21 : vector<12x8xf32> to vector<12x1x8xf32>
    %23 = vector.broadcast %17 : vector<12x8x1xf32> to vector<12x8x8xf32>
    %24 = vector.broadcast %22 : vector<12x1x8xf32> to vector<12x8x8xf32>
    %25 = arith.addf %23, %24 : vector<12x8x8xf32>
    %26 = arith.addf %25, %12 : vector<12x8x8xf32>
    %cst_12 = arith.constant 0.000000e+00 : f32
    %27 = vector.broadcast %cst_12 : f32 to vector<12x8x8xf32>
    %28 = arith.cmpf oge, %26, %27 : vector<12x8x8xf32>
    %cst_13 = arith.constant 2.000000e-01 : f32
    %29 = vector.broadcast %cst_13 : f32 to vector<12x8x8xf32>
    %30 = arith.mulf %29, %26 : vector<12x8x8xf32>
    %31 = arith.select %28, %26, %30 : vector<12x8x8xi1>, vector<12x8x8xf32>
    %cst_14 = arith.constant dense<0xFF800000> : vector<12x8xf32>
    %32 = vector.multi_reduction <maximumf>, %31, %cst_14 [2] : vector<12x8x8xf32> to vector<12x8xf32>
    %33 = vector.shape_cast %32 : vector<12x8xf32> to vector<12x8x1xf32>
    %34 = vector.broadcast %33 : vector<12x8x1xf32> to vector<12x8x8xf32>
    %35 = arith.subf %31, %34 : vector<12x8x8xf32>
    %36 = math.exp %35 : vector<12x8x8xf32>
    %cst_15 = arith.constant dense<0.000000e+00> : vector<12x8xf32>
    %37 = vector.multi_reduction <add>, %36, %cst_15 [2] : vector<12x8x8xf32> to vector<12x8xf32>
    %38 = vector.shape_cast %37 : vector<12x8xf32> to vector<12x8x1xf32>
    %39 = tpu.reciprocal %38 {approx = true} : vector<12x8x1xf32> -> vector<12x8x1xf32>
    %40 = vector.broadcast %39 : vector<12x8x1xf32> to vector<12x8x8xf32>
    %41 = arith.mulf %36, %40 : vector<12x8x8xf32>
    %cst_16 = arith.constant dense<0.000000e+00> : vector<12x8x4xf32>
    %42 = tpu.matmul %41, %7, %cst_16 {dimension_numbers = #tpu.dot_dimension_numbers<[2], [1], [1], [2], [0, 0, 0, 1, 1, 2], [0], [0]>} : vector<12x8x8xf32>, vector<12x8x4xf32>, vector<12x8x4xf32> -> vector<12x8x4xf32>
    %c0_17 = arith.constant 0 : index
    %c0_18 = arith.constant 0 : index
    %c0_19 = arith.constant 0 : index
    %43 = vector.load %arg3[%c0_17, %c0_18, %c0_19] : memref<12x4x32xf32, #tpu.memory_space<vmem>>, vector<12x4x32xf32>
    %cst_20 = arith.constant dense<0.000000e+00> : vector<12x8x32xf32>
    %44 = tpu.matmul %42, %43, %cst_20 {dimension_numbers = #tpu.dot_dimension_numbers<[2], [1], [1], [2], [0, 0, 0, 1, 1, 2], [0], [0]>} : vector<12x8x4xf32>, vector<12x4x32xf32>, vector<12x8x32xf32> -> vector<12x8x32xf32>
    %cst_21 = arith.constant dense<0.000000e+00> : vector<8x32xf32>
    %45 = vector.multi_reduction <add>, %44, %cst_21 [0] : vector<12x8x32xf32> to vector<8x32xf32>
    %c0_22 = arith.constant 0 : index
    %c0_23 = arith.constant 0 : index
    %46 = vector.load %arg8[%c0_22, %c0_23] : memref<19x32xf32, #tpu.memory_space<vmem>>, vector<1x32xf32>
    %47 = vector.broadcast %46 : vector<1x32xf32> to vector<8x32xf32>
    %48 = arith.addf %45, %47 : vector<8x32xf32>
    %cst_24 = arith.constant 0.000000e+00 : f32
    %49 = vector.broadcast %cst_24 : f32 to vector<8x32xf32>
    %50 = arith.maximumf %48, %49 : vector<8x32xf32>
    %c12 = arith.constant 12 : index
    %c0_25 = arith.constant 0 : index
    %c0_26 = arith.constant 0 : index
    %51 = vector.load %arg2[%c12, %c0_25, %c0_26] : memref<13x8x8xf32, #tpu.memory_space<vmem>>, vector<1x8x8xf32>
    %52 = vector.shape_cast %51 : vector<1x8x8xf32> to vector<8x8xf32>
    %53 = vector.shape_cast %52 : vector<8x8xf32> to vector<1x8x8xf32>
    %c0_27 = arith.constant 0 : index
    %c0_28 = arith.constant 0 : index
    %54 = vector.load %arg4[%c0_27, %c0_28] : memref<32x32xf32, #tpu.memory_space<vmem>>, vector<32x32xf32>
    %cst_29 = arith.constant dense<0.000000e+00> : vector<8x32xf32>
    %55 = tpu.matmul %50, %54, %cst_29 {dimension_numbers = #tpu.dot_dimension_numbers<[1], [0], [0], [1], [0, 0, 1, 1], [], []>} : vector<8x32xf32>, vector<32x32xf32>, vector<8x32xf32> -> vector<8x32xf32>
    %56 = vector.extract_strided_slice %55 {offsets = [0, 0], sizes = [8, 8], strides = [1, 1]} : vector<8x32xf32> to vector<8x8xf32>
    %57 = vector.extract_strided_slice %55 {offsets = [0, 8], sizes = [8, 8], strides = [1, 1]} : vector<8x32xf32> to vector<8x8xf32>
    %58 = vector.extract_strided_slice %55 {offsets = [0, 16], sizes = [8, 8], strides = [1, 1]} : vector<8x32xf32> to vector<8x8xf32>
    %59 = vector.extract_strided_slice %55 {offsets = [0, 24], sizes = [8, 8], strides = [1, 1]} : vector<8x32xf32> to vector<8x8xf32>
    %60 = vector.shape_cast %56 : vector<8x8xf32> to vector<1x8x8xf32>
    %61 = vector.shape_cast %57 : vector<8x8xf32> to vector<1x8x8xf32>
    %62 = vector.shape_cast %58 : vector<8x8xf32> to vector<1x8x8xf32>
    %63 = vector.shape_cast %59 : vector<8x8xf32> to vector<1x8x8xf32>
    %64 = tpu.concatenate %60, %61, %62, %63 in 0 : vector<1x8x8xf32>, vector<1x8x8xf32>, vector<1x8x8xf32>, vector<1x8x8xf32> -> vector<4x8x8xf32>
    %c0_30 = arith.constant 0 : index
    %c0_31 = arith.constant 0 : index
    %c0_32 = arith.constant 0 : index
    %65 = vector.load %arg5[%c0_30, %c0_31, %c0_32] : memref<6x4x8xf32, #tpu.memory_space<vmem>>, vector<1x4x8xf32>
    %66 = vector.shape_cast %65 : vector<1x4x8xf32> to vector<4x8xf32>
    %c1_33 = arith.constant 1 : index
    %c0_34 = arith.constant 0 : index
    %c0_35 = arith.constant 0 : index
    %67 = vector.load %arg5[%c1_33, %c0_34, %c0_35] : memref<6x4x8xf32, #tpu.memory_space<vmem>>, vector<1x4x8xf32>
    %68 = vector.shape_cast %67 : vector<1x4x8xf32> to vector<4x8xf32>
    %69 = vector.shape_cast %68 : vector<4x8xf32> to vector<4x1x8xf32>
    %70 = vector.broadcast %69 : vector<4x1x8xf32> to vector<4x8x8xf32>
    %71 = arith.mulf %64, %70 : vector<4x8x8xf32>
    %cst_36 = arith.constant dense<0.000000e+00> : vector<4x8xf32>
    %72 = vector.multi_reduction <add>, %71, %cst_36 [2] : vector<4x8x8xf32> to vector<4x8xf32>
    %73 = vector.shape_cast %72 : vector<4x8xf32> to vector<4x8x1xf32>
    %74 = vector.shape_cast %66 : vector<4x8xf32> to vector<4x1x8xf32>
    %75 = vector.broadcast %74 : vector<4x1x8xf32> to vector<4x8x8xf32>
    %76 = arith.mulf %64, %75 : vector<4x8x8xf32>
    %cst_37 = arith.constant dense<0.000000e+00> : vector<4x8xf32>
    %77 = vector.multi_reduction <add>, %76, %cst_37 [2] : vector<4x8x8xf32> to vector<4x8xf32>
    %78 = vector.shape_cast %77 : vector<4x8xf32> to vector<4x1x8xf32>
    %79 = vector.broadcast %73 : vector<4x8x1xf32> to vector<4x8x8xf32>
    %80 = vector.broadcast %78 : vector<4x1x8xf32> to vector<4x8x8xf32>
    %81 = arith.addf %79, %80 : vector<4x8x8xf32>
    %82 = vector.broadcast %53 : vector<1x8x8xf32> to vector<4x8x8xf32>
    %83 = arith.addf %81, %82 : vector<4x8x8xf32>
    %cst_38 = arith.constant 0.000000e+00 : f32
    %84 = vector.broadcast %cst_38 : f32 to vector<4x8x8xf32>
    %85 = arith.cmpf oge, %83, %84 : vector<4x8x8xf32>
    %cst_39 = arith.constant 2.000000e-01 : f32
    %86 = vector.broadcast %cst_39 : f32 to vector<4x8x8xf32>
    %87 = arith.mulf %86, %83 : vector<4x8x8xf32>
    %88 = arith.select %85, %83, %87 : vector<4x8x8xi1>, vector<4x8x8xf32>
    %cst_40 = arith.constant dense<0xFF800000> : vector<4x8xf32>
    %89 = vector.multi_reduction <maximumf>, %88, %cst_40 [2] : vector<4x8x8xf32> to vector<4x8xf32>
    %90 = vector.shape_cast %89 : vector<4x8xf32> to vector<4x8x1xf32>
    %91 = vector.broadcast %90 : vector<4x8x1xf32> to vector<4x8x8xf32>
    %92 = arith.subf %88, %91 : vector<4x8x8xf32>
    %93 = math.exp %92 : vector<4x8x8xf32>
    %cst_41 = arith.constant dense<0.000000e+00> : vector<4x8xf32>
    %94 = vector.multi_reduction <add>, %93, %cst_41 [2] : vector<4x8x8xf32> to vector<4x8xf32>
    %95 = vector.shape_cast %94 : vector<4x8xf32> to vector<4x8x1xf32>
    %96 = tpu.reciprocal %95 {approx = true} : vector<4x8x1xf32> -> vector<4x8x1xf32>
    %97 = vector.broadcast %96 : vector<4x8x1xf32> to vector<4x8x8xf32>
    %98 = arith.mulf %93, %97 : vector<4x8x8xf32>
    %cst_42 = arith.constant dense<0.000000e+00> : vector<4x8x8xf32>
    %99 = tpu.matmul %98, %64, %cst_42 {dimension_numbers = #tpu.dot_dimension_numbers<[2], [1], [1], [2], [0, 0, 0, 1, 1, 2], [0], [0]>} : vector<4x8x8xf32>, vector<4x8x8xf32>, vector<4x8x8xf32> -> vector<4x8x8xf32>
    %c2_43 = arith.constant 2 : index
    %c0_44 = arith.constant 0 : index
    %c0_45 = arith.constant 0 : index
    %100 = vector.load %arg5[%c2_43, %c0_44, %c0_45] : memref<6x4x8xf32, #tpu.memory_space<vmem>>, vector<1x4x8xf32>
    %101 = vector.shape_cast %100 : vector<1x4x8xf32> to vector<4x8xf32>
    %102 = vector.shape_cast %101 : vector<4x8xf32> to vector<4x1x8xf32>
    %103 = vector.broadcast %102 : vector<4x1x8xf32> to vector<4x8x8xf32>
    %104 = arith.addf %99, %103 : vector<4x8x8xf32>
    %cst_46 = arith.constant 0.000000e+00 : f32
    %105 = vector.broadcast %cst_46 : f32 to vector<4x8x8xf32>
    %106 = arith.maximumf %104, %105 : vector<4x8x8xf32>
    %c0_47 = arith.constant 0 : index
    %c0_48 = arith.constant 0 : index
    %c0_49 = arith.constant 0 : index
    %107 = vector.load %arg6[%c0_47, %c0_48, %c0_49] : memref<4x8x32xf32, #tpu.memory_space<vmem>>, vector<4x8x32xf32>
    %cst_50 = arith.constant dense<0.000000e+00> : vector<4x8x32xf32>
    %108 = tpu.matmul %106, %107, %cst_50 {dimension_numbers = #tpu.dot_dimension_numbers<[2], [1], [1], [2], [0, 0, 0, 1, 1, 2], [0], [0]>} : vector<4x8x8xf32>, vector<4x8x32xf32>, vector<4x8x32xf32> -> vector<4x8x32xf32>
    %cst_51 = arith.constant dense<0.000000e+00> : vector<8x32xf32>
    %109 = vector.multi_reduction <add>, %108, %cst_51 [0] : vector<4x8x32xf32> to vector<8x32xf32>
    %110 = vector.extract_strided_slice %109 {offsets = [0, 0], sizes = [8, 8], strides = [1, 1]} : vector<8x32xf32> to vector<8x8xf32>
    %111 = vector.extract_strided_slice %109 {offsets = [0, 8], sizes = [8, 8], strides = [1, 1]} : vector<8x32xf32> to vector<8x8xf32>
    %112 = vector.extract_strided_slice %109 {offsets = [0, 16], sizes = [8, 8], strides = [1, 1]} : vector<8x32xf32> to vector<8x8xf32>
    %113 = vector.extract_strided_slice %109 {offsets = [0, 24], sizes = [8, 8], strides = [1, 1]} : vector<8x32xf32> to vector<8x8xf32>
    %114 = vector.shape_cast %110 : vector<8x8xf32> to vector<1x8x8xf32>
    %115 = vector.shape_cast %111 : vector<8x8xf32> to vector<1x8x8xf32>
    %116 = vector.shape_cast %112 : vector<8x8xf32> to vector<1x8x8xf32>
    %117 = vector.shape_cast %113 : vector<8x8xf32> to vector<1x8x8xf32>
    %118 = tpu.concatenate %114, %115, %116, %117 in 0 : vector<1x8x8xf32>, vector<1x8x8xf32>, vector<1x8x8xf32>, vector<1x8x8xf32> -> vector<4x8x8xf32>
    %c3 = arith.constant 3 : index
    %c0_52 = arith.constant 0 : index
    %c0_53 = arith.constant 0 : index
    %119 = vector.load %arg5[%c3, %c0_52, %c0_53] : memref<6x4x8xf32, #tpu.memory_space<vmem>>, vector<1x4x8xf32>
    %120 = vector.shape_cast %119 : vector<1x4x8xf32> to vector<4x8xf32>
    %c4 = arith.constant 4 : index
    %c0_54 = arith.constant 0 : index
    %c0_55 = arith.constant 0 : index
    %121 = vector.load %arg5[%c4, %c0_54, %c0_55] : memref<6x4x8xf32, #tpu.memory_space<vmem>>, vector<1x4x8xf32>
    %122 = vector.shape_cast %121 : vector<1x4x8xf32> to vector<4x8xf32>
    %123 = vector.shape_cast %122 : vector<4x8xf32> to vector<4x1x8xf32>
    %124 = vector.broadcast %123 : vector<4x1x8xf32> to vector<4x8x8xf32>
    %125 = arith.mulf %118, %124 : vector<4x8x8xf32>
    %cst_56 = arith.constant dense<0.000000e+00> : vector<4x8xf32>
    %126 = vector.multi_reduction <add>, %125, %cst_56 [2] : vector<4x8x8xf32> to vector<4x8xf32>
    %127 = vector.shape_cast %126 : vector<4x8xf32> to vector<4x8x1xf32>
    %128 = vector.shape_cast %120 : vector<4x8xf32> to vector<4x1x8xf32>
    %129 = vector.broadcast %128 : vector<4x1x8xf32> to vector<4x8x8xf32>
    %130 = arith.mulf %118, %129 : vector<4x8x8xf32>
    %cst_57 = arith.constant dense<0.000000e+00> : vector<4x8xf32>
    %131 = vector.multi_reduction <add>, %130, %cst_57 [2] : vector<4x8x8xf32> to vector<4x8xf32>
    %132 = vector.shape_cast %131 : vector<4x8xf32> to vector<4x1x8xf32>
    %133 = vector.broadcast %127 : vector<4x8x1xf32> to vector<4x8x8xf32>
    %134 = vector.broadcast %132 : vector<4x1x8xf32> to vector<4x8x8xf32>
    %135 = arith.addf %133, %134 : vector<4x8x8xf32>
    %136 = vector.broadcast %53 : vector<1x8x8xf32> to vector<4x8x8xf32>
    %137 = arith.addf %135, %136 : vector<4x8x8xf32>
    %cst_58 = arith.constant 0.000000e+00 : f32
    %138 = vector.broadcast %cst_58 : f32 to vector<4x8x8xf32>
    %139 = arith.cmpf oge, %137, %138 : vector<4x8x8xf32>
    %cst_59 = arith.constant 2.000000e-01 : f32
    %140 = vector.broadcast %cst_59 : f32 to vector<4x8x8xf32>
    %141 = arith.mulf %140, %137 : vector<4x8x8xf32>
    %142 = arith.select %139, %137, %141 : vector<4x8x8xi1>, vector<4x8x8xf32>
    %cst_60 = arith.constant dense<0xFF800000> : vector<4x8xf32>
    %143 = vector.multi_reduction <maximumf>, %142, %cst_60 [2] : vector<4x8x8xf32> to vector<4x8xf32>
    %144 = vector.shape_cast %143 : vector<4x8xf32> to vector<4x8x1xf32>
    %145 = vector.broadcast %144 : vector<4x8x1xf32> to vector<4x8x8xf32>
    %146 = arith.subf %142, %145 : vector<4x8x8xf32>
    %147 = math.exp %146 : vector<4x8x8xf32>
    %cst_61 = arith.constant dense<0.000000e+00> : vector<4x8xf32>
    %148 = vector.multi_reduction <add>, %147, %cst_61 [2] : vector<4x8x8xf32> to vector<4x8xf32>
    %149 = vector.shape_cast %148 : vector<4x8xf32> to vector<4x8x1xf32>
    %150 = tpu.reciprocal %149 {approx = true} : vector<4x8x1xf32> -> vector<4x8x1xf32>
    %151 = vector.broadcast %150 : vector<4x8x1xf32> to vector<4x8x8xf32>
    %152 = arith.mulf %147, %151 : vector<4x8x8xf32>
    %cst_62 = arith.constant dense<0.000000e+00> : vector<4x8x8xf32>
    %153 = tpu.matmul %152, %118, %cst_62 {dimension_numbers = #tpu.dot_dimension_numbers<[2], [1], [1], [2], [0, 0, 0, 1, 1, 2], [0], [0]>} : vector<4x8x8xf32>, vector<4x8x8xf32>, vector<4x8x8xf32> -> vector<4x8x8xf32>
    %c5 = arith.constant 5 : index
    %c0_63 = arith.constant 0 : index
    %c0_64 = arith.constant 0 : index
    %154 = vector.load %arg5[%c5, %c0_63, %c0_64] : memref<6x4x8xf32, #tpu.memory_space<vmem>>, vector<1x4x8xf32>
    %155 = vector.shape_cast %154 : vector<1x4x8xf32> to vector<4x8xf32>
    %156 = vector.shape_cast %155 : vector<4x8xf32> to vector<4x1x8xf32>
    %157 = vector.broadcast %156 : vector<4x1x8xf32> to vector<4x8x8xf32>
    %158 = arith.addf %153, %157 : vector<4x8x8xf32>
    %cst_65 = arith.constant 0.000000e+00 : f32
    %159 = vector.broadcast %cst_65 : f32 to vector<4x8x8xf32>
    %160 = arith.maximumf %158, %159 : vector<4x8x8xf32>
    %c0_66 = arith.constant 0 : index
    %c0_67 = arith.constant 0 : index
    %c0_68 = arith.constant 0 : index
    %161 = vector.load %arg7[%c0_66, %c0_67, %c0_68] : memref<4x8x16xf32, #tpu.memory_space<vmem>>, vector<4x8x16xf32>
    %cst_69 = arith.constant dense<0.000000e+00> : vector<4x8x16xf32>
    %162 = tpu.matmul %160, %161, %cst_69 {dimension_numbers = #tpu.dot_dimension_numbers<[2], [1], [1], [2], [0, 0, 0, 1, 1, 2], [0], [0]>} : vector<4x8x8xf32>, vector<4x8x16xf32>, vector<4x8x16xf32> -> vector<4x8x16xf32>
    %cst_70 = arith.constant dense<0.000000e+00> : vector<8x16xf32>
    %163 = vector.multi_reduction <add>, %162, %cst_70 [0] : vector<4x8x16xf32> to vector<8x16xf32>
    %c1_71 = arith.constant 1 : index
    %c0_72 = arith.constant 0 : index
    %164 = vector.load %arg8[%c1_71, %c0_72] : memref<19x32xf32, #tpu.memory_space<vmem>>, vector<1x16xf32>
    %165 = vector.broadcast %164 : vector<1x16xf32> to vector<8x16xf32>
    %166 = arith.addf %163, %165 : vector<8x16xf32>
    %cst_73 = arith.constant 0.000000e+00 : f32
    %167 = vector.broadcast %cst_73 : f32 to vector<8x16xf32>
    %168 = arith.maximumf %166, %167 : vector<8x16xf32>
    %c3_74 = arith.constant 3 : index
    %c0_75 = arith.constant 0 : index
    %169 = vector.load %arg8[%c3_74, %c0_75] : memref<19x32xf32, #tpu.memory_space<vmem>>, vector<16x5xf32>
    %cst_76 = arith.constant dense<0.000000e+00> : vector<8x5xf32>
    %170 = tpu.matmul %168, %169, %cst_76 {dimension_numbers = #tpu.dot_dimension_numbers<[1], [0], [0], [1], [0, 0, 1, 1], [], []>} : vector<8x16xf32>, vector<16x5xf32>, vector<8x5xf32> -> vector<8x5xf32>
    %c2_77 = arith.constant 2 : index
    %c0_78 = arith.constant 0 : index
    %171 = vector.load %arg8[%c2_77, %c0_78] : memref<19x32xf32, #tpu.memory_space<vmem>>, vector<1x5xf32>
    %172 = vector.broadcast %171 : vector<1x5xf32> to vector<8x5xf32>
    %173 = arith.addf %170, %172 : vector<8x5xf32>
    %cst_79 = arith.constant dense<0xFF800000> : vector<8xf32>
    %174 = vector.multi_reduction <maximumf>, %173, %cst_79 [1] : vector<8x5xf32> to vector<8xf32>
    %175 = vector.shape_cast %174 : vector<8xf32> to vector<8x1xf32>
    %176 = vector.broadcast %175 : vector<8x1xf32> to vector<8x5xf32>
    %177 = arith.subf %173, %176 : vector<8x5xf32>
    %178 = math.exp %177 : vector<8x5xf32>
    %cst_80 = arith.constant dense<0.000000e+00> : vector<8xf32>
    %179 = vector.multi_reduction <add>, %178, %cst_80 [1] : vector<8x5xf32> to vector<8xf32>
    %180 = vector.shape_cast %179 : vector<8xf32> to vector<8x1xf32>
    %181 = math.log %180 : vector<8x1xf32>
    %182 = arith.addf %175, %181 : vector<8x1xf32>
    %183 = vector.broadcast %182 : vector<8x1xf32> to vector<8x5xf32>
    %184 = arith.subf %173, %183 : vector<8x5xf32>
    %c0_81 = arith.constant 0 : index
    %c0_82 = arith.constant 0 : index
    %185 = vector.load %arg9[%c0_81, %c0_82] : memref<8x5xf32, #tpu.memory_space<vmem>>, vector<8x5xf32>
    tpu.vector_store %arg9[%c0_81, %c0_82], %184 {strides = array<i32>} : memref<8x5xf32, #tpu.memory_space<vmem>>, vector<8x5xf32>,
    return
  }
}

</mosaic_0001>

<llo_original>
// kernel: gap_aware_gnn_forward.1
$region0: #{gap_aware_gnn_forward.1}
  #allocation0 [shape = 'u32[]', space=smem, size = 0x4, offset = 0x4, fixed_abs, tag = 'smem constant byte address 0x4 - core index']
  #allocation1 [shape = 'u32[144,128]{1,0:T(1,128)}', space=vmem, size = 0x12000, scoped, tag = 'internal scratch']
  %s0 = inlined_call_operand.vmem [shape: f32[8,1], index: 0, kind: input, shape index: {}]
  %s1 = inlined_call_operand.vmem [shape: f32[3,12,4], index: 1, kind: input, shape index: {}]
  %s2 = inlined_call_operand.vmem [shape: f32[13,8,8], index: 2, kind: input, shape index: {}]
  %s3 = inlined_call_operand.vmem [shape: f32[12,4,32], index: 3, kind: input, shape index: {}]
  %s4 = inlined_call_operand.vmem [shape: f32[32,32], index: 4, kind: input, shape index: {}]
  %s5 = inlined_call_operand.vmem [shape: f32[6,4,8], index: 5, kind: input, shape index: {}]
  %s6 = inlined_call_operand.vmem [shape: f32[4,8,32], index: 6, kind: input, shape index: {}]
  %s7 = inlined_call_operand.vmem [shape: f32[4,8,16], index: 7, kind: input, shape index: {}]
  %s8 = inlined_call_operand.vmem [shape: f32[19,32], index: 8, kind: input, shape index: {}]
  %s9 = inlined_call_operand.hbm [shape: f32[8,5], index: 9, kind: output, shape index: {}]
  %s10 = sld [smem:[#allocation0]]
  $region46: #{gap_aware_gnn_forward.1} parent=0
    _
  %s12 = ssub.s32 1, %s10
  %s13 = scalar_select 0, %s12, %s10
  $region1: #{gap_aware_gnn_forward.1} parent=0
    #allocation2 [shape = 'u8[4096]{0}', space=vmem, size = 0x1000, scoped, tag = 'output window, operand 0, single buffered']
    #allocation3 [shape = 's32[1]{0}', space=sflag, size = 0x4, scoped, tag = 'scoped memory for gap_aware_gnn_forward.1']
    %14 = vsyncpa [#allocation3], 0
    // Predicated region
    $region2: #{gap_aware_gnn_forward.1} parent=1 // pred_check
      _
    $region3: #{gap_aware_gnn_forward.1} parent=1 // pred_check_branch
      %16 = sbr.rel (0) target = $region5
    $region4: #{gap_aware_gnn_forward.1} parent=1 // pred_region
      _
    $region5: #{gap_aware_gnn_forward.1} parent=1 // pred_fallthru
      _
    // Predicated region
    $region6: #{gap_aware_gnn_forward.1} parent=1 // pred_check
      _
    $region7: #{gap_aware_gnn_forward.1} parent=1 // pred_check_branch
      %18 = sbr.rel (0) target = $region9
    $region8: #{gap_aware_gnn_forward.1} parent=1 // pred_region
      _
    $region9: #{gap_aware_gnn_forward.1} parent=1 // pred_fallthru
      _
    // Predicated region
    $region10: #{gap_aware_gnn_forward.1} parent=1 // pred_check
      _
    $region11: #{gap_aware_gnn_forward.1} parent=1 // pred_check_branch
      %20 = sbr.rel (0) target = $region13
    $region12: #{gap_aware_gnn_forward.1} parent=1 // pred_region
      _
    $region13: #{gap_aware_gnn_forward.1} parent=1 // pred_fallthru
      _
    // Predicated region
    $region14: #{gap_aware_gnn_forward.1} parent=1 // pred_check
      _
    $region15: #{gap_aware_gnn_forward.1} parent=1 // pred_check_branch
      %22 = sbr.rel (0) target = $region17
    $region16: #{gap_aware_gnn_forward.1} parent=1 // pred_region
      _
    $region17: #{gap_aware_gnn_forward.1} parent=1 // pred_fallthru
      _
    // Predicated region
    $region18: #{gap_aware_gnn_forward.1} parent=1 // pred_check
      _
    $region19: #{gap_aware_gnn_forward.1} parent=1 // pred_check_branch
      %24 = sbr.rel (0) target = $region21
    $region20: #{gap_aware_gnn_forward.1} parent=1 // pred_region
      _
    $region21: #{gap_aware_gnn_forward.1} parent=1 // pred_fallthru
      _
    // Predicated region
    $region22: #{gap_aware_gnn_forward.1} parent=1 // pred_check
      _
    $region23: #{gap_aware_gnn_forward.1} parent=1 // pred_check_branch
      %26 = sbr.rel (0) target = $region25
    $region24: #{gap_aware_gnn_forward.1} parent=1 // pred_region
      _
    $region25: #{gap_aware_gnn_forward.1} parent=1 // pred_fallthru
      _
    // Predicated region
    $region26: #{gap_aware_gnn_forward.1} parent=1 // pred_check
      _
    $region27: #{gap_aware_gnn_forward.1} parent=1 // pred_check_branch
      %28 = sbr.rel (0) target = $region29
    $region28: #{gap_aware_gnn_forward.1} parent=1 // pred_region
      _
    $region29: #{gap_aware_gnn_forward.1} parent=1 // pred_fallthru
      _
    // Predicated region
    $region30: #{gap_aware_gnn_forward.1} parent=1 // pred_check
      _
    $region31: #{gap_aware_gnn_forward.1} parent=1 // pred_check_branch
      %30 = sbr.rel (0) target = $region33
    $region32: #{gap_aware_gnn_forward.1} parent=1 // pred_region
      _
    $region33: #{gap_aware_gnn_forward.1} parent=1 // pred_fallthru
      _
    // Predicated region
    $region34: #{gap_aware_gnn_forward.1} parent=1 // pred_check
      _
    $region35: #{gap_aware_gnn_forward.1} parent=1 // pred_check_branch
      %32 = sbr.rel (0) target = $region37
    $region36: #{gap_aware_gnn_forward.1} parent=1 // pred_region
      _
    $region37: #{gap_aware_gnn_forward.1} parent=1 // pred_fallthru
      _
    %v33 = vld [vmem:[%s0] sm:$0xff]
    %v34 = vld [vmem:[%s1] sm:$0xff]
    %v35 = vld [vmem:[%s1 + $0x8] sm:$0xf]
    %v38 = vcombine.high %v34, %v34
    %v40 = vunpack.c.l.s4 1966171168
    %v41 = vunpack.c.0.s8 %v40
    %v42 = vlaneseq
    %v43 = vshrl.u32 %v42, 7
    %v44 = vsub.s32 %v41, %v43
    %v45 = vrot.slane %v34, %v44
    %v47 = vunpack.c.l.s4 1966171168
    %v48 = vunpack.c.0.s8 %v47
    %v49 = vlaneseq
    %v50 = vshrl.u32 %v49, 7
    %v51 = vsub.s32 %v48, %v50
    %v52 = vrot.slane %v38, %v51
    %v53 = vcombine.high %v45, %v45
    %v54 = vcombine.high %v52, %v52
    %v56 = vunpack.c.l.s4 1966171168
    %v57 = vunpack.c.0.s8 %v56
    %v58 = vlaneseq
    %v59 = vshrl.u32 %v58, 7
    %v60 = vsub.s32 %v57, %v59
    %v61 = vrot.slane %v45, %v60
    %v63 = vunpack.c.l.s4 1966171168
    %v64 = vunpack.c.0.s8 %v63
    %v65 = vlaneseq
    %v66 = vshrl.u32 %v65, 7
    %v67 = vsub.s32 %v64, %v66
    %v68 = vrot.slane %v52, %v67
    %v70 = vunpack.c.l.s4 1966171168
    %v71 = vunpack.c.0.s8 %v70
    %v72 = vlaneseq
    %v73 = vshrl.u32 %v72, 7
    %v74 = vsub.s32 %v71, %v73
    %v75 = vrot.slane %v53, %v74
    %v77 = vunpack.c.l.s4 1966171168
    %v78 = vunpack.c.0.s8 %v77
    %v79 = vlaneseq
    %v80 = vshrl.u32 %v79, 7
    %v81 = vsub.s32 %v78, %v80
    %v82 = vrot.slane %v54, %v81
    %v83 = vcombine.high %v61, %v61
    %v84 = vcombine.high %v68, %v68
    %v85 = vcombine.high %v75, %v75
    %v86 = vcombine.high %v82, %v82
    %v88 = vunpack.c.l.s4 1966171168
    %v89 = vunpack.c.0.s8 %v88
    %v90 = vlaneseq
    %v91 = vshrl.u32 %v90, 7
    %v92 = vsub.s32 %v89, %v91
    %v93 = vrot.slane %v35, %v92
    %v94 = vcombine.high %v93, %v93
    %v96 = vunpack.c.l.s4 1966171168
    %v97 = vunpack.c.0.s8 %v96
    %v98 = vlaneseq
    %v99 = vshrl.u32 %v98, 7
    %v100 = vsub.s32 %v97, %v99
    %v101 = vrot.slane %v93, %v100
    %v103 = vunpack.c.l.s4 1966171168
    %v104 = vunpack.c.0.s8 %v103
    %v105 = vlaneseq
    %v106 = vshrl.u32 %v105, 7
    %v107 = vsub.s32 %v104, %v106
    %v108 = vrot.slane %v94, %v107
    %v109 = vcombine.high %v101, %v101
    %v110 = vcombine.high %v108, %v108
    %112 = vset.pattern.permute.xlu0 0
    %113 = vperm.xlu0 %112, %v33
    %v114 = vpop.permute.xlu0 %113
    %v116 = vlaneseq
    %v117 = vshrl.u32 %v116, 7
    %v118 = vsub.s32 0, %v117
    %v119 = vrot.slane %v61, %v118
    %v120 = vlaneseq
    %v121 = vshrl.u32 %v120, 7
    %v122 = vsub.s32 0, %v121
    %v123 = vrot.slane %v75, %v122
    %v124 = vlaneseq
    %v125 = vshrl.u32 %v124, 7
    %v126 = vsub.s32 0, %v125
    %v127 = vrot.slane %v83, %v126
    %v128 = vlaneseq
    %v129 = vshrl.u32 %v128, 7
    %v130 = vsub.s32 0, %v129
    %v131 = vrot.slane %v85, %v130
    %v132 = vlaneseq
    %v133 = vshrl.u32 %v132, 7
    %v134 = vsub.s32 0, %v133
    %v135 = vrot.slane %v68, %v134
    %v136 = vlaneseq
    %v137 = vshrl.u32 %v136, 7
    %v138 = vsub.s32 0, %v137
    %v139 = vrot.slane %v82, %v138
    %v140 = vlaneseq
    %v141 = vshrl.u32 %v140, 7
    %v142 = vsub.s32 0, %v141
    %v143 = vrot.slane %v84, %v142
    %v144 = vlaneseq
    %v145 = vshrl.u32 %v144, 7
    %v146 = vsub.s32 0, %v145
    %v147 = vrot.slane %v86, %v146
    %v148 = vlaneseq
    %v149 = vshrl.u32 %v148, 7
    %v150 = vsub.s32 0, %v149
    %v151 = vrot.slane %v101, %v150
    %v152 = vlaneseq
    %v153 = vshrl.u32 %v152, 7
    %v154 = vsub.s32 0, %v153
    %v155 = vrot.slane %v108, %v154
    %v156 = vlaneseq
    %v157 = vshrl.u32 %v156, 7
    %v158 = vsub.s32 0, %v157
    %v159 = vrot.slane %v109, %v158
    %v160 = vlaneseq
    %v161 = vshrl.u32 %v160, 7
    %v162 = vsub.s32 0, %v161
    %v163 = vrot.slane %v110, %v162
    %v176 = vmul.f32 %v114, %v119
    %v177 = vmul.f32 %v114, %v123
    %v178 = vmul.f32 %v114, %v127
    %v179 = vmul.f32 %v114, %v131
    %v180 = vmul.f32 %v114, %v135
    %v181 = vmul.f32 %v114, %v139
    %v182 = vmul.f32 %v114, %v143
    %v183 = vmul.f32 %v114, %v147
    %v184 = vmul.f32 %v114, %v151
    %v185 = vmul.f32 %v114, %v155
    %v186 = vmul.f32 %v114, %v159
    %v187 = vmul.f32 %v114, %v163
    %s188 = scalar_lea.vmem %s1, 16
    %v189 = vld [vmem:[%s188] sm:$0xff]
    %v190 = vld [vmem:[%s188 + $0x8] sm:$0xf]
    %s191 = scalar_lea.vmem %s1, 32
    %v192 = vld [vmem:[%s191] sm:$0xff]
    %v193 = vld [vmem:[%s191 + $0x8] sm:$0xf]
    %v194 = vld [vmem:[%s2] sm:$0xff]
    %v195 = vld [vmem:[%s2 + $0x8] sm:$0xff]
    %v196 = vld [vmem:[%s2 + $0x10] sm:$0xff]
    %v197 = vld [vmem:[%s2 + $0x18] sm:$0xff]
    %v198 = vld [vmem:[%s2 + $0x20] sm:$0xff]
    %v199 = vld [vmem:[%s2 + $0x28] sm:$0xff]
    %v200 = vld [vmem:[%s2 + $0x30] sm:$0xff]
    %v201 = vld [vmem:[%s2 + $0x38] sm:$0xff]
    %v202 = vld [vmem:[%s2 + $0x40] sm:$0xff]
    %v203 = vld [vmem:[%s2 + $0x48] sm:$0xff]
    %v204 = vld [vmem:[%s2 + $0x50] sm:$0xff]
    %v205 = vld [vmem:[%s2 + $0x58] sm:$0xff]
    %v208 = vcombine.high %v192, %v192
    %v210 = vunpack.c.l.s4 1966171168
    %v211 = vunpack.c.0.s8 %v210
    %v212 = vlaneseq
    %v213 = vshrl.u32 %v212, 7
    %v214 = vsub.s32 %v211, %v213
    %v215 = vrot.slane %v192, %v214
    %v217 = vunpack.c.l.s4 1966171168
    %v218 = vunpack.c.0.s8 %v217
    %v219 = vlaneseq
    %v220 = vshrl.u32 %v219, 7
    %v221 = vsub.s32 %v218, %v220
    %v222 = vrot.slane %v208, %v221
    %v223 = vcombine.high %v215, %v215
    %v224 = vcombine.high %v222, %v222
    %v226 = vunpack.c.l.s4 1966171168
    %v227 = vunpack.c.0.s8 %v226
    %v228 = vlaneseq
    %v229 = vshrl.u32 %v228, 7
    %v230 = vsub.s32 %v227, %v229
    %v231 = vrot.slane %v215, %v230
    %v233 = vunpack.c.l.s4 1966171168
    %v234 = vunpack.c.0.s8 %v233
    %v235 = vlaneseq
    %v236 = vshrl.u32 %v235, 7
    %v237 = vsub.s32 %v234, %v236
    %v238 = vrot.slane %v222, %v237
    %v240 = vunpack.c.l.s4 1966171168
    %v241 = vunpack.c.0.s8 %v240
    %v242 = vlaneseq
    %v243 = vshrl.u32 %v242, 7
    %v244 = vsub.s32 %v241, %v243
    %v245 = vrot.slane %v223, %v244
    %v247 = vunpack.c.l.s4 1966171168
    %v248 = vunpack.c.0.s8 %v247
    %v249 = vlaneseq
    %v250 = vshrl.u32 %v249, 7
    %v251 = vsub.s32 %v248, %v250
    %v252 = vrot.slane %v224, %v251
    %v253 = vcombine.high %v231, %v231
    %v254 = vcombine.high %v238, %v238
    %v255 = vcombine.high %v245, %v245
    %v256 = vcombine.high %v252, %v252
    %v258 = vunpack.c.l.s4 1966171168
    %v259 = vunpack.c.0.s8 %v258
    %v260 = vlaneseq
    %v261 = vshrl.u32 %v260, 7
    %v262 = vsub.s32 %v259, %v261
    %v263 = vrot.slane %v193, %v262
    %v264 = vcombine.high %v263, %v263
    %v266 = vunpack.c.l.s4 1966171168
    %v267 = vunpack.c.0.s8 %v266
    %v268 = vlaneseq
    %v269 = vshrl.u32 %v268, 7
    %v270 = vsub.s32 %v267, %v269
    %v271 = vrot.slane %v263, %v270
    %v273 = vunpack.c.l.s4 1966171168
    %v274 = vunpack.c.0.s8 %v273
    %v275 = vlaneseq
    %v276 = vshrl.u32 %v275, 7
    %v277 = vsub.s32 %v274, %v276
    %v278 = vrot.slane %v264, %v277
    %v279 = vcombine.high %v271, %v271
    %v280 = vcombine.high %v278, %v278
    %v281 = vlaneseq
    %v282 = vshrl.u32 %v281, 7
    %v283 = vsub.s32 0, %v282
    %v284 = vrot.slane %v231, %v283
    %v285 = vlaneseq
    %v286 = vshrl.u32 %v285, 7
    %v287 = vsub.s32 0, %v286
    %v288 = vrot.slane %v245, %v287
    %v289 = vlaneseq
    %v290 = vshrl.u32 %v289, 7
    %v291 = vsub.s32 0, %v290
    %v292 = vrot.slane %v253, %v291
    %v293 = vlaneseq
    %v294 = vshrl.u32 %v293, 7
    %v295 = vsub.s32 0, %v294
    %v296 = vrot.slane %v255, %v295
    %v297 = vlaneseq
    %v298 = vshrl.u32 %v297, 7
    %v299 = vsub.s32 0, %v298
    %v300 = vrot.slane %v238, %v299
    %v301 = vlaneseq
    %v302 = vshrl.u32 %v301, 7
    %v303 = vsub.s32 0, %v302
    %v304 = vrot.slane %v252, %v303
    %v305 = vlaneseq
    %v306 = vshrl.u32 %v305, 7
    %v307 = vsub.s32 0, %v306
    %v308 = vrot.slane %v254, %v307
    %v309 = vlaneseq
    %v310 = vshrl.u32 %v309, 7
    %v311 = vsub.s32 0, %v310
    %v312 = vrot.slane %v256, %v311
    %v313 = vlaneseq
    %v314 = vshrl.u32 %v313, 7
    %v315 = vsub.s32 0, %v314
    %v316 = vrot.slane %v271, %v315
    %v317 = vlaneseq
    %v318 = vshrl.u32 %v317, 7
    %v319 = vsub.s32 0, %v318
    %v320 = vrot.slane %v278, %v319
    %v321 = vlaneseq
    %v322 = vshrl.u32 %v321, 7
    %v323 = vsub.s32 0, %v322
    %v324 = vrot.slane %v279, %v323
    %v325 = vlaneseq
    %v326 = vshrl.u32 %v325, 7
    %v327 = vsub.s32 0, %v326
    %v328 = vrot.slane %v280, %v327
    %v341 = vmul.f32 %v176, %v284
    %v342 = vmul.f32 %v177, %v288
    %v343 = vmul.f32 %v178, %v292
    %v344 = vmul.f32 %v179, %v296
    %v345 = vmul.f32 %v180, %v300
    %v346 = vmul.f32 %v181, %v304
    %v347 = vmul.f32 %v182, %v308
    %v348 = vmul.f32 %v183, %v312
    %v349 = vmul.f32 %v184, %v316
    %v350 = vmul.f32 %v185, %v320
    %v351 = vmul.f32 %v186, %v324
    %v352 = vmul.f32 %v187, %v328
    %vm353 = vcmask 31744
    %v354 = vsel %vm353, %v341, 0.0
    %355 = vadd.xlane.f32.xlu0 %v354
    %v356 = vpop.xlane.xlu0 %355
    %v357 = vsel %vm353, %v342, 0.0
    %358 = vadd.xlane.f32.xlu0 %v357
    %v359 = vpop.xlane.xlu0 %358
    %v360 = vsel %vm353, %v343, 0.0
    %361 = vadd.xlane.f32.xlu0 %v360
    %v362 = vpop.xlane.xlu0 %361
    %v363 = vsel %vm353, %v344, 0.0
    %364 = vadd.xlane.f32.xlu0 %v363
    %v365 = vpop.xlane.xlu0 %364
    %v366 = vsel %vm353, %v345, 0.0
    %367 = vadd.xlane.f32.xlu0 %v366
    %v368 = vpop.xlane.xlu0 %367
    %v369 = vsel %vm353, %v346, 0.0
    %370 = vadd.xlane.f32.xlu0 %v369
    %v371 = vpop.xlane.xlu0 %370
    %v372 = vsel %vm353, %v347, 0.0
    %373 = vadd.xlane.f32.xlu0 %v372
    %v374 = vpop.xlane.xlu0 %373
    %v375 = vsel %vm353, %v348, 0.0
    %376 = vadd.xlane.f32.xlu0 %v375
    %v377 = vpop.xlane.xlu0 %376
    %v378 = vsel %vm353, %v349, 0.0
    %379 = vadd.xlane.f32.xlu0 %v378
    %v380 = vpop.xlane.xlu0 %379
    %v381 = vsel %vm353, %v350, 0.0
    %382 = vadd.xlane.f32.xlu0 %v381
    %v383 = vpop.xlane.xlu0 %382
    %v384 = vsel %vm353, %v351, 0.0
    %385 = vadd.xlane.f32.xlu0 %v384
    %v386 = vpop.xlane.xlu0 %385
    %v387 = vsel %vm353, %v352, 0.0
    %388 = vadd.xlane.f32.xlu0 %v387
    %v389 = vpop.xlane.xlu0 %388
    %v392 = vcombine.high %v189, %v189
    %v394 = vunpack.c.l.s4 1966171168
    %v395 = vunpack.c.0.s8 %v394
    %v396 = vlaneseq
    %v397 = vshrl.u32 %v396, 7
    %v398 = vsub.s32 %v395, %v397
    %v399 = vrot.slane %v189, %v398
    %v401 = vunpack.c.l.s4 1966171168
    %v402 = vunpack.c.0.s8 %v401
    %v403 = vlaneseq
    %v404 = vshrl.u32 %v403, 7
    %v405 = vsub.s32 %v402, %v404
    %v406 = vrot.slane %v392, %v405
    %v407 = vcombine.high %v399, %v399
    %v408 = vcombine.high %v406, %v406
    %v410 = vunpack.c.l.s4 1966171168
    %v411 = vunpack.c.0.s8 %v410
    %v412 = vlaneseq
    %v413 = vshrl.u32 %v412, 7
    %v414 = vsub.s32 %v411, %v413
    %v415 = vrot.slane %v399, %v414
    %v417 = vunpack.c.l.s4 1966171168
    %v418 = vunpack.c.0.s8 %v417
    %v419 = vlaneseq
    %v420 = vshrl.u32 %v419, 7
    %v421 = vsub.s32 %v418, %v420
    %v422 = vrot.slane %v406, %v421
    %v424 = vunpack.c.l.s4 1966171168
    %v425 = vunpack.c.0.s8 %v424
    %v426 = vlaneseq
    %v427 = vshrl.u32 %v426, 7
    %v428 = vsub.s32 %v425, %v427
    %v429 = vrot.slane %v407, %v428
    %v431 = vunpack.c.l.s4 1966171168
    %v432 = vunpack.c.0.s8 %v431
    %v433 = vlaneseq
    %v434 = vshrl.u32 %v433, 7
    %v435 = vsub.s32 %v432, %v434
    %v436 = vrot.slane %v408, %v435
    %v437 = vcombine.high %v415, %v415
    %v438 = vcombine.high %v422, %v422
    %v439 = vcombine.high %v429, %v429
    %v440 = vcombine.high %v436, %v436
    %v442 = vunpack.c.l.s4 1966171168
    %v443 = vunpack.c.0.s8 %v442
    %v444 = vlaneseq
    %v445 = vshrl.u32 %v444, 7
    %v446 = vsub.s32 %v443, %v445
    %v447 = vrot.slane %v190, %v446
    %v448 = vcombine.high %v447, %v447
    %v450 = vunpack.c.l.s4 1966171168
    %v451 = vunpack.c.0.s8 %v450
    %v452 = vlaneseq
    %v453 = vshrl.u32 %v452, 7
    %v454 = vsub.s32 %v451, %v453
    %v455 = vrot.slane %v447, %v454
    %v457 = vunpack.c.l.s4 1966171168
    %v458 = vunpack.c.0.s8 %v457
    %v459 = vlaneseq
    %v460 = vshrl.u32 %v459, 7
    %v461 = vsub.s32 %v458, %v460
    %v462 = vrot.slane %v448, %v461
    %v463 = vcombine.high %v455, %v455
    %v464 = vcombine.high %v462, %v462
    %v465 = vlaneseq
    %v466 = vshrl.u32 %v465, 7
    %v467 = vsub.s32 0, %v466
    %v468 = vrot.slane %v415, %v467
    %v469 = vlaneseq
    %v470 = vshrl.u32 %v469, 7
    %v471 = vsub.s32 0, %v470
    %v472 = vrot.slane %v429, %v471
    %v473 = vlaneseq
    %v474 = vshrl.u32 %v473, 7
    %v475 = vsub.s32 0, %v474
    %v476 = vrot.slane %v437, %v475
    %v477 = vlaneseq
    %v478 = vshrl.u32 %v477, 7
    %v479 = vsub.s32 0, %v478
    %v480 = vrot.slane %v439, %v479
    %v481 = vlaneseq
    %v482 = vshrl.u32 %v481, 7
    %v483 = vsub.s32 0, %v482
    %v484 = vrot.slane %v422, %v483
    %v485 = vlaneseq
    %v486 = vshrl.u32 %v485, 7
    %v487 = vsub.s32 0, %v486
    %v488 = vrot.slane %v436, %v487
    %v489 = vlaneseq
    %v490 = vshrl.u32 %v489, 7
    %v491 = vsub.s32 0, %v490
    %v492 = vrot.slane %v438, %v491
    %v493 = vlaneseq
    %v494 = vshrl.u32 %v493, 7
    %v495 = vsub.s32 0, %v494
    %v496 = vrot.slane %v440, %v495
    %v497 = vlaneseq
    %v498 = vshrl.u32 %v497, 7
    %v499 = vsub.s32 0, %v498
    %v500 = vrot.slane %v455, %v499
    %v501 = vlaneseq
    %v502 = vshrl.u32 %v501, 7
    %v503 = vsub.s32 0, %v502
    %v504 = vrot.slane %v462, %v503
    %v505 = vlaneseq
    %v506 = vshrl.u32 %v505, 7
    %v507 = vsub.s32 0, %v506
    %v508 = vrot.slane %v463, %v507
    %v509 = vlaneseq
    %v510 = vshrl.u32 %v509, 7
    %v511 = vsub.s32 0, %v510
    %v512 = vrot.slane %v464, %v511
    %v525 = vmul.f32 %v176, %v468
    %v526 = vmul.f32 %v177, %v472
    %v527 = vmul.f32 %v178, %v476
    %v528 = vmul.f32 %v179, %v480
    %v529 = vmul.f32 %v180, %v484
    %v530 = vmul.f32 %v181, %v488
    %v531 = vmul.f32 %v182, %v492
    %v532 = vmul.f32 %v183, %v496
    %v533 = vmul.f32 %v184, %v500
    %v534 = vmul.f32 %v185, %v504
    %v535 = vmul.f32 %v186, %v508
    %v536 = vmul.f32 %v187, %v512
    %v537 = vsel %vm353, %v525, 0.0
    %538 = vadd.xlane.f32.xlu0 %v537
    %v539 = vpop.xlane.xlu0 %538
    %v540 = vsel %vm353, %v526, 0.0
    %541 = vadd.xlane.f32.xlu0 %v540
    %v542 = vpop.xlane.xlu0 %541
    %v543 = vsel %vm353, %v527, 0.0
    %544 = vadd.xlane.f32.xlu0 %v543
    %v545 = vpop.xlane.xlu0 %544
    %v546 = vsel %vm353, %v528, 0.0
    %547 = vadd.xlane.f32.xlu0 %v546
    %v548 = vpop.xlane.xlu0 %547
    %v549 = vsel %vm353, %v529, 0.0
    %550 = vadd.xlane.f32.xlu0 %v549
    %v551 = vpop.xlane.xlu0 %550
    %v552 = vsel %vm353, %v530, 0.0
    %553 = vadd.xlane.f32.xlu0 %v552
    %v554 = vpop.xlane.xlu0 %553
    %v555 = vsel %vm353, %v531, 0.0
    %556 = vadd.xlane.f32.xlu0 %v555
    %v557 = vpop.xlane.xlu0 %556
    %v558 = vsel %vm353, %v532, 0.0
    %559 = vadd.xlane.f32.xlu0 %v558
    %v560 = vpop.xlane.xlu0 %559
    %v561 = vsel %vm353, %v533, 0.0
    %562 = vadd.xlane.f32.xlu0 %v561
    %v563 = vpop.xlane.xlu0 %562
    %v564 = vsel %vm353, %v534, 0.0
    %565 = vadd.xlane.f32.xlu0 %v564
    %v566 = vpop.xlane.xlu0 %565
    %v567 = vsel %vm353, %v535, 0.0
    %568 = vadd.xlane.f32.xlu0 %v567
    %v569 = vpop.xlane.xlu0 %568
    %v570 = vsel %vm353, %v536, 0.0
    %571 = vadd.xlane.f32.xlu0 %v570
    %v572 = vpop.xlane.xlu0 %571
    %v585 = vlaneseq
    %v586 = vand.u32 %v585, 127
    %v587 = vlaneseq
    %v588 = vshrl.u32 %v587, 7
    %v589 = vsub.s32 %v586, %v588
    %v590 = vrot.slane %v539, %v589
    %v591 = vlaneseq
    %v592 = vshrl.u32 %v591, 7
    %v593 = vsub.s32 %v586, %v592
    %v594 = vrot.slane %v542, %v593
    %v595 = vlaneseq
    %v596 = vshrl.u32 %v595, 7
    %v597 = vsub.s32 %v586, %v596
    %v598 = vrot.slane %v545, %v597
    %v599 = vlaneseq
    %v600 = vshrl.u32 %v599, 7
    %v601 = vsub.s32 %v586, %v600
    %v602 = vrot.slane %v548, %v601
    %v603 = vlaneseq
    %v604 = vshrl.u32 %v603, 7
    %v605 = vsub.s32 %v586, %v604
    %v606 = vrot.slane %v551, %v605
    %v607 = vlaneseq
    %v608 = vshrl.u32 %v607, 7
    %v609 = vsub.s32 %v586, %v608
    %v610 = vrot.slane %v554, %v609
    %v611 = vlaneseq
    %v612 = vshrl.u32 %v611, 7
    %v613 = vsub.s32 %v586, %v612
    %v614 = vrot.slane %v557, %v613
    %v615 = vlaneseq
    %v616 = vshrl.u32 %v615, 7
    %v617 = vsub.s32 %v586, %v616
    %v618 = vrot.slane %v560, %v617
    %v619 = vlaneseq
    %v620 = vshrl.u32 %v619, 7
    %v621 = vsub.s32 %v586, %v620
    %v622 = vrot.slane %v563, %v621
    %v623 = vlaneseq
    %v624 = vshrl.u32 %v623, 7
    %v625 = vsub.s32 %v586, %v624
    %v626 = vrot.slane %v566, %v625
    %v627 = vlaneseq
    %v628 = vshrl.u32 %v627, 7
    %v629 = vsub.s32 %v586, %v628
    %v630 = vrot.slane %v569, %v629
    %v631 = vlaneseq
    %v632 = vshrl.u32 %v631, 7
    %v633 = vsub.s32 %v586, %v632
    %v634 = vrot.slane %v572, %v633
    %vm635 = vcmask 1042434
    %v636 = vsel %vm635, %v590, %v590
    %vm637 = vcmask 1043459
    %v638 = vsel %vm637, %v590, %v636
    %vm639 = vcmask 1044484
    %v640 = vsel %vm639, %v590, %v638
    %vm641 = vcmask 1045509
    %v642 = vsel %vm641, %v590, %v640
    %vm643 = vcmask 1046534
    %v644 = vsel %vm643, %v590, %v642
    %vm645 = vcmask 1047559
    %v646 = vsel %vm645, %v590, %v644
    %v647 = vsel %vm635, %v594, %v594
    %v648 = vsel %vm637, %v594, %v647
    %v649 = vsel %vm639, %v594, %v648
    %v650 = vsel %vm641, %v594, %v649
    %v651 = vsel %vm643, %v594, %v650
    %v652 = vsel %vm645, %v594, %v651
    %v653 = vsel %vm635, %v598, %v598
    %v654 = vsel %vm637, %v598, %v653
    %v655 = vsel %vm639, %v598, %v654
    %v656 = vsel %vm641, %v598, %v655
    %v657 = vsel %vm643, %v598, %v656
    %v658 = vsel %vm645, %v598, %v657
    %v659 = vsel %vm635, %v602, %v602
    %v660 = vsel %vm637, %v602, %v659
    %v661 = vsel %vm639, %v602, %v660
    %v662 = vsel %vm641, %v602, %v661
    %v663 = vsel %vm643, %v602, %v662
    %v664 = vsel %vm645, %v602, %v663
    %v665 = vsel %vm635, %v606, %v606
    %v666 = vsel %vm637, %v606, %v665
    %v667 = vsel %vm639, %v606, %v666
    %v668 = vsel %vm641, %v606, %v667
    %v669 = vsel %vm643, %v606, %v668
    %v670 = vsel %vm645, %v606, %v669
    %v671 = vsel %vm635, %v610, %v610
    %v672 = vsel %vm637, %v610, %v671
    %v673 = vsel %vm639, %v610, %v672
    %v674 = vsel %vm641, %v610, %v673
    %v675 = vsel %vm643, %v610, %v674
    %v676 = vsel %vm645, %v610, %v675
    %v677 = vsel %vm635, %v614, %v614
    %v678 = vsel %vm637, %v614, %v677
    %v679 = vsel %vm639, %v614, %v678
    %v680 = vsel %vm641, %v614, %v679
    %v681 = vsel %vm643, %v614, %v680
    %v682 = vsel %vm645, %v614, %v681
    %v683 = vsel %vm635, %v618, %v618
    %v684 = vsel %vm637, %v618, %v683
    %v685 = vsel %vm639, %v618, %v684
    %v686 = vsel %vm641, %v618, %v685
    %v687 = vsel %vm643, %v618, %v686
    %v688 = vsel %vm645, %v618, %v687
    %v689 = vsel %vm635, %v622, %v622
    %v690 = vsel %vm637, %v622, %v689
    %v691 = vsel %vm639, %v622, %v690
    %v692 = vsel %vm641, %v622, %v691
    %v693 = vsel %vm643, %v622, %v692
    %v694 = vsel %vm645, %v622, %v693
    %v695 = vsel %vm635, %v626, %v626
    %v696 = vsel %vm637, %v626, %v695
    %v697 = vsel %vm639, %v626, %v696
    %v698 = vsel %vm641, %v626, %v697
    %v699 = vsel %vm643, %v626, %v698
    %v700 = vsel %vm645, %v626, %v699
    %v701 = vsel %vm635, %v630, %v630
    %v702 = vsel %vm637, %v630, %v701
    %v703 = vsel %vm639, %v630, %v702
    %v704 = vsel %vm641, %v630, %v703
    %v705 = vsel %vm643, %v630, %v704
    %v706 = vsel %vm645, %v630, %v705
    %v707 = vsel %vm635, %v634, %v634
    %v708 = vsel %vm637, %v634, %v707
    %v709 = vsel %vm639, %v634, %v708
    %v710 = vsel %vm641, %v634, %v709
    %v711 = vsel %vm643, %v634, %v710
    %v712 = vsel %vm645, %v634, %v711
    %v725 = vadd.f32 %v356, %v646
    %v726 = vadd.f32 %v359, %v652
    %v727 = vadd.f32 %v362, %v658
    %v728 = vadd.f32 %v365, %v664
    %v729 = vadd.f32 %v368, %v670
    %v730 = vadd.f32 %v371, %v676
    %v731 = vadd.f32 %v374, %v682
    %v732 = vadd.f32 %v377, %v688
    %v733 = vadd.f32 %v380, %v694
    %v734 = vadd.f32 %v383, %v700
    %v735 = vadd.f32 %v386, %v706
    %v736 = vadd.f32 %v389, %v712
    %v737 = vadd.f32 %v725, %v194
    %v738 = vadd.f32 %v726, %v195
    %v739 = vadd.f32 %v727, %v196
    %v740 = vadd.f32 %v728, %v197
    %v741 = vadd.f32 %v729, %v198
    %v742 = vadd.f32 %v730, %v199
    %v743 = vadd.f32 %v731, %v200
    %v744 = vadd.f32 %v732, %v201
    %v745 = vadd.f32 %v733, %v202
    %v746 = vadd.f32 %v734, %v203
    %v747 = vadd.f32 %v735, %v204
    %v748 = vadd.f32 %v736, %v205
    %vm749 = vcmp.ge.f32.partialorder %v737, 0.0
    %vm750 = vcmp.ge.f32.partialorder %v738, 0.0
    %vm751 = vcmp.ge.f32.partialorder %v739, 0.0
    %vm752 = vcmp.ge.f32.partialorder %v740, 0.0
    %vm753 = vcmp.ge.f32.partialorder %v741, 0.0
    %vm754 = vcmp.ge.f32.partialorder %v742, 0.0
    %vm755 = vcmp.ge.f32.partialorder %v743, 0.0
    %vm756 = vcmp.ge.f32.partialorder %v744, 0.0
    %vm757 = vcmp.ge.f32.partialorder %v745, 0.0
    %vm758 = vcmp.ge.f32.partialorder %v746, 0.0
    %vm759 = vcmp.ge.f32.partialorder %v747, 0.0
    %vm760 = vcmp.ge.f32.partialorder %v748, 0.0
    %v761 = vmul.f32 %v737, 0.2
    %v762 = vmul.f32 %v738, 0.2
    %v763 = vmul.f32 %v739, 0.2
    %v764 = vmul.f32 %v740, 0.2
    %v765 = vmul.f32 %v741, 0.2
    %v766 = vmul.f32 %v742, 0.2
    %v767 = vmul.f32 %v743, 0.2
    %v768 = vmul.f32 %v744, 0.2
    %v769 = vmul.f32 %v745, 0.2
    %v770 = vmul.f32 %v746, 0.2
    %v771 = vmul.f32 %v747, 0.2
    %v772 = vmul.f32 %v748, 0.2
    %v773 = vsel %vm749, %v737, %v761
    %v774 = vsel %vm750, %v738, %v762
    %v775 = vsel %vm751, %v739, %v763
    %v776 = vsel %vm752, %v740, %v764
    %v777 = vsel %vm753, %v741, %v765
    %v778 = vsel %vm754, %v742, %v766
    %v779 = vsel %vm755, %v743, %v767
    %v780 = vsel %vm756, %v744, %v768
    %v781 = vsel %vm757, %v745, %v769
    %v782 = vsel %vm758, %v746, %v770
    %v783 = vsel %vm759, %v747, %v771
    %v784 = vsel %vm760, %v748, %v772
    %vm785 = vcmask 64512
    %v786 = vsel %vm785, %v773, -inf
    %787 = vmax.xlane.f32.xlu0 %v786
    %v788 = vpop.xlane.xlu0 %787
    %v789 = vsel %vm785, %v774, -inf
    %790 = vmax.xlane.f32.xlu0 %v789
    %v791 = vpop.xlane.xlu0 %790
    %v792 = vsel %vm785, %v775, -inf
    %793 = vmax.xlane.f32.xlu0 %v792
    %v794 = vpop.xlane.xlu0 %793
    %v795 = vsel %vm785, %v776, -inf
    %796 = vmax.xlane.f32.xlu0 %v795
    %v797 = vpop.xlane.xlu0 %796
    %v798 = vsel %vm785, %v777, -inf
    %799 = vmax.xlane.f32.xlu0 %v798
    %v800 = vpop.xlane.xlu0 %799
    %v801 = vsel %vm785, %v778, -inf
    %802 = vmax.xlane.f32.xlu0 %v801
    %v803 = vpop.xlane.xlu0 %802
    %v804 = vsel %vm785, %v779, -inf
    %805 = vmax.xlane.f32.xlu0 %v804
    %v806 = vpop.xlane.xlu0 %805
    %v807 = vsel %vm785, %v780, -inf
    %808 = vmax.xlane.f32.xlu0 %v807
    %v809 = vpop.xlane.xlu0 %808
    %v810 = vsel %vm785, %v781, -inf
    %811 = vmax.xlane.f32.xlu0 %v810
    %v812 = vpop.xlane.xlu0 %811
    %v813 = vsel %vm785, %v782, -inf
    %814 = vmax.xlane.f32.xlu0 %v813
    %v815 = vpop.xlane.xlu0 %814
    %v816 = vsel %vm785, %v783, -inf
    %817 = vmax.xlane.f32.xlu0 %v816
    %v818 = vpop.xlane.xlu0 %817
    %v819 = vsel %vm785, %v784, -inf
    %820 = vmax.xlane.f32.xlu0 %v819
    %v821 = vpop.xlane.xlu0 %820
    %v822 = vsub.f32 %v773, %v788
    %v823 = vsub.f32 %v774, %v791
    %v824 = vsub.f32 %v775, %v794
    %v825 = vsub.f32 %v776, %v797
    %v826 = vsub.f32 %v777, %v800
    %v827 = vsub.f32 %v778, %v803
    %v828 = vsub.f32 %v779, %v806
    %v829 = vsub.f32 %v780, %v809
    %v830 = vsub.f32 %v781, %v812
    %v831 = vsub.f32 %v782, %v815
    %v832 = vsub.f32 %v783, %v818
    %v833 = vsub.f32 %v784, %v821
    %v834 = vmul.f32 %v822, 1.442695
    %v835 = vpow.pop %v834
    %v836 = vmul.f32 %v823, 1.442695
    %v837 = vpow.pop %v836
    %v838 = vmul.f32 %v824, 1.442695
    %v839 = vpow.pop %v838
    %v840 = vmul.f32 %v825, 1.442695
    %v841 = vpow.pop %v840
    %v842 = vmul.f32 %v826, 1.442695
    %v843 = vpow.pop %v842
    %v844 = vmul.f32 %v827, 1.442695
    %v845 = vpow.pop %v844
    %v846 = vmul.f32 %v828, 1.442695
    %v847 = vpow.pop %v846
    %v848 = vmul.f32 %v829, 1.442695
    %v849 = vpow.pop %v848
    %v850 = vmul.f32 %v830, 1.442695
    %v851 = vpow.pop %v850
    %v852 = vmul.f32 %v831, 1.442695
    %v853 = vpow.pop %v852
    %v854 = vmul.f32 %v832, 1.442695
    %v855 = vpow.pop %v854
    %v856 = vmul.f32 %v833, 1.442695
    %v857 = vpow.pop %v856
    %v858 = vsel %vm785, %v835, 0.0
    %859 = vadd.xlane.f32.xlu0 %v858
    %v860 = vpop.xlane.xlu0 %859
    %v861 = vsel %vm785, %v837, 0.0
    %862 = vadd.xlane.f32.xlu0 %v861
    %v863 = vpop.xlane.xlu0 %862
    %v864 = vsel %vm785, %v839, 0.0
    %865 = vadd.xlane.f32.xlu0 %v864
    %v866 = vpop.xlane.xlu0 %865
    %v867 = vsel %vm785, %v841, 0.0
    %868 = vadd.xlane.f32.xlu0 %v867
    %v869 = vpop.xlane.xlu0 %868
    %v870 = vsel %vm785, %v843, 0.0
    %871 = vadd.xlane.f32.xlu0 %v870
    %v872 = vpop.xlane.xlu0 %871
    %v873 = vsel %vm785, %v845, 0.0
    %874 = vadd.xlane.f32.xlu0 %v873
    %v875 = vpop.xlane.xlu0 %874
    %v876 = vsel %vm785, %v847, 0.0
    %877 = vadd.xlane.f32.xlu0 %v876
    %v878 = vpop.xlane.xlu0 %877
    %v879 = vsel %vm785, %v849, 0.0
    %880 = vadd.xlane.f32.xlu0 %v879
    %v881 = vpop.xlane.xlu0 %880
    %v882 = vsel %vm785, %v851, 0.0
    %883 = vadd.xlane.f32.xlu0 %v882
    %v884 = vpop.xlane.xlu0 %883
    %v885 = vsel %vm785, %v853, 0.0
    %886 = vadd.xlane.f32.xlu0 %v885
    %v887 = vpop.xlane.xlu0 %886
    %v888 = vsel %vm785, %v855, 0.0
    %889 = vadd.xlane.f32.xlu0 %v888
    %v890 = vpop.xlane.xlu0 %889
    %v891 = vsel %vm785, %v857, 0.0
    %892 = vadd.xlane.f32.xlu0 %v891
    %v893 = vpop.xlane.xlu0 %892
    %v894 = vrcp.pop %v860
    %v895 = vrcp.pop %v863
    %v896 = vrcp.pop %v866
    %v897 = vrcp.pop %v869
    %v898 = vrcp.pop %v872
    %v899 = vrcp.pop %v875
    %v900 = vrcp.pop %v878
    %v901 = vrcp.pop %v881
    %v902 = vrcp.pop %v884
    %v903 = vrcp.pop %v887
    %v904 = vrcp.pop %v890
    %v905 = vrcp.pop %v893
    %v906 = vmul.f32 %v835, %v894
    %v907 = vmul.f32 %v837, %v895
    %v908 = vmul.f32 %v839, %v896
    %v909 = vmul.f32 %v841, %v897
    %v910 = vmul.f32 %v843, %v898
    %v911 = vmul.f32 %v845, %v899
    %v912 = vmul.f32 %v847, %v900
    %v913 = vmul.f32 %v849, %v901
    %v914 = vmul.f32 %v851, %v902
    %v915 = vmul.f32 %v853, %v903
    %v916 = vmul.f32 %v855, %v904
    %v917 = vmul.f32 %v857, %v905
    %v919 = vsel %vm785, %v906, 0
    %921 = vmatprep.subr.mxu0 0.0
    %922 = vmatpush1.msra.mxu0 %v176
    %923 = vmatprep.subr.mxu0 0.0
    %924 = vmatpush1.msra.mxu0 0.0
    %925 = vmatprep.subr.mxu0 0.0
    %926 = vmatpush1.msra.mxu0 0.0
    %927 = vmatprep.subr.mxu0 0.0
    %928 = vmatpush1.msra.mxu0 0.0
    %929 = vmatprep.subr.mxu0 0.0
    %930 = vmatpush1.msra.mxu0 0.0
    %931 = vmatprep.subr.mxu0 0.0
    %932 = vmatpush1.msra.mxu0 0.0
    %933 = vmatprep.subr.mxu0 0.0
    %934 = vmatpush1.msra.mxu0 0.0
    %935 = vmatprep.subr.mxu0 0.0
    %936 = vmatpush1.msra.mxu0 0.0
    %937 = vmatprep.subr.mxu0 0.0
    %938 = vmatpush1.msra.mxu0 0.0
    %939 = vmatprep.subr.mxu0 0.0
    %940 = vmatpush1.msra.mxu0 0.0
    %941 = vmatprep.subr.mxu0 0.0
    %942 = vmatpush1.msra.mxu0 0.0
    %943 = vmatprep.subr.mxu0 0.0
    %944 = vmatpush1.msra.mxu0 0.0
    %945 = vmatprep.subr.mxu0 0.0
    %946 = vmatpush1.msra.mxu0 0.0
    %947 = vmatprep.subr.mxu0 0.0
    %948 = vmatpush1.msra.mxu0 0.0
    %949 = vmatprep.subr.mxu0 0.0
    %950 = vmatpush1.msra.mxu0 0.0
    %951 = vmatprep.subr.mxu0 0.0
    %952 = vmatpush1.msra.mxu0 0.0
    %953 = vmatprep.subr.mxu0 0.0
    %954 = vmatpush1.msra.mxu0 0.0
    %955 = vmatprep.subr.mxu0 0.0
    %956 = vmatpush1.msra.mxu0 0.0
    %957 = vmatprep.subr.mxu0 0.0
    %958 = vmatpush1.msra.mxu0 0.0
    %959 = vmatprep.subr.mxu0 0.0
    %960 = vmatpush1.msra.mxu0 0.0
    %961 = vmatprep.subr.mxu0 0.0
    %962 = vmatpush1.msra.mxu0 0.0
    %963 = vmatprep.subr.mxu0 0.0
    %964 = vmatpush1.msra.mxu0 0.0
    %965 = vmatprep.subr.mxu0 0.0
    %966 = vmatpush1.msra.mxu0 0.0
    %967 = vmatprep.subr.mxu0 0.0
    %968 = vmatpush1.msra.mxu0 0.0
    %969 = vmatprep.subr.mxu0 0.0
    %970 = vmatpush1.msra.mxu0 0.0
    %971 = vmatprep.subr.mxu0 0.0
    %972 = vmatpush1.msra.mxu0 0.0
    %973 = vmatprep.subr.mxu0 0.0
    %974 = vmatpush1.msra.mxu0 0.0
    %975 = vmatprep.subr.mxu0 0.0
    %976 = vmatpush1.msra.mxu0 0.0
    %977 = vmatprep.subr.mxu0 0.0
    %978 = vmatpush1.msra.mxu0 0.0
    %979 = vmatprep.subr.mxu0 0.0
    %980 = vmatpush1.msra.mxu0 0.0
    %981 = vmatprep.subr.mxu0 0.0
    %982 = vmatpush1.msra.mxu0 0.0
    %983 = vmatprep.subr.mxu0 0.0
    %984 = vmatpush1.msra.mxu0 0.0
    %985 = vmatprep.mubr.f32.mxu0 0.0
    %986 = vmatmul.mubr.f32.gmra.mrb[0].mxu0 %v919
    %v987 = vpop.f32.mrb[0].mxu0
    %v988 = vadd.f32 0.0, %v987
    %v989 = vpop.f32.mrb[0].mxu0
    %990 = vdwg.mxu0
    %v992 = vsel %vm785, %v907, 0
    %994 = vmatprep.subr.mxu0 0.0
    %995 = vmatpush1.msra.mxu0 %v177
    %996 = vmatprep.subr.mxu0 0.0
    %997 = vmatpush1.msra.mxu0 0.0
    %998 = vmatprep.subr.mxu0 0.0
    %999 = vmatpush1.msra.mxu0 0.0
    %1000 = vmatprep.subr.mxu0 0.0
    %1001 = vmatpush1.msra.mxu0 0.0
    %1002 = vmatprep.subr.mxu0 0.0
    %1003 = vmatpush1.msra.mxu0 0.0
    %1004 = vmatprep.subr.mxu0 0.0
    %1005 = vmatpush1.msra.mxu0 0.0
    %1006 = vmatprep.subr.mxu0 0.0
    %1007 = vmatpush1.msra.mxu0 0.0
    %1008 = vmatprep.subr.mxu0 0.0
    %1009 = vmatpush1.msra.mxu0 0.0
    %1010 = vmatprep.subr.mxu0 0.0
    %1011 = vmatpush1.msra.mxu0 0.0
    %1012 = vmatprep.subr.mxu0 0.0
    %1013 = vmatpush1.msra.mxu0 0.0
    %1014 = vmatprep.subr.mxu0 0.0
    %1015 = vmatpush1.msra.mxu0 0.0
    %1016 = vmatprep.subr.mxu0 0.0
    %1017 = vmatpush1.msra.mxu0 0.0
    %1018 = vmatprep.subr.mxu0 0.0
    %1019 = vmatpush1.msra.mxu0 0.0
    %1020 = vmatprep.subr.mxu0 0.0
    %1021 = vmatpush1.msra.mxu0 0.0
    %1022 = vmatprep.subr.mxu0 0.0
    %1023 = vmatpush1.msra.mxu0 0.0
    %1024 = vmatprep.subr.mxu0 0.0
    %1025 = vmatpush1.msra.mxu0 0.0
    %1026 = vmatprep.subr.mxu0 0.0
    %1027 = vmatpush1.msra.mxu0 0.0
    %1028 = vmatprep.subr.mxu0 0.0
    %1029 = vmatpush1.msra.mxu0 0.0
    %1030 = vmatprep.subr.mxu0 0.0
    %1031 = vmatpush1.msra.mxu0 0.0
    %1032 = vmatprep.subr.mxu0 0.0
    %1033 = vmatpush1.msra.mxu0 0.0
    %1034 = vmatprep.subr.mxu0 0.0
    %1035 = vmatpush1.msra.mxu0 0.0
    %1036 = vmatprep.subr.mxu0 0.0
    %1037 = vmatpush1.msra.mxu0 0.0
    %1038 = vmatprep.subr.mxu0 0.0
    %1039 = vmatpush1.msra.mxu0 0.0
    %1040 = vmatprep.subr.mxu0 0.0
    %1041 = vmatpush1.msra.mxu0 0.0
    %1042 = vmatprep.subr.mxu0 0.0
    %1043 = vmatpush1.msra.mxu0 0.0
    %1044 = vmatprep.subr.mxu0 0.0
    %1045 = vmatpush1.msra.mxu0 0.0
    %1046 = vmatprep.subr.mxu0 0.0
    %1047 = vmatpush1.msra.mxu0 0.0
    %1048 = vmatprep.subr.mxu0 0.0
    %1049 = vmatpush1.msra.mxu0 0.0
    %1050 = vmatprep.subr.mxu0 0.0
    %1051 = vmatpush1.msra.mxu0 0.0
    %1052 = vmatprep.subr.mxu0 0.0
    %1053 = vmatpush1.msra.mxu0 0.0
    %1054 = vmatprep.subr.mxu0 0.0
    %1055 = vmatpush1.msra.mxu0 0.0
    %1056 = vmatprep.subr.mxu0 0.0
    %1057 = vmatpush1.msra.mxu0 0.0
    %1058 = vmatprep.mubr.f32.mxu0 0.0
    %1059 = vmatmul.mubr.f32.gmra.mrb[0].mxu0 %v992
    %v1060 = vpop.f32.mrb[0].mxu0
    %v1061 = vadd.f32 0.0, %v1060
    %v1062 = vpop.f32.mrb[0].mxu0
    %1063 = vdwg.mxu0
    %v1065 = vsel %vm785, %v908, 0
    %1067 = vmatprep.subr.mxu0 0.0
    %1068 = vmatpush1.msra.mxu0 %v178
    %1069 = vmatprep.subr.mxu0 0.0
    %1070 = vmatpush1.msra.mxu0 0.0
    %1071 = vmatprep.subr.mxu0 0.0
    %1072 = vmatpush1.msra.mxu0 0.0
    %1073 = vmatprep.subr.mxu0 0.0
    %1074 = vmatpush1.msra.mxu0 0.0
    %1075 = vmatprep.subr.mxu0 0.0
    %1076 = vmatpush1.msra.mxu0 0.0
    %1077 = vmatprep.subr.mxu0 0.0
    %1078 = vmatpush1.msra.mxu0 0.0
    %1079 = vmatprep.subr.mxu0 0.0
    %1080 = vmatpush1.msra.mxu0 0.0
    %1081 = vmatprep.subr.mxu0 0.0
    %1082 = vmatpush1.msra.mxu0 0.0
    %1083 = vmatprep.subr.mxu0 0.0
    %1084 = vmatpush1.msra.mxu0 0.0
    %1085 = vmatprep.subr.mxu0 0.0
    %1086 = vmatpush1.msra.mxu0 0.0
    %1087 = vmatprep.subr.mxu0 0.0
    %1088 = vmatpush1.msra.mxu0 0.0
    %1089 = vmatprep.subr.mxu0 0.0
    %1090 = vmatpush1.msra.mxu0 0.0
    %1091 = vmatprep.subr.mxu0 0.0
    %1092 = vmatpush1.msra.mxu0 0.0
    %1093 = vmatprep.subr.mxu0 0.0
    %1094 = vmatpush1.msra.mxu0 0.0
    %1095 = vmatprep.subr.mxu0 0.0
    %1096 = vmatpush1.msra.mxu0 0.0
    %1097 = vmatprep.subr.mxu0 0.0
    %1098 = vmatpush1.msra.mxu0 0.0
    %1099 = vmatprep.subr.mxu0 0.0
    %1100 = vmatpush1.msra.mxu0 0.0
    %1101 = vmatprep.subr.mxu0 0.0
    %1102 = vmatpush1.msra.mxu0 0.0
    %1103 = vmatprep.subr.mxu0 0.0
    %1104 = vmatpush1.msra.mxu0 0.0
    %1105 = vmatprep.subr.mxu0 0.0
    %1106 = vmatpush1.msra.mxu0 0.0
    %1107 = vmatprep.subr.mxu0 0.0
    %1108 = vmatpush1.msra.mxu0 0.0
    %1109 = vmatprep.subr.mxu0 0.0
    %1110 = vmatpush1.msra.mxu0 0.0
    %1111 = vmatprep.subr.mxu0 0.0
    %1112 = vmatpush1.msra.mxu0 0.0
    %1113 = vmatprep.subr.mxu0 0.0
    %1114 = vmatpush1.msra.mxu0 0.0
    %1115 = vmatprep.subr.mxu0 0.0
    %1116 = vmatpush1.msra.mxu0 0.0
    %1117 = vmatprep.subr.mxu0 0.0
    %1118 = vmatpush1.msra.mxu0 0.0
    %1119 = vmatprep.subr.mxu0 0.0
    %1120 = vmatpush1.msra.mxu0 0.0
    %1121 = vmatprep.subr.mxu0 0.0
    %1122 = vmatpush1.msra.mxu0 0.0
    %1123 = vmatprep.subr.mxu0 0.0
    %1124 = vmatpush1.msra.mxu0 0.0
    %1125 = vmatprep.subr.mxu0 0.0
    %1126 = vmatpush1.msra.mxu0 0.0
    %1127 = vmatprep.subr.mxu0 0.0
    %1128 = vmatpush1.msra.mxu0 0.0
    %1129 = vmatprep.subr.mxu0 0.0
    %1130 = vmatpush1.msra.mxu0 0.0
    %1131 = vmatprep.mubr.f32.mxu0 0.0
    %1132 = vmatmul.mubr.f32.gmra.mrb[0].mxu0 %v1065
    %v1133 = vpop.f32.mrb[0].mxu0
    %v1134 = vadd.f32 0.0, %v1133
    %v1135 = vpop.f32.mrb[0].mxu0
    %1136 = vdwg.mxu0
    %v1138 = vsel %vm785, %v909, 0
    %1140 = vmatprep.subr.mxu0 0.0
    %1141 = vmatpush1.msra.mxu0 %v179
    %1142 = vmatprep.subr.mxu0 0.0
    %1143 = vmatpush1.msra.mxu0 0.0
    %1144 = vmatprep.subr.mxu0 0.0
    %1145 = vmatpush1.msra.mxu0 0.0
    %1146 = vmatprep.subr.mxu0 0.0
    %1147 = vmatpush1.msra.mxu0 0.0
    %1148 = vmatprep.subr.mxu0 0.0
    %1149 = vmatpush1.msra.mxu0 0.0
    %1150 = vmatprep.subr.mxu0 0.0
    %1151 = vmatpush1.msra.mxu0 0.0
    %1152 = vmatprep.subr.mxu0 0.0
    %1153 = vmatpush1.msra.mxu0 0.0
    %1154 = vmatprep.subr.mxu0 0.0
    %1155 = vmatpush1.msra.mxu0 0.0
    %1156 = vmatprep.subr.mxu0 0.0
    %1157 = vmatpush1.msra.mxu0 0.0
    %1158 = vmatprep.subr.mxu0 0.0
    %1159 = vmatpush1.msra.mxu0 0.0
    %1160 = vmatprep.subr.mxu0 0.0
    %1161 = vmatpush1.msra.mxu0 0.0
    %1162 = vmatprep.subr.mxu0 0.0
    %1163 = vmatpush1.msra.mxu0 0.0
    %1164 = vmatprep.subr.mxu0 0.0
    %1165 = vmatpush1.msra.mxu0 0.0
    %1166 = vmatprep.subr.mxu0 0.0
    %1167 = vmatpush1.msra.mxu0 0.0
    %1168 = vmatprep.subr.mxu0 0.0
    %1169 = vmatpush1.msra.mxu0 0.0
    %1170 = vmatprep.subr.mxu0 0.0
    %1171 = vmatpush1.msra.mxu0 0.0
    %1172 = vmatprep.subr.mxu0 0.0
    %1173 = vmatpush1.msra.mxu0 0.0
    %1174 = vmatprep.subr.mxu0 0.0
    %1175 = vmatpush1.msra.mxu0 0.0
    %1176 = vmatprep.subr.mxu0 0.0
    %1177 = vmatpush1.msra.mxu0 0.0
    %1178 = vmatprep.subr.mxu0 0.0
    %1179 = vmatpush1.msra.mxu0 0.0
    %1180 = vmatprep.subr.mxu0 0.0
    %1181 = vmatpush1.msra.mxu0 0.0
    %1182 = vmatprep.subr.mxu0 0.0
    %1183 = vmatpush1.msra.mxu0 0.0
    %1184 = vmatprep.subr.mxu0 0.0
    %1185 = vmatpush1.msra.mxu0 0.0
    %1186 = vmatprep.subr.mxu0 0.0
    %1187 = vmatpush1.msra.mxu0 0.0
    %1188 = vmatprep.subr.mxu0 0.0
    %1189 = vmatpush1.msra.mxu0 0.0
    %1190 = vmatprep.subr.mxu0 0.0
    %1191 = vmatpush1.msra.mxu0 0.0
    %1192 = vmatprep.subr.mxu0 0.0
    %1193 = vmatpush1.msra.mxu0 0.0
    %1194 = vmatprep.subr.mxu0 0.0
    %1195 = vmatpush1.msra.mxu0 0.0
    %1196 = vmatprep.subr.mxu0 0.0
    %1197 = vmatpush1.msra.mxu0 0.0
    %1198 = vmatprep.subr.mxu0 0.0
    %1199 = vmatpush1.msra.mxu0 0.0
    %1200 = vmatprep.subr.mxu0 0.0
    %1201 = vmatpush1.msra.mxu0 0.0
    %1202 = vmatprep.subr.mxu0 0.0
    %1203 = vmatpush1.msra.mxu0 0.0
    %1204 = vmatprep.mubr.f32.mxu0 0.0
    %1205 = vmatmul.mubr.f32.gmra.mrb[0].mxu0 %v1138
    %v1206 = vpop.f32.mrb[0].mxu0
    %v1207 = vadd.f32 0.0, %v1206
    %v1208 = vpop.f32.mrb[0].mxu0
    %1209 = vdwg.mxu0
    %v1211 = vsel %vm785, %v910, 0
    %1213 = vmatprep.subr.mxu0 0.0
    %1214 = vmatpush1.msra.mxu0 %v180
    %1215 = vmatprep.subr.mxu0 0.0
    %1216 = vmatpush1.msra.mxu0 0.0
    %1217 = vmatprep.subr.mxu0 0.0
    %1218 = vmatpush1.msra.mxu0 0.0
    %1219 = vmatprep.subr.mxu0 0.0
    %1220 = vmatpush1.msra.mxu0 0.0
    %1221 = vmatprep.subr.mxu0 0.0
    %1222 = vmatpush1.msra.mxu0 0.0
    %1223 = vmatprep.subr.mxu0 0.0
    %1224 = vmatpush1.msra.mxu0 0.0
    %1225 = vmatprep.subr.mxu0 0.0
    %1226 = vmatpush1.msra.mxu0 0.0
    %1227 = vmatprep.subr.mxu0 0.0
    %1228 = vmatpush1.msra.mxu0 0.0
    %1229 = vmatprep.subr.mxu0 0.0
    %1230 = vmatpush1.msra.mxu0 0.0
    %1231 = vmatprep.subr.mxu0 0.0
    %1232 = vmatpush1.msra.mxu0 0.0
    %1233 = vmatprep.subr.mxu0 0.0
    %1234 = vmatpush1.msra.mxu0 0.0
    %1235 = vmatprep.subr.mxu0 0.0
    %1236 = vmatpush1.msra.mxu0 0.0
    %1237 = vmatprep.subr.mxu0 0.0
    %1238 = vmatpush1.msra.mxu0 0.0
    %1239 = vmatprep.subr.mxu0 0.0
    %1240 = vmatpush1.msra.mxu0 0.0
    %1241 = vmatprep.subr.mxu0 0.0
    %1242 = vmatpush1.msra.mxu0 0.0
    %1243 = vmatprep.subr.mxu0 0.0
    %1244 = vmatpush1.msra.mxu0 0.0
    %1245 = vmatprep.subr.mxu0 0.0
    %1246 = vmatpush1.msra.mxu0 0.0
    %1247 = vmatprep.subr.mxu0 0.0
    %1248 = vmatpush1.msra.mxu0 0.0
    %1249 = vmatprep.subr.mxu0 0.0
    %1250 = vmatpush1.msra.mxu0 0.0
    %1251 = vmatprep.subr.mxu0 0.0
    %1252 = vmatpush1.msra.mxu0 0.0
    %1253 = vmatprep.subr.mxu0 0.0
    %1254 = vmatpush1.msra.mxu0 0.0
    %1255 = vmatprep.subr.mxu0 0.0
    %1256 = vmatpush1.msra.mxu0 0.0
    %1257 = vmatprep.subr.mxu0 0.0
    %1258 = vmatpush1.msra.mxu0 0.0
    %1259 = vmatprep.subr.mxu0 0.0
    %1260 = vmatpush1.msra.mxu0 0.0
    %1261 = vmatprep.subr.mxu0 0.0
    %1262 = vmatpush1.msra.mxu0 0.0
    %1263 = vmatprep.subr.mxu0 0.0
    %1264 = vmatpush1.msra.mxu0 0.0
    %1265 = vmatprep.subr.mxu0 0.0
    %1266 = vmatpush1.msra.mxu0 0.0
    %1267 = vmatprep.subr.mxu0 0.0
    %1268 = vmatpush1.msra.mxu0 0.0
    %1269 = vmatprep.subr.mxu0 0.0
    %1270 = vmatpush1.msra.mxu0 0.0
    %1271 = vmatprep.subr.mxu0 0.0
    %1272 = vmatpush1.msra.mxu0 0.0
    %1273 = vmatprep.subr.mxu0 0.0
    %1274 = vmatpush1.msra.mxu0 0.0
    %1275 = vmatprep.subr.mxu0 0.0
    %1276 = vmatpush1.msra.mxu0 0.0
    %1277 = vmatprep.mubr.f32.mxu0 0.0
    %1278 = vmatmul.mubr.f32.gmra.mrb[0].mxu0 %v1211
    %v1279 = vpop.f32.mrb[0].mxu0
    %v1280 = vadd.f32 0.0, %v1279
    %v1281 = vpop.f32.mrb[0].mxu0
    %1282 = vdwg.mxu0
    %v1284 = vsel %vm785, %v911, 0
    %1286 = vmatprep.subr.mxu0 0.0
    %1287 = vmatpush1.msra.mxu0 %v181
    %1288 = vmatprep.subr.mxu0 0.0
    %1289 = vmatpush1.msra.mxu0 0.0
    %1290 = vmatprep.subr.mxu0 0.0
    %1291 = vmatpush1.msra.mxu0 0.0
    %1292 = vmatprep.subr.mxu0 0.0
    %1293 = vmatpush1.msra.mxu0 0.0
    %1294 = vmatprep.subr.mxu0 0.0
    %1295 = vmatpush1.msra.mxu0 0.0
    %1296 = vmatprep.subr.mxu0 0.0
    %1297 = vmatpush1.msra.mxu0 0.0
    %1298 = vmatprep.subr.mxu0 0.0
    %1299 = vmatpush1.msra.mxu0 0.0
    %1300 = vmatprep.subr.mxu0 0.0
    %1301 = vmatpush1.msra.mxu0 0.0
    %1302 = vmatprep.subr.mxu0 0.0
    %1303 = vmatpush1.msra.mxu0 0.0
    %1304 = vmatprep.subr.mxu0 0.0
    %1305 = vmatpush1.msra.mxu0 0.0
    %1306 = vmatprep.subr.mxu0 0.0
    %1307 = vmatpush1.msra.mxu0 0.0
    %1308 = vmatprep.subr.mxu0 0.0
    %1309 = vmatpush1.msra.mxu0 0.0
    %1310 = vmatprep.subr.mxu0 0.0
    %1311 = vmatpush1.msra.mxu0 0.0
    %1312 = vmatprep.subr.mxu0 0.0
    %1313 = vmatpush1.msra.mxu0 0.0
    %1314 = vmatprep.subr.mxu0 0.0
    %1315 = vmatpush1.msra.mxu0 0.0
    %1316 = vmatprep.subr.mxu0 0.0
    %1317 = vmatpush1.msra.mxu0 0.0
    %1318 = vmatprep.subr.mxu0 0.0
    %1319 = vmatpush1.msra.mxu0 0.0
    %1320 = vmatprep.subr.mxu0 0.0
    %1321 = vmatpush1.msra.mxu0 0.0
    %1322 = vmatprep.subr.mxu0 0.0
    %1323 = vmatpush1.msra.mxu0 0.0
    %1324 = vmatprep.subr.mxu0 0.0
    %1325 = vmatpush1.msra.mxu0 0.0
    %1326 = vmatprep.subr.mxu0 0.0
    %1327 = vmatpush1.msra.mxu0 0.0
    %1328 = vmatprep.subr.mxu0 0.0
    %1329 = vmatpush1.msra.mxu0 0.0
    %1330 = vmatprep.subr.mxu0 0.0
    %1331 = vmatpush1.msra.mxu0 0.0
    %1332 = vmatprep.subr.mxu0 0.0
    %1333 = vmatpush1.msra.mxu0 0.0
    %1334 = vmatprep.subr.mxu0 0.0
    %1335 = vmatpush1.msra.mxu0 0.0
    %1336 = vmatprep.subr.mxu0 0.0
    %1337 = vmatpush1.msra.mxu0 0.0
    %1338 = vmatprep.subr.mxu0 0.0
    %1339 = vmatpush1.msra.mxu0 0.0
    %1340 = vmatprep.subr.mxu0 0.0
    %1341 = vmatpush1.msra.mxu0 0.0
    %1342 = vmatprep.subr.mxu0 0.0
    %1343 = vmatpush1.msra.mxu0 0.0
    %1344 = vmatprep.subr.mxu0 0.0
    %1345 = vmatpush1.msra.mxu0 0.0
    %1346 = vmatprep.subr.mxu0 0.0
    %1347 = vmatpush1.msra.mxu0 0.0
    %1348 = vmatprep.subr.mxu0 0.0
    %1349 = vmatpush1.msra.mxu0 0.0
    %1350 = vmatprep.mubr.f32.mxu0 0.0
    %1351 = vmatmul.mubr.f32.gmra.mrb[0].mxu0 %v1284
    %v1352 = vpop.f32.mrb[0].mxu0
    %v1353 = vadd.f32 0.0, %v1352
    %v1354 = vpop.f32.mrb[0].mxu0
    %1355 = vdwg.mxu0
    %v1357 = vsel %vm785, %v912, 0
    %1359 = vmatprep.subr.mxu0 0.0
    %1360 = vmatpush1.msra.mxu0 %v182
    %1361 = vmatprep.subr.mxu0 0.0
    %1362 = vmatpush1.msra.mxu0 0.0
    %1363 = vmatprep.subr.mxu0 0.0
    %1364 = vmatpush1.msra.mxu0 0.0
    %1365 = vmatprep.subr.mxu0 0.0
    %1366 = vmatpush1.msra.mxu0 0.0
    %1367 = vmatprep.subr.mxu0 0.0
    %1368 = vmatpush1.msra.mxu0 0.0
    %1369 = vmatprep.subr.mxu0 0.0
    %1370 = vmatpush1.msra.mxu0 0.0
    %1371 = vmatprep.subr.mxu0 0.0
    %1372 = vmatpush1.msra.mxu0 0.0
    %1373 = vmatprep.subr.mxu0 0.0
    %1374 = vmatpush1.msra.mxu0 0.0
    %1375 = vmatprep.subr.mxu0 0.0
    %1376 = vmatpush1.msra.mxu0 0.0
    %1377 = vmatprep.subr.mxu0 0.0
    %1378 = vmatpush1.msra.mxu0 0.0
    %1379 = vmatprep.subr.mxu0 0.0
    %1380 = vmatpush1.msra.mxu0 0.0
    %1381 = vmatprep.subr.mxu0 0.0
    %1382 = vmatpush1.msra.mxu0 0.0
    %1383 = vmatprep.subr.mxu0 0.0
    %1384 = vmatpush1.msra.mxu0 0.0
    %1385 = vmatprep.subr.mxu0 0.0
    %1386 = vmatpush1.msra.mxu0 0.0
    %1387 = vmatprep.subr.mxu0 0.0
    %1388 = vmatpush1.msra.mxu0 0.0
    %1389 = vmatprep.subr.mxu0 0.0
    %1390 = vmatpush1.msra.mxu0 0.0
    %1391 = vmatprep.subr.mxu0 0.0
    %1392 = vmatpush1.msra.mxu0 0.0
    %1393 = vmatprep.subr.mxu0 0.0
    %1394 = vmatpush1.msra.mxu0 0.0
    %1395 = vmatprep.subr.mxu0 0.0
    %1396 = vmatpush1.msra.mxu0 0.0
    %1397 = vmatprep.subr.mxu0 0.0
    %1398 = vmatpush1.msra.mxu0 0.0
    %1399 = vmatprep.subr.mxu0 0.0
    %1400 = vmatpush1.msra.mxu0 0.0
    %1401 = vmatprep.subr.mxu0 0.0
    %1402 = vmatpush1.msra.mxu0 0.0
    %1403 = vmatprep.subr.mxu0 0.0
    %1404 = vmatpush1.msra.mxu0 0.0
    %1405 = vmatprep.subr.mxu0 0.0
    %1406 = vmatpush1.msra.mxu0 0.0
    %1407 = vmatprep.subr.mxu0 0.0
    %1408 = vmatpush1.msra.mxu0 0.0
    %1409 = vmatprep.subr.mxu0 0.0
    %1410 = vmatpush1.msra.mxu0 0.0
    %1411 = vmatprep.subr.mxu0 0.0
    %1412 = vmatpush1.msra.mxu0 0.0
    %1413 = vmatprep.subr.mxu0 0.0
    %1414 = vmatpush1.msra.mxu0 0.0
    %1415 = vmatprep.subr.mxu0 0.0
    %1416 = vmatpush1.msra.mxu0 0.0
    %1417 = vmatprep.subr.mxu0 0.0
    %1418 = vmatpush1.msra.mxu0 0.0
    %1419 = vmatprep.subr.mxu0 0.0
    %1420 = vmatpush1.msra.mxu0 0.0
    %1421 = vmatprep.subr.mxu0 0.0
    %1422 = vmatpush1.msra.mxu0 0.0
    %1423 = vmatprep.mubr.f32.mxu0 0.0
    %1424 = vmatmul.mubr.f32.gmra.mrb[0].mxu0 %v1357
    %v1425 = vpop.f32.mrb[0].mxu0
    %v1426 = vadd.f32 0.0, %v1425
    %v1427 = vpop.f32.mrb[0].mxu0
    %1428 = vdwg.mxu0
    %v1430 = vsel %vm785, %v913, 0
    %1432 = vmatprep.subr.mxu0 0.0
    %1433 = vmatpush1.msra.mxu0 %v183
    %1434 = vmatprep.subr.mxu0 0.0
    %1435 = vmatpush1.msra.mxu0 0.0
    %1436 = vmatprep.subr.mxu0 0.0
    %1437 = vmatpush1.msra.mxu0 0.0
    %1438 = vmatprep.subr.mxu0 0.0
    %1439 = vmatpush1.msra.mxu0 0.0
    %1440 = vmatprep.subr.mxu0 0.0
    %1441 = vmatpush1.msra.mxu0 0.0
    %1442 = vmatprep.subr.mxu0 0.0
    %1443 = vmatpush1.msra.mxu0 0.0
    %1444 = vmatprep.subr.mxu0 0.0
    %1445 = vmatpush1.msra.mxu0 0.0
    %1446 = vmatprep.subr.mxu0 0.0
    %1447 = vmatpush1.msra.mxu0 0.0
    %1448 = vmatprep.subr.mxu0 0.0
    %1449 = vmatpush1.msra.mxu0 0.0
    %1450 = vmatprep.subr.mxu0 0.0
    %1451 = vmatpush1.msra.mxu0 0.0
    %1452 = vmatprep.subr.mxu0 0.0
    %1453 = vmatpush1.msra.mxu0 0.0
    %1454 = vmatprep.subr.mxu0 0.0
    %1455 = vmatpush1.msra.mxu0 0.0
    %1456 = vmatprep.subr.mxu0 0.0
    %1457 = vmatpush1.msra.mxu0 0.0
    %1458 = vmatprep.subr.mxu0 0.0
    %1459 = vmatpush1.msra.mxu0 0.0
    %1460 = vmatprep.subr.mxu0 0.0
    %1461 = vmatpush1.msra.mxu0 0.0
    %1462 = vmatprep.subr.mxu0 0.0
    %1463 = vmatpush1.msra.mxu0 0.0
    %1464 = vmatprep.subr.mxu0 0.0
    %1465 = vmatpush1.msra.mxu0 0.0
    %1466 = vmatprep.subr.mxu0 0.0
    %1467 = vmatpush1.msra.mxu0 0.0
    %1468 = vmatprep.subr.mxu0 0.0
    %1469 = vmatpush1.msra.mxu0 0.0
    %1470 = vmatprep.subr.mxu0 0.0
    %1471 = vmatpush1.msra.mxu0 0.0
    %1472 = vmatprep.subr.mxu0 0.0
    %1473 = vmatpush1.msra.mxu0 0.0
    %1474 = vmatprep.subr.mxu0 0.0
    %1475 = vmatpush1.msra.mxu0 0.0
    %1476 = vmatprep.subr.mxu0 0.0
    %1477 = vmatpush1.msra.mxu0 0.0
    %1478 = vmatprep.subr.mxu0 0.0
    %1479 = vmatpush1.msra.mxu0 0.0
    %1480 = vmatprep.subr.mxu0 0.0
    %1481 = vmatpush1.msra.mxu0 0.0
    %1482 = vmatprep.subr.mxu0 0.0
    %1483 = vmatpush1.msra.mxu0 0.0
    %1484 = vmatprep.subr.mxu0 0.0
    %1485 = vmatpush1.msra.mxu0 0.0
    %1486 = vmatprep.subr.mxu0 0.0
    %1487 = vmatpush1.msra.mxu0 0.0
    %1488 = vmatprep.subr.mxu0 0.0
    %1489 = vmatpush1.msra.mxu0 0.0
    %1490 = vmatprep.subr.mxu0 0.0
    %1491 = vmatpush1.msra.mxu0 0.0
    %1492 = vmatprep.subr.mxu0 0.0
    %1493 = vmatpush1.msra.mxu0 0.0
    %1494 = vmatprep.subr.mxu0 0.0
    %1495 = vmatpush1.msra.mxu0 0.0
    %1496 = vmatprep.mubr.f32.mxu0 0.0
    %1497 = vmatmul.mubr.f32.gmra.mrb[0].mxu0 %v1430
    %v1498 = vpop.f32.mrb[0].mxu0
    %v1499 = vadd.f32 0.0, %v1498
    %v1500 = vpop.f32.mrb[0].mxu0
    %1501 = vdwg.mxu0
    %v1503 = vsel %vm785, %v914, 0
    %1505 = vmatprep.subr.mxu0 0.0
    %1506 = vmatpush1.msra.mxu0 %v184
    %1507 = vmatprep.subr.mxu0 0.0
    %1508 = vmatpush1.msra.mxu0 0.0
    %1509 = vmatprep.subr.mxu0 0.0
    %1510 = vmatpush1.msra.mxu0 0.0
    %1511 = vmatprep.subr.mxu0 0.0
    %1512 = vmatpush1.msra.mxu0 0.0
    %1513 = vmatprep.subr.mxu0 0.0
    %1514 = vmatpush1.msra.mxu0 0.0
    %1515 = vmatprep.subr.mxu0 0.0
    %1516 = vmatpush1.msra.mxu0 0.0
    %1517 = vmatprep.subr.mxu0 0.0
    %1518 = vmatpush1.msra.mxu0 0.0
    %1519 = vmatprep.subr.mxu0 0.0
    %1520 = vmatpush1.msra.mxu0 0.0
    %1521 = vmatprep.subr.mxu0 0.0
    %1522 = vmatpush1.msra.mxu0 0.0
    %1523 = vmatprep.subr.mxu0 0.0
    %1524 = vmatpush1.msra.mxu0 0.0
    %1525 = vmatprep.subr.mxu0 0.0
    %1526 = vmatpush1.msra.mxu0 0.0
    %1527 = vmatprep.subr.mxu0 0.0
    %1528 = vmatpush1.msra.mxu0 0.0
    %1529 = vmatprep.subr.mxu0 0.0
    %1530 = vmatpush1.msra.mxu0 0.0
    %1531 = vmatprep.subr.mxu0 0.0
    %1532 = vmatpush1.msra.mxu0 0.0
    %1533 = vmatprep.subr.mxu0 0.0
    %1534 = vmatpush1.msra.mxu0 0.0
    %1535 = vmatprep.subr.mxu0 0.0
    %1536 = vmatpush1.msra.mxu0 0.0
    %1537 = vmatprep.subr.mxu0 0.0
    %1538 = vmatpush1.msra.mxu0 0.0
    %1539 = vmatprep.subr.mxu0 0.0
    %1540 = vmatpush1.msra.mxu0 0.0
    %1541 = vmatprep.subr.mxu0 0.0
    %1542 = vmatpush1.msra.mxu0 0.0
    %1543 = vmatprep.subr.mxu0 0.0
    %1544 = vmatpush1.msra.mxu0 0.0
    %1545 = vmatprep.subr.mxu0 0.0
    %1546 = vmatpush1.msra.mxu0 0.0
    %1547 = vmatprep.subr.mxu0 0.0
    %1548 = vmatpush1.msra.mxu0 0.0
    %1549 = vmatprep.subr.mxu0 0.0
    %1550 = vmatpush1.msra.mxu0 0.0
    %1551 = vmatprep.subr.mxu0 0.0
    %1552 = vmatpush1.msra.mxu0 0.0
    %1553 = vmatprep.subr.mxu0 0.0
    %1554 = vmatpush1.msra.mxu0 0.0
    %1555 = vmatprep.subr.mxu0 0.0
    %1556 = vmatpush1.msra.mxu0 0.0
    %1557 = vmatprep.subr.mxu0 0.0
    %1558 = vmatpush1.msra.mxu0 0.0
    %1559 = vmatprep.subr.mxu0 0.0
    %1560 = vmatpush1.msra.mxu0 0.0
    %1561 = vmatprep.subr.mxu0 0.0
    %1562 = vmatpush1.msra.mxu0 0.0
    %1563 = vmatprep.subr.mxu0 0.0
    %1564 = vmatpush1.msra.mxu0 0.0
    %1565 = vmatprep.subr.mxu0 0.0
    %1566 = vmatpush1.msra.mxu0 0.0
    %1567 = vmatprep.subr.mxu0 0.0
    %1568 = vmatpush1.msra.mxu0 0.0
    %1569 = vmatprep.mubr.f32.mxu0 0.0
    %1570 = vmatmul.mubr.f32.gmra.mrb[0].mxu0 %v1503
    %v1571 = vpop.f32.mrb[0].mxu0
    %v1572 = vadd.f32 0.0, %v1571
    %v1573 = vpop.f32.mrb[0].mxu0
    %1574 = vdwg.mxu0
    %v1576 = vsel %vm785, %v915, 0
    %1578 = vmatprep.subr.mxu0 0.0
    %1579 = vmatpush1.msra.mxu0 %v185
    %1580 = vmatprep.subr.mxu0 0.0
    %1581 = vmatpush1.msra.mxu0 0.0
    %1582 = vmatprep.subr.mxu0 0.0
    %1583 = vmatpush1.msra.mxu0 0.0
    %1584 = vmatprep.subr.mxu0 0.0
    %1585 = vmatpush1.msra.mxu0 0.0
    %1586 = vmatprep.subr.mxu0 0.0
    %1587 = vmatpush1.msra.mxu0 0.0
    %1588 = vmatprep.subr.mxu0 0.0
    %1589 = vmatpush1.msra.mxu0 0.0
    %1590 = vmatprep.subr.mxu0 0.0
    %1591 = vmatpush1.msra.mxu0 0.0
    %1592 = vmatprep.subr.mxu0 0.0
    %1593 = vmatpush1.msra.mxu0 0.0
    %1594 = vmatprep.subr.mxu0 0.0
    %1595 = vmatpush1.msra.mxu0 0.0
    %1596 = vmatprep.subr.mxu0 0.0
    %1597 = vmatpush1.msra.mxu0 0.0
    %1598 = vmatprep.subr.mxu0 0.0
    %1599 = vmatpush1.msra.mxu0 0.0
    %1600 = vmatprep.subr.mxu0 0.0
    %1601 = vmatpush1.msra.mxu0 0.0
    %1602 = vmatprep.subr.mxu0 0.0
    %1603 = vmatpush1.msra.mxu0 0.0
    %1604 = vmatprep.subr.mxu0 0.0
    %1605 = vmatpush1.msra.mxu0 0.0
    %1606 = vmatprep.subr.mxu0 0.0
    %1607 = vmatpush1.msra.mxu0 0.0
    %1608 = vmatprep.subr.mxu0 0.0
    %1609 = vmatpush1.msra.mxu0 0.0
    %1610 = vmatprep.subr.mxu0 0.0
    %1611 = vmatpush1.msra.mxu0 0.0
    %1612 = vmatprep.subr.mxu0 0.0
    %1613 = vmatpush1.msra.mxu0 0.0
    %1614 = vmatprep.subr.mxu0 0.0
    %1615 = vmatpush1.msra.mxu0 0.0
    %1616 = vmatprep.subr.mxu0 0.0
    %1617 = vmatpush1.msra.mxu0 0.0
    %1618 = vmatprep.subr.mxu0 0.0
    %1619 = vmatpush1.msra.mxu0 0.0
    %1620 = vmatprep.subr.mxu0 0.0
    %1621 = vmatpush1.msra.mxu0 0.0
    %1622 = vmatprep.subr.mxu0 0.0
    %1623 = vmatpush1.msra.mxu0 0.0
    %1624 = vmatprep.subr.mxu0 0.0
    %1625 = vmatpush1.msra.mxu0 0.0
    %1626 = vmatprep.subr.mxu0 0.0
    %1627 = vmatpush1.msra.mxu0 0.0
    %1628 = vmatprep.subr.mxu0 0.0
    %1629 = vmatpush1.msra.mxu0 0.0
    %1630 = vmatprep.subr.mxu0 0.0
    %1631 = vmatpush1.msra.mxu0 0.0
    %1632 = vmatprep.subr.mxu0 0.0
    %1633 = vmatpush1.msra.mxu0 0.0
    %1634 = vmatprep.subr.mxu0 0.0
    %1635 = vmatpush1.msra.mxu0 0.0
    %1636 = vmatprep.subr.mxu0 0.0
    %1637 = vmatpush1.msra.mxu0 0.0
    %1638 = vmatprep.subr.mxu0 0.0
    %1639 = vmatpush1.msra.mxu0 0.0
    %1640 = vmatprep.subr.mxu0 0.0
    %1641 = vmatpush1.msra.mxu0 0.0
    %1642 = vmatprep.mubr.f32.mxu0 0.0
    %1643 = vmatmul.mubr.f32.gmra.mrb[0].mxu0 %v1576
    %v1644 = vpop.f32.mrb[0].mxu0
    %v1645 = vadd.f32 0.0, %v1644
    %v1646 = vpop.f32.mrb[0].mxu0
    %1647 = vdwg.mxu0
    %v1649 = vsel %vm785, %v916, 0
    %1651 = vmatprep.subr.mxu0 0.0
    %1652 = vmatpush1.msra.mxu0 %v186
    %1653 = vmatprep.subr.mxu0 0.0
    %1654 = vmatpush1.msra.mxu0 0.0
    %1655 = vmatprep.subr.mxu0 0.0
    %1656 = vmatpush1.msra.mxu0 0.0
    %1657 = vmatprep.subr.mxu0 0.0
    %1658 = vmatpush1.msra.mxu0 0.0
    %1659 = vmatprep.subr.mxu0 0.0
    %1660 = vmatpush1.msra.mxu0 0.0
    %1661 = vmatprep.subr.mxu0 0.0
    %1662 = vmatpush1.msra.mxu0 0.0
    %1663 = vmatprep.subr.mxu0 0.0
    %1664 = vmatpush1.msra.mxu0 0.0
    %1665 = vmatprep.subr.mxu0 0.0
    %1666 = vmatpush1.msra.mxu0 0.0
    %1667 = vmatprep.subr.mxu0 0.0
    %1668 = vmatpush1.msra.mxu0 0.0
    %1669 = vmatprep.subr.mxu0 0.0
    %1670 = vmatpush1.msra.mxu0 0.0
    %1671 = vmatprep.subr.mxu0 0.0
    %1672 = vmatpush1.msra.mxu0 0.0
    %1673 = vmatprep.subr.mxu0 0.0
    %1674 = vmatpush1.msra.mxu0 0.0
    %1675 = vmatprep.subr.mxu0 0.0
    %1676 = vmatpush1.msra.mxu0 0.0
    %1677 = vmatprep.subr.mxu0 0.0
    %1678 = vmatpush1.msra.mxu0 0.0
    %1679 = vmatprep.subr.mxu0 0.0
    %1680 = vmatpush1.msra.mxu0 0.0
    %1681 = vmatprep.subr.mxu0 0.0
    %1682 = vmatpush1.msra.mxu0 0.0
    %1683 = vmatprep.subr.mxu0 0.0
    %1684 = vmatpush1.msra.mxu0 0.0
    %1685 = vmatprep.subr.mxu0 0.0
    %1686 = vmatpush1.msra.mxu0 0.0
    %1687 = vmatprep.subr.mxu0 0.0
    %1688 = vmatpush1.msra.mxu0 0.0
    %1689 = vmatprep.subr.mxu0 0.0
    %1690 = vmatpush1.msra.mxu0 0.0
    %1691 = vmatprep.subr.mxu0 0.0
    %1692 = vmatpush1.msra.mxu0 0.0
    %1693 = vmatprep.subr.mxu0 0.0
    %1694 = vmatpush1.msra.mxu0 0.0
    %1695 = vmatprep.subr.mxu0 0.0
    %1696 = vmatpush1.msra.mxu0 0.0
    %1697 = vmatprep.subr.mxu0 0.0
    %1698 = vmatpush1.msra.mxu0 0.0
    %1699 = vmatprep.subr.mxu0 0.0
    %1700 = vmatpush1.msra.mxu0 0.0
    %1701 = vmatprep.subr.mxu0 0.0
    %1702 = vmatpush1.msra.mxu0 0.0
    %1703 = vmatprep.subr.mxu0 0.0
    %1704 = vmatpush1.msra.mxu0 0.0
    %1705 = vmatprep.subr.mxu0 0.0
    %1706 = vmatpush1.msra.mxu0 0.0
    %1707 = vmatprep.subr.mxu0 0.0
    %1708 = vmatpush1.msra.mxu0 0.0
    %1709 = vmatprep.subr.mxu0 0.0
    %1710 = vmatpush1.msra.mxu0 0.0
    %1711 = vmatprep.subr.mxu0 0.0
    %1712 = vmatpush1.msra.mxu0 0.0
    %1713 = vmatprep.subr.mxu0 0.0
    %1714 = vmatpush1.msra.mxu0 0.0
    %1715 = vmatprep.mubr.f32.mxu0 0.0
    %1716 = vmatmul.mubr.f32.gmra.mrb[0].mxu0 %v1649
    %v1717 = vpop.f32.mrb[0].mxu0
    %v1718 = vadd.f32 0.0, %v1717
    %v1719 = vpop.f32.mrb[0].mxu0
    %1720 = vdwg.mxu0
    %v1722 = vsel %vm785, %v917, 0
    %1724 = vmatprep.subr.mxu0 0.0
    %1725 = vmatpush1.msra.mxu0 %v187
    %1726 = vmatprep.subr.mxu0 0.0
    %1727 = vmatpush1.msra.mxu0 0.0
    %1728 = vmatprep.subr.mxu0 0.0
    %1729 = vmatpush1.msra.mxu0 0.0
    %1730 = vmatprep.subr.mxu0 0.0
    %1731 = vmatpush1.msra.mxu0 0.0
    %1732 = vmatprep.subr.mxu0 0.0
    %1733 = vmatpush1.msra.mxu0 0.0
    %1734 = vmatprep.subr.mxu0 0.0
    %1735 = vmatpush1.msra.mxu0 0.0
    %1736 = vmatprep.subr.mxu0 0.0
    %1737 = vmatpush1.msra.mxu0 0.0
    %1738 = vmatprep.subr.mxu0 0.0
    %1739 = vmatpush1.msra.mxu0 0.0
    %1740 = vmatprep.subr.mxu0 0.0
    %1741 = vmatpush1.msra.mxu0 0.0
    %1742 = vmatprep.subr.mxu0 0.0
    %1743 = vmatpush1.msra.mxu0 0.0
    %1744 = vmatprep.subr.mxu0 0.0
    %1745 = vmatpush1.msra.mxu0 0.0
    %1746 = vmatprep.subr.mxu0 0.0
    %1747 = vmatpush1.msra.mxu0 0.0
    %1748 = vmatprep.subr.mxu0 0.0
    %1749 = vmatpush1.msra.mxu0 0.0
    %1750 = vmatprep.subr.mxu0 0.0
    %1751 = vmatpush1.msra.mxu0 0.0
    %1752 = vmatprep.subr.mxu0 0.0
    %1753 = vmatpush1.msra.mxu0 0.0
    %1754 = vmatprep.subr.mxu0 0.0
    %1755 = vmatpush1.msra.mxu0 0.0
    %1756 = vmatprep.subr.mxu0 0.0
    %1757 = vmatpush1.msra.mxu0 0.0
    %1758 = vmatprep.subr.mxu0 0.0
    %1759 = vmatpush1.msra.mxu0 0.0
    %1760 = vmatprep.subr.mxu0 0.0
    %1761 = vmatpush1.msra.mxu0 0.0
    %1762 = vmatprep.subr.mxu0 0.0
    %1763 = vmatpush1.msra.mxu0 0.0
    %1764 = vmatprep.subr.mxu0 0.0
    %1765 = vmatpush1.msra.mxu0 0.0
    %1766 = vmatprep.subr.mxu0 0.0
    %1767 = vmatpush1.msra.mxu0 0.0
    %1768 = vmatprep.subr.mxu0 0.0
    %1769 = vmatpush1.msra.mxu0 0.0
    %1770 = vmatprep.subr.mxu0 0.0
    %1771 = vmatpush1.msra.mxu0 0.0
    %1772 = vmatprep.subr.mxu0 0.0
    %1773 = vmatpush1.msra.mxu0 0.0
    %1774 = vmatprep.subr.mxu0 0.0
    %1775 = vmatpush1.msra.mxu0 0.0
    %1776 = vmatprep.subr.mxu0 0.0
    %1777 = vmatpush1.msra.mxu0 0.0
    %1778 = vmatprep.subr.mxu0 0.0
    %1779 = vmatpush1.msra.mxu0 0.0
    %1780 = vmatprep.subr.mxu0 0.0
    %1781 = vmatpush1.msra.mxu0 0.0
    %1782 = vmatprep.subr.mxu0 0.0
    %1783 = vmatpush1.msra.mxu0 0.0
    %1784 = vmatprep.subr.mxu0 0.0
    %1785 = vmatpush1.msra.mxu0 0.0
    %1786 = vmatprep.subr.mxu0 0.0
    %1787 = vmatpush1.msra.mxu0 0.0
    %1788 = vmatprep.mubr.f32.mxu0 0.0
    %1789 = vmatmul.mubr.f32.gmra.mrb[0].mxu0 %v1722
    %v1790 = vpop.f32.mrb[0].mxu0
    %v1791 = vadd.f32 0.0, %v1790
    %v1792 = vpop.f32.mrb[0].mxu0
    %1793 = vdwg.mxu0
    %v1794 = vld [vmem:[%s3] sm:$0xf]
    %v1795 = vld [vmem:[%s3 + $0x4] sm:$0xf]
    %v1796 = vld [vmem:[%s3 + $0x8] sm:$0xf]
    %v1797 = vld [vmem:[%s3 + $0xc] sm:$0xf]
    %v1798 = vld [vmem:[%s3 + $0x10] sm:$0xf]
    %v1799 = vld [vmem:[%s3 + $0x14] sm:$0xf]
    %v1800 = vld [vmem:[%s3 + $0x18] sm:$0xf]
    %v1801 = vld [vmem:[%s3 + $0x1c] sm:$0xf]
    %v1802 = vld [vmem:[%s3 + $0x20] sm:$0xf]
    %v1803 = vld [vmem:[%s3 + $0x24] sm:$0xf]
    %v1804 = vld [vmem:[%s3 + $0x28] sm:$0xf]
    %v1805 = vld [vmem:[%s3 + $0x2c] sm:$0xf]
    %v1807 = vsel %vm353, %v988, 0
    %vm1809 = vcmask 1043456
    %v1811 = vsel %vm1809, %v1794, 0
    %1813 = vmatprep.subr.mxu0 0.0
    %1814 = vmatpush1.msra.mxu0 %v1811
    %1815 = vmatprep.subr.mxu0 0.0
    %1816 = vmatpush1.msra.mxu0 0.0
    %1817 = vmatprep.subr.mxu0 0.0
    %1818 = vmatpush1.msra.mxu0 0.0
    %1819 = vmatprep.subr.mxu0 0.0
    %1820 = vmatpush1.msra.mxu0 0.0
    %1821 = vmatprep.subr.mxu0 0.0
    %1822 = vmatpush1.msra.mxu0 0.0
    %1823 = vmatprep.subr.mxu0 0.0
    %1824 = vmatpush1.msra.mxu0 0.0
    %1825 = vmatprep.subr.mxu0 0.0
    %1826 = vmatpush1.msra.mxu0 0.0
    %1827 = vmatprep.subr.mxu0 0.0
    %1828 = vmatpush1.msra.mxu0 0.0
    %1829 = vmatprep.subr.mxu0 0.0
    %1830 = vmatpush1.msra.mxu0 0.0
    %1831 = vmatprep.subr.mxu0 0.0
    %1832 = vmatpush1.msra.mxu0 0.0
    %1833 = vmatprep.subr.mxu0 0.0
    %1834 = vmatpush1.msra.mxu0 0.0
    %1835 = vmatprep.subr.mxu0 0.0
    %1836 = vmatpush1.msra.mxu0 0.0
    %1837 = vmatprep.subr.mxu0 0.0
    %1838 = vmatpush1.msra.mxu0 0.0
    %1839 = vmatprep.subr.mxu0 0.0
    %1840 = vmatpush1.msra.mxu0 0.0
    %1841 = vmatprep.subr.mxu0 0.0
    %1842 = vmatpush1.msra.mxu0 0.0
    %1843 = vmatprep.subr.mxu0 0.0
    %1844 = vmatpush1.msra.mxu0 0.0
    %1845 = vmatprep.subr.mxu0 0.0
    %1846 = vmatpush1.msra.mxu0 0.0
    %1847 = vmatprep.subr.mxu0 0.0
    %1848 = vmatpush1.msra.mxu0 0.0
    %1849 = vmatprep.subr.mxu0 0.0
    %1850 = vmatpush1.msra.mxu0 0.0
    %1851 = vmatprep.subr.mxu0 0.0
    %1852 = vmatpush1.msra.mxu0 0.0
    %1853 = vmatprep.subr.mxu0 0.0
    %1854 = vmatpush1.msra.mxu0 0.0
    %1855 = vmatprep.subr.mxu0 0.0
    %1856 = vmatpush1.msra.mxu0 0.0
    %1857 = vmatprep.subr.mxu0 0.0
    %1858 = vmatpush1.msra.mxu0 0.0
    %1859 = vmatprep.subr.mxu0 0.0
    %1860 = vmatpush1.msra.mxu0 0.0
    %1861 = vmatprep.subr.mxu0 0.0
    %1862 = vmatpush1.msra.mxu0 0.0
    %1863 = vmatprep.subr.mxu0 0.0
    %1864 = vmatpush1.msra.mxu0 0.0
    %1865 = vmatprep.subr.mxu0 0.0
    %1866 = vmatpush1.msra.mxu0 0.0
    %1867 = vmatprep.subr.mxu0 0.0
    %1868 = vmatpush1.msra.mxu0 0.0
    %1869 = vmatprep.subr.mxu0 0.0
    %1870 = vmatpush1.msra.mxu0 0.0
    %1871 = vmatprep.subr.mxu0 0.0
    %1872 = vmatpush1.msra.mxu0 0.0
    %1873 = vmatprep.subr.mxu0 0.0
    %1874 = vmatpush1.msra.mxu0 0.0
    %1875 = vmatprep.subr.mxu0 0.0
    %1876 = vmatpush1.msra.mxu0 0.0
    %1877 = vmatprep.mubr.f32.mxu0 0.0
    %1878 = vmatmul.mubr.f32.gmra.mrb[0].mxu0 %v1807
    %v1879 = vpop.f32.mrb[0].mxu0
    %v1880 = vadd.f32 0.0, %v1879
    %v1881 = vpop.f32.mrb[0].mxu0
    %1882 = vdwg.mxu0
    %v1884 = vsel %vm353, %v1061, 0
    %v1887 = vsel %vm1809, %v1795, 0
    %1889 = vmatprep.subr.mxu0 0.0
    %1890 = vmatpush1.msra.mxu0 %v1887
    %1891 = vmatprep.subr.mxu0 0.0
    %1892 = vmatpush1.msra.mxu0 0.0
    %1893 = vmatprep.subr.mxu0 0.0
    %1894 = vmatpush1.msra.mxu0 0.0
    %1895 = vmatprep.subr.mxu0 0.0
    %1896 = vmatpush1.msra.mxu0 0.0
    %1897 = vmatprep.subr.mxu0 0.0
    %1898 = vmatpush1.msra.mxu0 0.0
    %1899 = vmatprep.subr.mxu0 0.0
    %1900 = vmatpush1.msra.mxu0 0.0
    %1901 = vmatprep.subr.mxu0 0.0
    %1902 = vmatpush1.msra.mxu0 0.0
    %1903 = vmatprep.subr.mxu0 0.0
    %1904 = vmatpush1.msra.mxu0 0.0
    %1905 = vmatprep.subr.mxu0 0.0
    %1906 = vmatpush1.msra.mxu0 0.0
    %1907 = vmatprep.subr.mxu0 0.0
    %1908 = vmatpush1.msra.mxu0 0.0
    %1909 = vmatprep.subr.mxu0 0.0
    %1910 = vmatpush1.msra.mxu0 0.0
    %1911 = vmatprep.subr.mxu0 0.0
    %1912 = vmatpush1.msra.mxu0 0.0
    %1913 = vmatprep.subr.mxu0 0.0
    %1914 = vmatpush1.msra.mxu0 0.0
    %1915 = vmatprep.subr.mxu0 0.0
    %1916 = vmatpush1.msra.mxu0 0.0
    %1917 = vmatprep.subr.mxu0 0.0
    %1918 = vmatpush1.msra.mxu0 0.0
    %1919 = vmatprep.subr.mxu0 0.0
    %1920 = vmatpush1.msra.mxu0 0.0
    %1921 = vmatprep.subr.mxu0 0.0
    %1922 = vmatpush1.msra.mxu0 0.0
    %1923 = vmatprep.subr.mxu0 0.0
    %1924 = vmatpush1.msra.mxu0 0.0
    %1925 = vmatprep.subr.mxu0 0.0
    %1926 = vmatpush1.msra.mxu0 0.0
    %1927 = vmatprep.subr.mxu0 0.0
    %1928 = vmatpush1.msra.mxu0 0.0
    %1929 = vmatprep.subr.mxu0 0.0
    %1930 = vmatpush1.msra.mxu0 0.0
    %1931 = vmatprep.subr.mxu0 0.0
    %1932 = vmatpush1.msra.mxu0 0.0
    %1933 = vmatprep.subr.mxu0 0.0
    %1934 = vmatpush1.msra.mxu0 0.0
    %1935 = vmatprep.subr.mxu0 0.0
    %1936 = vmatpush1.msra.mxu0 0.0
    %1937 = vmatprep.subr.mxu0 0.0
    %1938 = vmatpush1.msra.mxu0 0.0
    %1939 = vmatprep.subr.mxu0 0.0
    %1940 = vmatpush1.msra.mxu0 0.0
    %1941 = vmatprep.subr.mxu0 0.0
    %1942 = vmatpush1.msra.mxu0 0.0
    %1943 = vmatprep.subr.mxu0 0.0
    %1944 = vmatpush1.msra.mxu0 0.0
    %1945 = vmatprep.subr.mxu0 0.0
    %1946 = vmatpush1.msra.mxu0 0.0
    %1947 = vmatprep.subr.mxu0 0.0
    %1948 = vmatpush1.msra.mxu0 0.0
    %1949 = vmatprep.subr.mxu0 0.0
    %1950 = vmatpush1.msra.mxu0 0.0
    %1951 = vmatprep.subr.mxu0 0.0
    %1952 = vmatpush1.msra.mxu0 0.0
    %1953 = vmatprep.mubr.f32.mxu0 0.0
    %1954 = vmatmul.mubr.f32.gmra.mrb[0].mxu0 %v1884
    %v1955 = vpop.f32.mrb[0].mxu0
    %v1956 = vadd.f32 0.0, %v1955
    %v1957 = vpop.f32.mrb[0].mxu0
    %1958 = vdwg.mxu0
    %v1960 = vsel %vm353, %v1134, 0
    %v1963 = vsel %vm1809, %v1796, 0
    %1965 = vmatprep.subr.mxu0 0.0
    %1966 = vmatpush1.msra.mxu0 %v1963
    %1967 = vmatprep.subr.mxu0 0.0
    %1968 = vmatpush1.msra.mxu0 0.0
    %1969 = vmatprep.subr.mxu0 0.0
    %1970 = vmatpush1.msra.mxu0 0.0
    %1971 = vmatprep.subr.mxu0 0.0
    %1972 = vmatpush1.msra.mxu0 0.0
    %1973 = vmatprep.subr.mxu0 0.0
    %1974 = vmatpush1.msra.mxu0 0.0
    %1975 = vmatprep.subr.mxu0 0.0
    %1976 = vmatpush1.msra.mxu0 0.0
    %1977 = vmatprep.subr.mxu0 0.0
    %1978 = vmatpush1.msra.mxu0 0.0
    %1979 = vmatprep.subr.mxu0 0.0
    %1980 = vmatpush1.msra.mxu0 0.0
    %1981 = vmatprep.subr.mxu0 0.0
    %1982 = vmatpush1.msra.mxu0 0.0
    %1983 = vmatprep.subr.mxu0 0.0
    %1984 = vmatpush1.msra.mxu0 0.0
    %1985 = vmatprep.subr.mxu0 0.0
    %1986 = vmatpush1.msra.mxu0 0.0
    %1987 = vmatprep.subr.mxu0 0.0
    %1988 = vmatpush1.msra.mxu0 0.0
    %1989 = vmatprep.subr.mxu0 0.0
    %1990 = vmatpush1.msra.mxu0 0.0
    %1991 = vmatprep.subr.mxu0 0.0
    %1992 = vmatpush1.msra.mxu0 0.0
    %1993 = vmatprep.subr.mxu0 0.0
    %1994 = vmatpush1.msra.mxu0 0.0
    %1995 = vmatprep.subr.mxu0 0.0
    %1996 = vmatpush1.msra.mxu0 0.0
    %1997 = vmatprep.subr.mxu0 0.0
    %1998 = vmatpush1.msra.mxu0 0.0
    %1999 = vmatprep.subr.mxu0 0.0
    %2000 = vmatpush1.msra.mxu0 0.0
    %2001 = vmatprep.subr.mxu0 0.0
    %2002 = vmatpush1.msra.mxu0 0.0
    %2003 = vmatprep.subr.mxu0 0.0
    %2004 = vmatpush1.msra.mxu0 0.0
    %2005 = vmatprep.subr.mxu0 0.0
    %2006 = vmatpush1.msra.mxu0 0.0
    %2007 = vmatprep.subr.mxu0 0.0
    %2008 = vmatpush1.msra.mxu0 0.0
    %2009 = vmatprep.subr.mxu0 0.0
    %2010 = vmatpush1.msra.mxu0 0.0
    %2011 = vmatprep.subr.mxu0 0.0
    %2012 = vmatpush1.msra.mxu0 0.0
    %2013 = vmatprep.subr.mxu0 0.0
    %2014 = vmatpush1.msra.mxu0 0.0
    %2015 = vmatprep.subr.mxu0 0.0
    %2016 = vmatpush1.msra.mxu0 0.0
    %2017 = vmatprep.subr.mxu0 0.0
    %2018 = vmatpush1.msra.mxu0 0.0
    %2019 = vmatprep.subr.mxu0 0.0
    %2020 = vmatpush1.msra.mxu0 0.0
    %2021 = vmatprep.subr.mxu0 0.0
    %2022 = vmatpush1.msra.mxu0 0.0
    %2023 = vmatprep.subr.mxu0 0.0
    %2024 = vmatpush1.msra.mxu0 0.0
    %2025 = vmatprep.subr.mxu0 0.0
    %2026 = vmatpush1.msra.mxu0 0.0
    %2027 = vmatprep.subr.mxu0 0.0
    %2028 = vmatpush1.msra.mxu0 0.0
    %2029 = vmatprep.mubr.f32.mxu0 0.0
    %2030 = vmatmul.mubr.f32.gmra.mrb[0].mxu0 %v1960
    %v2031 = vpop.f32.mrb[0].mxu0
    %v2032 = vadd.f32 0.0, %v2031
    %v2033 = vpop.f32.mrb[0].mxu0
    %2034 = vdwg.mxu0
    %v2036 = vsel %vm353, %v1207, 0
    %v2039 = vsel %vm1809, %v1797, 0
    %2041 = vmatprep.subr.mxu0 0.0
    %2042 = vmatpush1.msra.mxu0 %v2039
    %2043 = vmatprep.subr.mxu0 0.0
    %2044 = vmatpush1.msra.mxu0 0.0
    %2045 = vmatprep.subr.mxu0 0.0
    %2046 = vmatpush1.msra.mxu0 0.0
    %2047 = vmatprep.subr.mxu0 0.0
    %2048 = vmatpush1.msra.mxu0 0.0
    %2049 = vmatprep.subr.mxu0 0.0
    %2050 = vmatpush1.msra.mxu0 0.0
    %2051 = vmatprep.subr.mxu0 0.0
    %2052 = vmatpush1.msra.mxu0 0.0
    %2053 = vmatprep.subr.mxu0 0.0
    %2054 = vmatpush1.msra.mxu0 0.0
    %2055 = vmatprep.subr.mxu0 0.0
    %2056 = vmatpush1.msra.mxu0 0.0
    %2057 = vmatprep.subr.mxu0 0.0
    %2058 = vmatpush1.msra.mxu0 0.0
    %2059 = vmatprep.subr.mxu0 0.0
    %2060 = vmatpush1.msra.mxu0 0.0
    %2061 = vmatprep.subr.mxu0 0.0
    %2062 = vmatpush1.msra.mxu0 0.0
    %2063 = vmatprep.subr.mxu0 0.0
    %2064 = vmatpush1.msra.mxu0 0.0
    %2065 = vmatprep.subr.mxu0 0.0
    %2066 = vmatpush1.msra.mxu0 0.0
    %2067 = vmatprep.subr.mxu0 0.0
    %2068 = vmatpush1.msra.mxu0 0.0
    %2069 = vmatprep.subr.mxu0 0.0
    %2070 = vmatpush1.msra.mxu0 0.0
    %2071 = vmatprep.subr.mxu0 0.0
    %2072 = vmatpush1.msra.mxu0 0.0
    %2073 = vmatprep.subr.mxu0 0.0
    %2074 = vmatpush1.msra.mxu0 0.0
    %2075 = vmatprep.subr.mxu0 0.0
    %2076 = vmatpush1.msra.mxu0 0.0
    %2077 = vmatprep.subr.mxu0 0.0
    %2078 = vmatpush1.msra.mxu0 0.0
    %2079 = vmatprep.subr.mxu0 0.0
    %2080 = vmatpush1.msra.mxu0 0.0
    %2081 = vmatprep.subr.mxu0 0.0
    %2082 = vmatpush1.msra.mxu0 0.0
    %2083 = vmatprep.subr.mxu0 0.0
    %2084 = vmatpush1.msra.mxu0 0.0
    %2085 = vmatprep.subr.mxu0 0.0
    %2086 = vmatpush1.msra.mxu0 0.0
    %2087 = vmatprep.subr.mxu0 0.0
    %2088 = vmatpush1.msra.mxu0 0.0
    %2089 = vmatprep.subr.mxu0 0.0
    %2090 = vmatpush1.msra.mxu0 0.0
    %2091 = vmatprep.subr.mxu0 0.0
    %2092 = vmatpush1.msra.mxu0 0.0
    %2093 = vmatprep.subr.mxu0 0.0
    %2094 = vmatpush1.msra.mxu0 0.0
    %2095 = vmatprep.subr.mxu0 0.0
    %2096 = vmatpush1.msra.mxu0 0.0
    %2097 = vmatprep.subr.mxu0 0.0
    %2098 = vmatpush1.msra.mxu0 0.0
    %2099 = vmatprep.subr.mxu0 0.0
    %2100 = vmatpush1.msra.mxu0 0.0
    %2101 = vmatprep.subr.mxu0 0.0
    %2102 = vmatpush1.msra.mxu0 0.0
    %2103 = vmatprep.subr.mxu0 0.0
    %2104 = vmatpush1.msra.mxu0 0.0
    %2105 = vmatprep.mubr.f32.mxu0 0.0
    %2106 = vmatmul.mubr.f32.gmra.mrb[0].mxu0 %v2036
    %v2107 = vpop.f32.mrb[0].mxu0
    %v2108 = vadd.f32 0.0, %v2107
    %v2109 = vpop.f32.mrb[0].mxu0
    %2110 = vdwg.mxu0
    %v2112 = vsel %vm353, %v1280, 0
    %v2115 = vsel %vm1809, %v1798, 0
    %2117 = vmatprep.subr.mxu0 0.0
    %2118 = vmatpush1.msra.mxu0 %v2115
    %2119 = vmatprep.subr.mxu0 0.0
    %2120 = vmatpush1.msra.mxu0 0.0
    %2121 = vmatprep.subr.mxu0 0.0
    %2122 = vmatpush1.msra.mxu0 0.0
    %2123 = vmatprep.subr.mxu0 0.0
    %2124 = vmatpush1.msra.mxu0 0.0
    %2125 = vmatprep.subr.mxu0 0.0
    %2126 = vmatpush1.msra.mxu0 0.0
    %2127 = vmatprep.subr.mxu0 0.0
    %2128 = vmatpush1.msra.mxu0 0.0
    %2129 = vmatprep.subr.mxu0 0.0
    %2130 = vmatpush1.msra.mxu0 0.0
    %2131 = vmatprep.subr.mxu0 0.0
    %2132 = vmatpush1.msra.mxu0 0.0
    %2133 = vmatprep.subr.mxu0 0.0
    %2134 = vmatpush1.msra.mxu0 0.0
    %2135 = vmatprep.subr.mxu0 0.0
    %2136 = vmatpush1.msra.mxu0 0.0
    %2137 = vmatprep.subr.mxu0 0.0
    %2138 = vmatpush1.msra.mxu0 0.0
    %2139 = vmatprep.subr.mxu0 0.0
    %2140 = vmatpush1.msra.mxu0 0.0
    %2141 = vmatprep.subr.mxu0 0.0
    %2142 = vmatpush1.msra.mxu0 0.0
    %2143 = vmatprep.subr.mxu0 0.0
    %2144 = vmatpush1.msra.mxu0 0.0
    %2145 = vmatprep.subr.mxu0 0.0
    %2146 = vmatpush1.msra.mxu0 0.0
    %2147 = vmatprep.subr.mxu0 0.0
    %2148 = vmatpush1.msra.mxu0 0.0
    %2149 = vmatprep.subr.mxu0 0.0
    %2150 = vmatpush1.msra.mxu0 0.0
    %2151 = vmatprep.subr.mxu0 0.0
    %2152 = vmatpush1.msra.mxu0 0.0
    %2153 = vmatprep.subr.mxu0 0.0
    %2154 = vmatpush1.msra.mxu0 0.0
    %2155 = vmatprep.subr.mxu0 0.0
    %2156 = vmatpush1.msra.mxu0 0.0
    %2157 = vmatprep.subr.mxu0 0.0
    %2158 = vmatpush1.msra.mxu0 0.0
    %2159 = vmatprep.subr.mxu0 0.0
    %2160 = vmatpush1.msra.mxu0 0.0
    %2161 = vmatprep.subr.mxu0 0.0
    %2162 = vmatpush1.msra.mxu0 0.0
    %2163 = vmatprep.subr.mxu0 0.0
    %2164 = vmatpush1.msra.mxu0 0.0
    %2165 = vmatprep.subr.mxu0 0.0
    %2166 = vmatpush1.msra.mxu0 0.0
    %2167 = vmatprep.subr.mxu0 0.0
    %2168 = vmatpush1.msra.mxu0 0.0
    %2169 = vmatprep.subr.mxu0 0.0
    %2170 = vmatpush1.msra.mxu0 0.0
    %2171 = vmatprep.subr.mxu0 0.0
    %2172 = vmatpush1.msra.mxu0 0.0
    %2173 = vmatprep.subr.mxu0 0.0
    %2174 = vmatpush1.msra.mxu0 0.0
    %2175 = vmatprep.subr.mxu0 0.0
    %2176 = vmatpush1.msra.mxu0 0.0
    %2177 = vmatprep.subr.mxu0 0.0
    %2178 = vmatpush1.msra.mxu0 0.0
    %2179 = vmatprep.subr.mxu0 0.0
    %2180 = vmatpush1.msra.mxu0 0.0
    %2181 = vmatprep.mubr.f32.mxu0 0.0
    %2182 = vmatmul.mubr.f32.gmra.mrb[0].mxu0 %v2112
    %v2183 = vpop.f32.mrb[0].mxu0
    %v2184 = vadd.f32 0.0, %v2183
    %v2185 = vpop.f32.mrb[0].mxu0
    %2186 = vdwg.mxu0
    %v2188 = vsel %vm353, %v1353, 0
    %v2191 = vsel %vm1809, %v1799, 0
    %2193 = vmatprep.subr.mxu0 0.0
    %2194 = vmatpush1.msra.mxu0 %v2191
    %2195 = vmatprep.subr.mxu0 0.0
    %2196 = vmatpush1.msra.mxu0 0.0
    %2197 = vmatprep.subr.mxu0 0.0
    %2198 = vmatpush1.msra.mxu0 0.0
    %2199 = vmatprep.subr.mxu0 0.0
    %2200 = vmatpush1.msra.mxu0 0.0
    %2201 = vmatprep.subr.mxu0 0.0
    %2202 = vmatpush1.msra.mxu0 0.0
    %2203 = vmatprep.subr.mxu0 0.0
    %2204 = vmatpush1.msra.mxu0 0.0
    %2205 = vmatprep.subr.mxu0 0.0
    %2206 = vmatpush1.msra.mxu0 0.0
    %2207 = vmatprep.subr.mxu0 0.0
    %2208 = vmatpush1.msra.mxu0 0.0
    %2209 = vmatprep.subr.mxu0 0.0
    %2210 = vmatpush1.msra.mxu0 0.0
    %2211 = vmatprep.subr.mxu0 0.0
    %2212 = vmatpush1.msra.mxu0 0.0
    %2213 = vmatprep.subr.mxu0 0.0
    %2214 = vmatpush1.msra.mxu0 0.0
    %2215 = vmatprep.subr.mxu0 0.0
    %2216 = vmatpush1.msra.mxu0 0.0
    %2217 = vmatprep.subr.mxu0 0.0
    %2218 = vmatpush1.msra.mxu0 0.0
    %2219 = vmatprep.subr.mxu0 0.0
    %2220 = vmatpush1.msra.mxu0 0.0
    %2221 = vmatprep.subr.mxu0 0.0
    %2222 = vmatpush1.msra.mxu0 0.0
    %2223 = vmatprep.subr.mxu0 0.0
    %2224 = vmatpush1.msra.mxu0 0.0
    %2225 = vmatprep.subr.mxu0 0.0
    %2226 = vmatpush1.msra.mxu0 0.0
    %2227 = vmatprep.subr.mxu0 0.0
    %2228 = vmatpush1.msra.mxu0 0.0
    %2229 = vmatprep.subr.mxu0 0.0
    %2230 = vmatpush1.msra.mxu0 0.0
    %2231 = vmatprep.subr.mxu0 0.0
    %2232 = vmatpush1.msra.mxu0 0.0
    %2233 = vmatprep.subr.mxu0 0.0
    %2234 = vmatpush1.msra.mxu0 0.0
    %2235 = vmatprep.subr.mxu0 0.0
    %2236 = vmatpush1.msra.mxu0 0.0
    %2237 = vmatprep.subr.mxu0 0.0
    %2238 = vmatpush1.msra.mxu0 0.0
    %2239 = vmatprep.subr.mxu0 0.0
    %2240 = vmatpush1.msra.mxu0 0.0
    %2241 = vmatprep.subr.mxu0 0.0
    %2242 = vmatpush1.msra.mxu0 0.0
    %2243 = vmatprep.subr.mxu0 0.0
    %2244 = vmatpush1.msra.mxu0 0.0
    %2245 = vmatprep.subr.mxu0 0.0
    %2246 = vmatpush1.msra.mxu0 0.0
    %2247 = vmatprep.subr.mxu0 0.0
    %2248 = vmatpush1.msra.mxu0 0.0
    %2249 = vmatprep.subr.mxu0 0.0
    %2250 = vmatpush1.msra.mxu0 0.0
    %2251 = vmatprep.subr.mxu0 0.0
    %2252 = vmatpush1.msra.mxu0 0.0
    %2253 = vmatprep.subr.mxu0 0.0
    %2254 = vmatpush1.msra.mxu0 0.0
    %2255 = vmatprep.subr.mxu0 0.0
    %2256 = vmatpush1.msra.mxu0 0.0
    %2257 = vmatprep.mubr.f32.mxu0 0.0
    %2258 = vmatmul.mubr.f32.gmra.mrb[0].mxu0 %v2188
    %v2259 = vpop.f32.mrb[0].mxu0
    %v2260 = vadd.f32 0.0, %v2259
    %v2261 = vpop.f32.mrb[0].mxu0
    %2262 = vdwg.mxu0
    %v2264 = vsel %vm353, %v1426, 0
    %v2267 = vsel %vm1809, %v1800, 0
    %2269 = vmatprep.subr.mxu0 0.0
    %2270 = vmatpush1.msra.mxu0 %v2267
    %2271 = vmatprep.subr.mxu0 0.0
    %2272 = vmatpush1.msra.mxu0 0.0
    %2273 = vmatprep.subr.mxu0 0.0
    %2274 = vmatpush1.msra.mxu0 0.0
    %2275 = vmatprep.subr.mxu0 0.0
    %2276 = vmatpush1.msra.mxu0 0.0
    %2277 = vmatprep.subr.mxu0 0.0
    %2278 = vmatpush1.msra.mxu0 0.0
    %2279 = vmatprep.subr.mxu0 0.0
    %2280 = vmatpush1.msra.mxu0 0.0
    %2281 = vmatprep.subr.mxu0 0.0
    %2282 = vmatpush1.msra.mxu0 0.0
    %2283 = vmatprep.subr.mxu0 0.0
    %2284 = vmatpush1.msra.mxu0 0.0
    %2285 = vmatprep.subr.mxu0 0.0
    %2286 = vmatpush1.msra.mxu0 0.0
    %2287 = vmatprep.subr.mxu0 0.0
    %2288 = vmatpush1.msra.mxu0 0.0
    %2289 = vmatprep.subr.mxu0 0.0
    %2290 = vmatpush1.msra.mxu0 0.0
    %2291 = vmatprep.subr.mxu0 0.0
    %2292 = vmatpush1.msra.mxu0 0.0
    %2293 = vmatprep.subr.mxu0 0.0
    %2294 = vmatpush1.msra.mxu0 0.0
    %2295 = vmatprep.subr.mxu0 0.0
    %2296 = vmatpush1.msra.mxu0 0.0
    %2297 = vmatprep.subr.mxu0 0.0
    %2298 = vmatpush1.msra.mxu0 0.0
    %2299 = vmatprep.subr.mxu0 0.0
    %2300 = vmatpush1.msra.mxu0 0.0
    %2301 = vmatprep.subr.mxu0 0.0
    %2302 = vmatpush1.msra.mxu0 0.0
    %2303 = vmatprep.subr.mxu0 0.0
    %2304 = vmatpush1.msra.mxu0 0.0
    %2305 = vmatprep.subr.mxu0 0.0
    %2306 = vmatpush1.msra.mxu0 0.0
    %2307 = vmatprep.subr.mxu0 0.0
    %2308 = vmatpush1.msra.mxu0 0.0
    %2309 = vmatprep.subr.mxu0 0.0
    %2310 = vmatpush1.msra.mxu0 0.0
    %2311 = vmatprep.subr.mxu0 0.0
    %2312 = vmatpush1.msra.mxu0 0.0
    %2313 = vmatprep.subr.mxu0 0.0
    %2314 = vmatpush1.msra.mxu0 0.0
    %2315 = vmatprep.subr.mxu0 0.0
    %2316 = vmatpush1.msra.mxu0 0.0
    %2317 = vmatprep.subr.mxu0 0.0
    %2318 = vmatpush1.msra.mxu0 0.0
    %2319 = vmatprep.subr.mxu0 0.0
    %2320 = vmatpush1.msra.mxu0 0.0
    %2321 = vmatprep.subr.mxu0 0.0
    %2322 = vmatpush1.msra.mxu0 0.0
    %2323 = vmatprep.subr.mxu0 0.0
    %2324 = vmatpush1.msra.mxu0 0.0
    %2325 = vmatprep.subr.mxu0 0.0
    %2326 = vmatpush1.msra.mxu0 0.0
    %2327 = vmatprep.subr.mxu0 0.0
    %2328 = vmatpush1.msra.mxu0 0.0
    %2329 = vmatprep.subr.mxu0 0.0
    %2330 = vmatpush1.msra.mxu0 0.0
    %2331 = vmatprep.subr.mxu0 0.0
    %2332 = vmatpush1.msra.mxu0 0.0
    %2333 = vmatprep.mubr.f32.mxu0 0.0
    %2334 = vmatmul.mubr.f32.gmra.mrb[0].mxu0 %v2264
    %v2335 = vpop.f32.mrb[0].mxu0
    %v2336 = vadd.f32 0.0, %v2335
    %v2337 = vpop.f32.mrb[0].mxu0
    %2338 = vdwg.mxu0
    %v2340 = vsel %vm353, %v1499, 0
    %v2343 = vsel %vm1809, %v1801, 0
    %2345 = vmatprep.subr.mxu0 0.0
    %2346 = vmatpush1.msra.mxu0 %v2343
    %2347 = vmatprep.subr.mxu0 0.0
    %2348 = vmatpush1.msra.mxu0 0.0
    %2349 = vmatprep.subr.mxu0 0.0
    %2350 = vmatpush1.msra.mxu0 0.0
    %2351 = vmatprep.subr.mxu0 0.0
    %2352 = vmatpush1.msra.mxu0 0.0
    %2353 = vmatprep.subr.mxu0 0.0
    %2354 = vmatpush1.msra.mxu0 0.0
    %2355 = vmatprep.subr.mxu0 0.0
    %2356 = vmatpush1.msra.mxu0 0.0
    %2357 = vmatprep.subr.mxu0 0.0
    %2358 = vmatpush1.msra.mxu0 0.0
    %2359 = vmatprep.subr.mxu0 0.0
    %2360 = vmatpush1.msra.mxu0 0.0
    %2361 = vmatprep.subr.mxu0 0.0
    %2362 = vmatpush1.msra.mxu0 0.0
    %2363 = vmatprep.subr.mxu0 0.0
    %2364 = vmatpush1.msra.mxu0 0.0
    %2365 = vmatprep.subr.mxu0 0.0
    %2366 = vmatpush1.msra.mxu0 0.0
    %2367 = vmatprep.subr.mxu0 0.0
    %2368 = vmatpush1.msra.mxu0 0.0
    %2369 = vmatprep.subr.mxu0 0.0
    %2370 = vmatpush1.msra.mxu0 0.0
    %2371 = vmatprep.subr.mxu0 0.0
    %2372 = vmatpush1.msra.mxu0 0.0
    %2373 = vmatprep.subr.mxu0 0.0
    %2374 = vmatpush1.msra.mxu0 0.0
    %2375 = vmatprep.subr.mxu0 0.0
    %2376 = vmatpush1.msra.mxu0 0.0
    %2377 = vmatprep.subr.mxu0 0.0
    %2378 = vmatpush1.msra.mxu0 0.0
    %2379 = vmatprep.subr.mxu0 0.0
    %2380 = vmatpush1.msra.mxu0 0.0
    %2381 = vmatprep.subr.mxu0 0.0
    %2382 = vmatpush1.msra.mxu0 0.0
    %2383 = vmatprep.subr.mxu0 0.0
    %2384 = vmatpush1.msra.mxu0 0.0
    %2385 = vmatprep.subr.mxu0 0.0
    %2386 = vmatpush1.msra.mxu0 0.0
    %2387 = vmatprep.subr.mxu0 0.0
    %2388 = vmatpush1.msra.mxu0 0.0
    %2389 = vmatprep.subr.mxu0 0.0
    %2390 = vmatpush1.msra.mxu0 0.0
    %2391 = vmatprep.subr.mxu0 0.0
    %2392 = vmatpush1.msra.mxu0 0.0
    %2393 = vmatprep.subr.mxu0 0.0
    %2394 = vmatpush1.msra.mxu0 0.0
    %2395 = vmatprep.subr.mxu0 0.0
    %2396 = vmatpush1.msra.mxu0 0.0
    %2397 = vmatprep.subr.mxu0 0.0
    %2398 = vmatpush1.msra.mxu0 0.0
    %2399 = vmatprep.subr.mxu0 0.0
    %2400 = vmatpush1.msra.mxu0 0.0
    %2401 = vmatprep.subr.mxu0 0.0
    %2402 = vmatpush1.msra.mxu0 0.0
    %2403 = vmatprep.subr.mxu0 0.0
    %2404 = vmatpush1.msra.mxu0 0.0
    %2405 = vmatprep.subr.mxu0 0.0
    %2406 = vmatpush1.msra.mxu0 0.0
    %2407 = vmatprep.subr.mxu0 0.0
    %2408 = vmatpush1.msra.mxu0 0.0
    %2409 = vmatprep.mubr.f32.mxu0 0.0
    %2410 = vmatmul.mubr.f32.gmra.mrb[0].mxu0 %v2340
    %v2411 = vpop.f32.mrb[0].mxu0
    %v2412 = vadd.f32 0.0, %v2411
    %v2413 = vpop.f32.mrb[0].mxu0
    %2414 = vdwg.mxu0
    %v2416 = vsel %vm353, %v1572, 0
    %v2419 = vsel %vm1809, %v1802, 0
    %2421 = vmatprep.subr.mxu0 0.0
    %2422 = vmatpush1.msra.mxu0 %v2419
    %2423 = vmatprep.subr.mxu0 0.0
    %2424 = vmatpush1.msra.mxu0 0.0
    %2425 = vmatprep.subr.mxu0 0.0
    %2426 = vmatpush1.msra.mxu0 0.0
    %2427 = vmatprep.subr.mxu0 0.0
    %2428 = vmatpush1.msra.mxu0 0.0
    %2429 = vmatprep.subr.mxu0 0.0
    %2430 = vmatpush1.msra.mxu0 0.0
    %2431 = vmatprep.subr.mxu0 0.0
    %2432 = vmatpush1.msra.mxu0 0.0
    %2433 = vmatprep.subr.mxu0 0.0
    %2434 = vmatpush1.msra.mxu0 0.0
    %2435 = vmatprep.subr.mxu0 0.0
    %2436 = vmatpush1.msra.mxu0 0.0
    %2437 = vmatprep.subr.mxu0 0.0
    %2438 = vmatpush1.msra.mxu0 0.0
    %2439 = vmatprep.subr.mxu0 0.0
    %2440 = vmatpush1.msra.mxu0 0.0
    %2441 = vmatprep.subr.mxu0 0.0
    %2442 = vmatpush1.msra.mxu0 0.0
    %2443 = vmatprep.subr.mxu0 0.0
    %2444 = vmatpush1.msra.mxu0 0.0
    %2445 = vmatprep.subr.mxu0 0.0
    %2446 = vmatpush1.msra.mxu0 0.0
    %2447 = vmatprep.subr.mxu0 0.0
    %2448 = vmatpush1.msra.mxu0 0.0
    %2449 = vmatprep.subr.mxu0 0.0
    %2450 = vmatpush1.msra.mxu0 0.0
    %2451 = vmatprep.subr.mxu0 0.0
    %2452 = vmatpush1.msra.mxu0 0.0
    %2453 = vmatprep.subr.mxu0 0.0
    %2454 = vmatpush1.msra.mxu0 0.0
    %2455 = vmatprep.subr.mxu0 0.0
    %2456 = vmatpush1.msra.mxu0 0.0
    %2457 = vmatprep.subr.mxu0 0.0
    %2458 = vmatpush1.msra.mxu0 0.0
    %2459 = vmatprep.subr.mxu0 0.0
    %2460 = vmatpush1.msra.mxu0 0.0
    %2461 = vmatprep.subr.mxu0 0.0
    %2462 = vmatpush1.msra.mxu0 0.0
    %2463 = vmatprep.subr.mxu0 0.0
    %2464 = vmatpush1.msra.mxu0 0.0
    %2465 = vmatprep.subr.mxu0 0.0
    %2466 = vmatpush1.msra.mxu0 0.0
    %2467 = vmatprep.subr.mxu0 0.0
    %2468 = vmatpush1.msra.mxu0 0.0
    %2469 = vmatprep.subr.mxu0 0.0
    %2470 = vmatpush1.msra.mxu0 0.0
    %2471 = vmatprep.subr.mxu0 0.0
    %2472 = vmatpush1.msra.mxu0 0.0
    %2473 = vmatprep.subr.mxu0 0.0
    %2474 = vmatpush1.msra.mxu0 0.0
    %2475 = vmatprep.subr.mxu0 0.0
    %2476 = vmatpush1.msra.mxu0 0.0
    %2477 = vmatprep.subr.mxu0 0.0
    %2478 = vmatpush1.msra.mxu0 0.0
    %2479 = vmatprep.subr.mxu0 0.0
    %2480 = vmatpush1.msra.mxu0 0.0
    %2481 = vmatprep.subr.mxu0 0.0
    %2482 = vmatpush1.msra.mxu0 0.0
    %2483 = vmatprep.subr.mxu0 0.0
    %2484 = vmatpush1.msra.mxu0 0.0
    %2485 = vmatprep.mubr.f32.mxu0 0.0
    %2486 = vmatmul.mubr.f32.gmra.mrb[0].mxu0 %v2416
    %v2487 = vpop.f32.mrb[0].mxu0
    %v2488 = vadd.f32 0.0, %v2487
    %v2489 = vpop.f32.mrb[0].mxu0
    %2490 = vdwg.mxu0
    %v2492 = vsel %vm353, %v1645, 0
    %v2495 = vsel %vm1809, %v1803, 0
    %2497 = vmatprep.subr.mxu0 0.0
    %2498 = vmatpush1.msra.mxu0 %v2495
    %2499 = vmatprep.subr.mxu0 0.0
    %2500 = vmatpush1.msra.mxu0 0.0
    %2501 = vmatprep.subr.mxu0 0.0
    %2502 = vmatpush1.msra.mxu0 0.0
    %2503 = vmatprep.subr.mxu0 0.0
    %2504 = vmatpush1.msra.mxu0 0.0
    %2505 = vmatprep.subr.mxu0 0.0
    %2506 = vmatpush1.msra.mxu0 0.0
    %2507 = vmatprep.subr.mxu0 0.0
    %2508 = vmatpush1.msra.mxu0 0.0
    %2509 = vmatprep.subr.mxu0 0.0
    %2510 = vmatpush1.msra.mxu0 0.0
    %2511 = vmatprep.subr.mxu0 0.0
    %2512 = vmatpush1.msra.mxu0 0.0
    %2513 = vmatprep.subr.mxu0 0.0
    %2514 = vmatpush1.msra.mxu0 0.0
    %2515 = vmatprep.subr.mxu0 0.0
    %2516 = vmatpush1.msra.mxu0 0.0
    %2517 = vmatprep.subr.mxu0 0.0
    %2518 = vmatpush1.msra.mxu0 0.0
    %2519 = vmatprep.subr.mxu0 0.0
    %2520 = vmatpush1.msra.mxu0 0.0
    %2521 = vmatprep.subr.mxu0 0.0
    %2522 = vmatpush1.msra.mxu0 0.0
    %2523 = vmatprep.subr.mxu0 0.0
    %2524 = vmatpush1.msra.mxu0 0.0
    %2525 = vmatprep.subr.mxu0 0.0
    %2526 = vmatpush1.msra.mxu0 0.0
    %2527 = vmatprep.subr.mxu0 0.0
    %2528 = vmatpush1.msra.mxu0 0.0
    %2529 = vmatprep.subr.mxu0 0.0
    %2530 = vmatpush1.msra.mxu0 0.0
    %2531 = vmatprep.subr.mxu0 0.0
    %2532 = vmatpush1.msra.mxu0 0.0
    %2533 = vmatprep.subr.mxu0 0.0
    %2534 = vmatpush1.msra.mxu0 0.0
    %2535 = vmatprep.subr.mxu0 0.0
    %2536 = vmatpush1.msra.mxu0 0.0
    %2537 = vmatprep.subr.mxu0 0.0
    %2538 = vmatpush1.msra.mxu0 0.0
    %2539 = vmatprep.subr.mxu0 0.0
    %2540 = vmatpush1.msra.mxu0 0.0
    %2541 = vmatprep.subr.mxu0 0.0
    %2542 = vmatpush1.msra.mxu0 0.0
    %2543 = vmatprep.subr.mxu0 0.0
    %2544 = vmatpush1.msra.mxu0 0.0
    %2545 = vmatprep.subr.mxu0 0.0
    %2546 = vmatpush1.msra.mxu0 0.0
    %2547 = vmatprep.subr.mxu0 0.0
    %2548 = vmatpush1.msra.mxu0 0.0
    %2549 = vmatprep.subr.mxu0 0.0
    %2550 = vmatpush1.msra.mxu0 0.0
    %2551 = vmatprep.subr.mxu0 0.0
    %2552 = vmatpush1.msra.mxu0 0.0
    %2553 = vmatprep.subr.mxu0 0.0
    %2554 = vmatpush1.msra.mxu0 0.0
    %2555 = vmatprep.subr.mxu0 0.0
    %2556 = vmatpush1.msra.mxu0 0.0
    %2557 = vmatprep.subr.mxu0 0.0
    %2558 = vmatpush1.msra.mxu0 0.0
    %2559 = vmatprep.subr.mxu0 0.0
    %2560 = vmatpush1.msra.mxu0 0.0
    %2561 = vmatprep.mubr.f32.mxu0 0.0
    %2562 = vmatmul.mubr.f32.gmra.mrb[0].mxu0 %v2492
    %v2563 = vpop.f32.mrb[0].mxu0
    %v2564 = vadd.f32 0.0, %v2563
    %v2565 = vpop.f32.mrb[0].mxu0
    %2566 = vdwg.mxu0
    %v2568 = vsel %vm353, %v1718, 0
    %v2571 = vsel %vm1809, %v1804, 0
    %2573 = vmatprep.subr.mxu0 0.0
    %2574 = vmatpush1.msra.mxu0 %v2571
    %2575 = vmatprep.subr.mxu0 0.0
    %2576 = vmatpush1.msra.mxu0 0.0
    %2577 = vmatprep.subr.mxu0 0.0
    %2578 = vmatpush1.msra.mxu0 0.0
    %2579 = vmatprep.subr.mxu0 0.0
    %2580 = vmatpush1.msra.mxu0 0.0
    %2581 = vmatprep.subr.mxu0 0.0
    %2582 = vmatpush1.msra.mxu0 0.0
    %2583 = vmatprep.subr.mxu0 0.0
    %2584 = vmatpush1.msra.mxu0 0.0
    %2585 = vmatprep.subr.mxu0 0.0
    %2586 = vmatpush1.msra.mxu0 0.0
    %2587 = vmatprep.subr.mxu0 0.0
    %2588 = vmatpush1.msra.mxu0 0.0
    %2589 = vmatprep.subr.mxu0 0.0
    %2590 = vmatpush1.msra.mxu0 0.0
    %2591 = vmatprep.subr.mxu0 0.0
    %2592 = vmatpush1.msra.mxu0 0.0
    %2593 = vmatprep.subr.mxu0 0.0
    %2594 = vmatpush1.msra.mxu0 0.0
    %2595 = vmatprep.subr.mxu0 0.0
    %2596 = vmatpush1.msra.mxu0 0.0
    %2597 = vmatprep.subr.mxu0 0.0
    %2598 = vmatpush1.msra.mxu0 0.0
    %2599 = vmatprep.subr.mxu0 0.0
    %2600 = vmatpush1.msra.mxu0 0.0
    %2601 = vmatprep.subr.mxu0 0.0
    %2602 = vmatpush1.msra.mxu0 0.0
    %2603 = vmatprep.subr.mxu0 0.0
    %2604 = vmatpush1.msra.mxu0 0.0
    %2605 = vmatprep.subr.mxu0 0.0
    %2606 = vmatpush1.msra.mxu0 0.0
    %2607 = vmatprep.subr.mxu0 0.0
    %2608 = vmatpush1.msra.mxu0 0.0
    %2609 = vmatprep.subr.mxu0 0.0
    %2610 = vmatpush1.msra.mxu0 0.0
    %2611 = vmatprep.subr.mxu0 0.0
    %2612 = vmatpush1.msra.mxu0 0.0
    %2613 = vmatprep.subr.mxu0 0.0
    %2614 = vmatpush1.msra.mxu0 0.0
    %2615 = vmatprep.subr.mxu0 0.0
    %2616 = vmatpush1.msra.mxu0 0.0
    %2617 = vmatprep.subr.mxu0 0.0
    %2618 = vmatpush1.msra.mxu0 0.0
    %2619 = vmatprep.subr.mxu0 0.0
    %2620 = vmatpush1.msra.mxu0 0.0
    %2621 = vmatprep.subr.mxu0 0.0
    %2622 = vmatpush1.msra.mxu0 0.0
    %2623 = vmatprep.subr.mxu0 0.0
    %2624 = vmatpush1.msra.mxu0 0.0
    %2625 = vmatprep.subr.mxu0 0.0
    %2626 = vmatpush1.msra.mxu0 0.0
    %2627 = vmatprep.subr.mxu0 0.0
    %2628 = vmatpush1.msra.mxu0 0.0
    %2629 = vmatprep.subr.mxu0 0.0
    %2630 = vmatpush1.msra.mxu0 0.0
    %2631 = vmatprep.subr.mxu0 0.0
    %2632 = vmatpush1.msra.mxu0 0.0
    %2633 = vmatprep.subr.mxu0 0.0
    %2634 = vmatpush1.msra.mxu0 0.0
    %2635 = vmatprep.subr.mxu0 0.0
    %2636 = vmatpush1.msra.mxu0 0.0
    %2637 = vmatprep.mubr.f32.mxu0 0.0
    %2638 = vmatmul.mubr.f32.gmra.mrb[0].mxu0 %v2568
    %v2639 = vpop.f32.mrb[0].mxu0
    %v2640 = vadd.f32 0.0, %v2639
    %v2641 = vpop.f32.mrb[0].mxu0
    %2642 = vdwg.mxu0
    %v2644 = vsel %vm353, %v1791, 0
    %v2647 = vsel %vm1809, %v1805, 0
    %2649 = vmatprep.subr.mxu0 0.0
    %2650 = vmatpush1.msra.mxu0 %v2647
    %2651 = vmatprep.subr.mxu0 0.0
    %2652 = vmatpush1.msra.mxu0 0.0
    %2653 = vmatprep.subr.mxu0 0.0
    %2654 = vmatpush1.msra.mxu0 0.0
    %2655 = vmatprep.subr.mxu0 0.0
    %2656 = vmatpush1.msra.mxu0 0.0
    %2657 = vmatprep.subr.mxu0 0.0
    %2658 = vmatpush1.msra.mxu0 0.0
    %2659 = vmatprep.subr.mxu0 0.0
    %2660 = vmatpush1.msra.mxu0 0.0
    %2661 = vmatprep.subr.mxu0 0.0
    %2662 = vmatpush1.msra.mxu0 0.0
    %2663 = vmatprep.subr.mxu0 0.0
    %2664 = vmatpush1.msra.mxu0 0.0
    %2665 = vmatprep.subr.mxu0 0.0
    %2666 = vmatpush1.msra.mxu0 0.0
    %2667 = vmatprep.subr.mxu0 0.0
    %2668 = vmatpush1.msra.mxu0 0.0
    %2669 = vmatprep.subr.mxu0 0.0
    %2670 = vmatpush1.msra.mxu0 0.0
    %2671 = vmatprep.subr.mxu0 0.0
    %2672 = vmatpush1.msra.mxu0 0.0
    %2673 = vmatprep.subr.mxu0 0.0
    %2674 = vmatpush1.msra.mxu0 0.0
    %2675 = vmatprep.subr.mxu0 0.0
    %2676 = vmatpush1.msra.mxu0 0.0
    %2677 = vmatprep.subr.mxu0 0.0
    %2678 = vmatpush1.msra.mxu0 0.0
    %2679 = vmatprep.subr.mxu0 0.0
    %2680 = vmatpush1.msra.mxu0 0.0
    %2681 = vmatprep.subr.mxu0 0.0
    %2682 = vmatpush1.msra.mxu0 0.0
    %2683 = vmatprep.subr.mxu0 0.0
    %2684 = vmatpush1.msra.mxu0 0.0
    %2685 = vmatprep.subr.mxu0 0.0
    %2686 = vmatpush1.msra.mxu0 0.0
    %2687 = vmatprep.subr.mxu0 0.0
    %2688 = vmatpush1.msra.mxu0 0.0
    %2689 = vmatprep.subr.mxu0 0.0
    %2690 = vmatpush1.msra.mxu0 0.0
    %2691 = vmatprep.subr.mxu0 0.0
    %2692 = vmatpush1.msra.mxu0 0.0
    %2693 = vmatprep.subr.mxu0 0.0
    %2694 = vmatpush1.msra.mxu0 0.0
    %2695 = vmatprep.subr.mxu0 0.0
    %2696 = vmatpush1.msra.mxu0 0.0
    %2697 = vmatprep.subr.mxu0 0.0
    %2698 = vmatpush1.msra.mxu0 0.0
    %2699 = vmatprep.subr.mxu0 0.0
    %2700 = vmatpush1.msra.mxu0 0.0
    %2701 = vmatprep.subr.mxu0 0.0
    %2702 = vmatpush1.msra.mxu0 0.0
    %2703 = vmatprep.subr.mxu0 0.0
    %2704 = vmatpush1.msra.mxu0 0.0
    %2705 = vmatprep.subr.mxu0 0.0
    %2706 = vmatpush1.msra.mxu0 0.0
    %2707 = vmatprep.subr.mxu0 0.0
    %2708 = vmatpush1.msra.mxu0 0.0
    %2709 = vmatprep.subr.mxu0 0.0
    %2710 = vmatpush1.msra.mxu0 0.0
    %2711 = vmatprep.subr.mxu0 0.0
    %2712 = vmatpush1.msra.mxu0 0.0
    %2713 = vmatprep.mubr.f32.mxu0 0.0
    %2714 = vmatmul.mubr.f32.gmra.mrb[0].mxu0 %v2644
    %v2715 = vpop.f32.mrb[0].mxu0
    %v2716 = vadd.f32 0.0, %v2715
    %v2717 = vpop.f32.mrb[0].mxu0
    %2718 = vdwg.mxu0
    %vm2719 = vcmask 261120
    %v2720 = vsel %vm2719, %v1880, 0.0
    %v2721 = vsel %vm2719, %v1956, 0.0
    %v2722 = vadd.f32 %v2720, %v2721
    %v2723 = vsel %vm2719, %v2032, 0.0
    %v2724 = vadd.f32 %v2722, %v2723
    %v2725 = vsel %vm2719, %v2108, 0.0
    %v2726 = vadd.f32 %v2724, %v2725
    %v2727 = vsel %vm2719, %v2184, 0.0
    %v2728 = vadd.f32 %v2726, %v2727
    %v2729 = vsel %vm2719, %v2260, 0.0
    %v2730 = vadd.f32 %v2728, %v2729
    %v2731 = vsel %vm2719, %v2336, 0.0
    %v2732 = vadd.f32 %v2730, %v2731
    %v2733 = vsel %vm2719, %v2412, 0.0
    %v2734 = vadd.f32 %v2732, %v2733
    %v2735 = vsel %vm2719, %v2488, 0.0
    %v2736 = vadd.f32 %v2734, %v2735
    %v2737 = vsel %vm2719, %v2564, 0.0
    %v2738 = vadd.f32 %v2736, %v2737
    %v2739 = vsel %vm2719, %v2640, 0.0
    %v2740 = vadd.f32 %v2738, %v2739
    %v2741 = vsel %vm2719, %v2716, 0.0
    %v2742 = vadd.f32 %v2740, %v2741
    %v2743 = vld [vmem:[%s8] sm:$0x1]
    %v2744 = vlaneseq
    %v2745 = vshrl.u32 %v2744, 7
    %v2746 = vsub.s32 0, %v2745
    %v2747 = vrot.slane %v2743, %v2746
    %v2748 = vadd.f32 %v2742, %v2747
    %v2749 = vmax.f32 %v2748, 0.0
    %s2750 = scalar_lea.vmem %s2, 96
    %v2751 = vld [vmem:[%s2750] sm:$0xff]
    %v2752 = vld [vmem:[%s4] sm:$0xff]
    %v2753 = vld [vmem:[%s4 + $0x8] sm:$0xff]
    %v2754 = vld [vmem:[%s4 + $0x10] sm:$0xff]
    %v2755 = vld [vmem:[%s4 + $0x18] sm:$0xff]
    %v2757 = vsel %vm2719, %v2749, 0
    %2759 = vmatprep.subr.mxu0 0.0
    %2760 = vmatpush1.msra.mxu0 %v2752
    %2761 = vmatprep.subr.mxu0 0.0
    %2762 = vmatpush1.msra.mxu0 %v2753
    %2763 = vmatprep.subr.mxu0 0.0
    %2764 = vmatpush1.msra.mxu0 %v2754
    %2765 = vmatprep.subr.mxu0 0.0
    %2766 = vmatpush1.msra.mxu0 %v2755
    %2767 = vmatprep.subr.mxu0 0.0
    %2768 = vmatpush1.msra.mxu0 0.0
    %2769 = vmatprep.subr.mxu0 0.0
    %2770 = vmatpush1.msra.mxu0 0.0
    %2771 = vmatprep.subr.mxu0 0.0
    %2772 = vmatpush1.msra.mxu0 0.0
    %2773 = vmatprep.subr.mxu0 0.0
    %2774 = vmatpush1.msra.mxu0 0.0
    %2775 = vmatprep.subr.mxu0 0.0
    %2776 = vmatpush1.msra.mxu0 0.0
    %2777 = vmatprep.subr.mxu0 0.0
    %2778 = vmatpush1.msra.mxu0 0.0
    %2779 = vmatprep.subr.mxu0 0.0
    %2780 = vmatpush1.msra.mxu0 0.0
    %2781 = vmatprep.subr.mxu0 0.0
    %2782 = vmatpush1.msra.mxu0 0.0
    %2783 = vmatprep.subr.mxu0 0.0
    %2784 = vmatpush1.msra.mxu0 0.0
    %2785 = vmatprep.subr.mxu0 0.0
    %2786 = vmatpush1.msra.mxu0 0.0
    %2787 = vmatprep.subr.mxu0 0.0
    %2788 = vmatpush1.msra.mxu0 0.0
    %2789 = vmatprep.subr.mxu0 0.0
    %2790 = vmatpush1.msra.mxu0 0.0
    %2791 = vmatprep.subr.mxu0 0.0
    %2792 = vmatpush1.msra.mxu0 0.0
    %2793 = vmatprep.subr.mxu0 0.0
    %2794 = vmatpush1.msra.mxu0 0.0
    %2795 = vmatprep.subr.mxu0 0.0
    %2796 = vmatpush1.msra.mxu0 0.0
    %2797 = vmatprep.subr.mxu0 0.0
    %2798 = vmatpush1.msra.mxu0 0.0
    %2799 = vmatprep.subr.mxu0 0.0
    %2800 = vmatpush1.msra.mxu0 0.0
    %2801 = vmatprep.subr.mxu0 0.0
    %2802 = vmatpush1.msra.mxu0 0.0
    %2803 = vmatprep.subr.mxu0 0.0
    %2804 = vmatpush1.msra.mxu0 0.0
    %2805 = vmatprep.subr.mxu0 0.0
    %2806 = vmatpush1.msra.mxu0 0.0
    %2807 = vmatprep.subr.mxu0 0.0
    %2808 = vmatpush1.msra.mxu0 0.0
    %2809 = vmatprep.subr.mxu0 0.0
    %2810 = vmatpush1.msra.mxu0 0.0
    %2811 = vmatprep.subr.mxu0 0.0
    %2812 = vmatpush1.msra.mxu0 0.0
    %2813 = vmatprep.subr.mxu0 0.0
    %2814 = vmatpush1.msra.mxu0 0.0
    %2815 = vmatprep.subr.mxu0 0.0
    %2816 = vmatpush1.msra.mxu0 0.0
    %2817 = vmatprep.subr.mxu0 0.0
    %2818 = vmatpush1.msra.mxu0 0.0
    %2819 = vmatprep.subr.mxu0 0.0
    %2820 = vmatpush1.msra.mxu0 0.0
    %2821 = vmatprep.subr.mxu0 0.0
    %2822 = vmatpush1.msra.mxu0 0.0
    %2823 = vmatprep.mubr.f32.mxu0 0.0
    %2824 = vmatmul.mubr.f32.gmra.mrb[0].mxu0 %v2757
    %v2825 = vpop.f32.mrb[0].mxu0
    %v2826 = vadd.f32 0.0, %v2825
    %v2827 = vpop.f32.mrb[0].mxu0
    %2828 = vdwg.mxu0
    %2830 = vrot.lane.b32.xlu0 %v2826, 120
    %v2831 = vpop.permute.xlu0 %2830
    %2833 = vrot.lane.b32.xlu0 %v2826, 112
    %v2834 = vpop.permute.xlu0 %2833
    %2836 = vrot.lane.b32.xlu0 %v2826, 104
    %v2837 = vpop.permute.xlu0 %2836
    %v2839 = vld [vmem:[%s5] sm:$0xf]
    %s2840 = scalar_lea.vmem %s5, 4
    %v2841 = vld [vmem:[%s2840] sm:$0xf]
    %v2844 = vunpack.c.l.s4 1966171168
    %v2845 = vunpack.c.0.s8 %v2844
    %v2846 = vlaneseq
    %v2847 = vshrl.u32 %v2846, 7
    %v2848 = vsub.s32 %v2845, %v2847
    %v2849 = vrot.slane %v2841, %v2848
    %v2850 = vcombine.high %v2849, %v2849
    %v2852 = vunpack.c.l.s4 1966171168
    %v2853 = vunpack.c.0.s8 %v2852
    %v2854 = vlaneseq
    %v2855 = vshrl.u32 %v2854, 7
    %v2856 = vsub.s32 %v2853, %v2855
    %v2857 = vrot.slane %v2849, %v2856
    %v2859 = vunpack.c.l.s4 1966171168
    %v2860 = vunpack.c.0.s8 %v2859
    %v2861 = vlaneseq
    %v2862 = vshrl.u32 %v2861, 7
    %v2863 = vsub.s32 %v2860, %v2862
    %v2864 = vrot.slane %v2850, %v2863
    %v2865 = vcombine.high %v2857, %v2857
    %v2866 = vcombine.high %v2864, %v2864
    %v2867 = vlaneseq
    %v2868 = vshrl.u32 %v2867, 7
    %v2869 = vsub.s32 0, %v2868
    %v2870 = vrot.slane %v2857, %v2869
    %v2871 = vlaneseq
    %v2872 = vshrl.u32 %v2871, 7
    %v2873 = vsub.s32 0, %v2872
    %v2874 = vrot.slane %v2864, %v2873
    %v2875 = vlaneseq
    %v2876 = vshrl.u32 %v2875, 7
    %v2877 = vsub.s32 0, %v2876
    %v2878 = vrot.slane %v2865, %v2877
    %v2879 = vlaneseq
    %v2880 = vshrl.u32 %v2879, 7
    %v2881 = vsub.s32 0, %v2880
    %v2882 = vrot.slane %v2866, %v2881
    %v2887 = vmul.f32 %v2826, %v2870
    %v2888 = vmul.f32 %v2831, %v2874
    %v2889 = vmul.f32 %v2834, %v2878
    %v2890 = vmul.f32 %v2837, %v2882
    %v2891 = vsel %vm785, %v2887, 0.0
    %2892 = vadd.xlane.f32.xlu0 %v2891
    %v2893 = vpop.xlane.xlu0 %2892
    %v2894 = vsel %vm785, %v2888, 0.0
    %2895 = vadd.xlane.f32.xlu0 %v2894
    %v2896 = vpop.xlane.xlu0 %2895
    %v2897 = vsel %vm785, %v2889, 0.0
    %2898 = vadd.xlane.f32.xlu0 %v2897
    %v2899 = vpop.xlane.xlu0 %2898
    %v2900 = vsel %vm785, %v2890, 0.0
    %2901 = vadd.xlane.f32.xlu0 %v2900
    %v2902 = vpop.xlane.xlu0 %2901
    %v2905 = vunpack.c.l.s4 1966171168
    %v2906 = vunpack.c.0.s8 %v2905
    %v2907 = vlaneseq
    %v2908 = vshrl.u32 %v2907, 7
    %v2909 = vsub.s32 %v2906, %v2908
    %v2910 = vrot.slane %v2839, %v2909
    %v2911 = vcombine.high %v2910, %v2910
    %v2913 = vunpack.c.l.s4 1966171168
    %v2914 = vunpack.c.0.s8 %v2913
    %v2915 = vlaneseq
    %v2916 = vshrl.u32 %v2915, 7
    %v2917 = vsub.s32 %v2914, %v2916
    %v2918 = vrot.slane %v2910, %v2917
    %v2920 = vunpack.c.l.s4 1966171168
    %v2921 = vunpack.c.0.s8 %v2920
    %v2922 = vlaneseq
    %v2923 = vshrl.u32 %v2922, 7
    %v2924 = vsub.s32 %v2921, %v2923
    %v2925 = vrot.slane %v2911, %v2924
    %v2926 = vcombine.high %v2918, %v2918
    %v2927 = vcombine.high %v2925, %v2925
    %v2928 = vlaneseq
    %v2929 = vshrl.u32 %v2928, 7
    %v2930 = vsub.s32 0, %v2929
    %v2931 = vrot.slane %v2918, %v2930
    %v2932 = vlaneseq
    %v2933 = vshrl.u32 %v2932, 7
    %v2934 = vsub.s32 0, %v2933
    %v2935 = vrot.slane %v2925, %v2934
    %v2936 = vlaneseq
    %v2937 = vshrl.u32 %v2936, 7
    %v2938 = vsub.s32 0, %v2937
    %v2939 = vrot.slane %v2926, %v2938
    %v2940 = vlaneseq
    %v2941 = vshrl.u32 %v2940, 7
    %v2942 = vsub.s32 0, %v2941
    %v2943 = vrot.slane %v2927, %v2942
    %v2948 = vmul.f32 %v2826, %v2931
    %v2949 = vmul.f32 %v2831, %v2935
    %v2950 = vmul.f32 %v2834, %v2939
    %v2951 = vmul.f32 %v2837, %v2943
    %v2952 = vsel %vm785, %v2948, 0.0
    %2953 = vadd.xlane.f32.xlu0 %v2952
    %v2954 = vpop.xlane.xlu0 %2953
    %v2955 = vsel %vm785, %v2949, 0.0
    %2956 = vadd.xlane.f32.xlu0 %v2955
    %v2957 = vpop.xlane.xlu0 %2956
    %v2958 = vsel %vm785, %v2950, 0.0
    %2959 = vadd.xlane.f32.xlu0 %v2958
    %v2960 = vpop.xlane.xlu0 %2959
    %v2961 = vsel %vm785, %v2951, 0.0
    %2962 = vadd.xlane.f32.xlu0 %v2961
    %v2963 = vpop.xlane.xlu0 %2962
    %v2968 = vlaneseq
    %v2969 = vshrl.u32 %v2968, 7
    %v2970 = vsub.s32 %v586, %v2969
    %v2971 = vrot.slane %v2954, %v2970
    %v2972 = vlaneseq
    %v2973 = vshrl.u32 %v2972, 7
    %v2974 = vsub.s32 %v586, %v2973
    %v2975 = vrot.slane %v2957, %v2974
    %v2976 = vlaneseq
    %v2977 = vshrl.u32 %v2976, 7
    %v2978 = vsub.s32 %v586, %v2977
    %v2979 = vrot.slane %v2960, %v2978
    %v2980 = vlaneseq
    %v2981 = vshrl.u32 %v2980, 7
    %v2982 = vsub.s32 %v586, %v2981
    %v2983 = vrot.slane %v2963, %v2982
    %v2984 = vsel %vm635, %v2971, %v2971
    %v2985 = vsel %vm637, %v2971, %v2984
    %v2986 = vsel %vm639, %v2971, %v2985
    %v2987 = vsel %vm641, %v2971, %v2986
    %v2988 = vsel %vm643, %v2971, %v2987
    %v2989 = vsel %vm645, %v2971, %v2988
    %v2990 = vsel %vm635, %v2975, %v2975
    %v2991 = vsel %vm637, %v2975, %v2990
    %v2992 = vsel %vm639, %v2975, %v2991
    %v2993 = vsel %vm641, %v2975, %v2992
    %v2994 = vsel %vm643, %v2975, %v2993
    %v2995 = vsel %vm645, %v2975, %v2994
    %v2996 = vsel %vm635, %v2979, %v2979
    %v2997 = vsel %vm637, %v2979, %v2996
    %v2998 = vsel %vm639, %v2979, %v2997
    %v2999 = vsel %vm641, %v2979, %v2998
    %v3000 = vsel %vm643, %v2979, %v2999
    %v3001 = vsel %vm645, %v2979, %v3000
    %v3002 = vsel %vm635, %v2983, %v2983
    %v3003 = vsel %vm637, %v2983, %v3002
    %v3004 = vsel %vm639, %v2983, %v3003
    %v3005 = vsel %vm641, %v2983, %v3004
    %v3006 = vsel %vm643, %v2983, %v3005
    %v3007 = vsel %vm645, %v2983, %v3006
    %v3012 = vadd.f32 %v2893, %v2989
    %v3013 = vadd.f32 %v2896, %v2995
    %v3014 = vadd.f32 %v2899, %v3001
    %v3015 = vadd.f32 %v2902, %v3007
    %v3016 = vadd.f32 %v3012, %v2751
    %v3017 = vadd.f32 %v3013, %v2751
    %v3018 = vadd.f32 %v3014, %v2751
    %v3019 = vadd.f32 %v3015, %v2751
    %vm3020 = vcmp.ge.f32.partialorder %v3016, 0.0
    %vm3021 = vcmp.ge.f32.partialorder %v3017, 0.0
    %vm3022 = vcmp.ge.f32.partialorder %v3018, 0.0
    %vm3023 = vcmp.ge.f32.partialorder %v3019, 0.0
    %v3024 = vmul.f32 %v3016, 0.2
    %v3025 = vmul.f32 %v3017, 0.2
    %v3026 = vmul.f32 %v3018, 0.2
    %v3027 = vmul.f32 %v3019, 0.2
    %v3028 = vsel %vm3020, %v3016, %v3024
    %v3029 = vsel %vm3021, %v3017, %v3025
    %v3030 = vsel %vm3022, %v3018, %v3026
    %v3031 = vsel %vm3023, %v3019, %v3027
    %v3032 = vsel %vm785, %v3028, -inf
    %3033 = vmax.xlane.f32.xlu0 %v3032
    %v3034 = vpop.xlane.xlu0 %3033
    %v3035 = vsel %vm785, %v3029, -inf
    %3036 = vmax.xlane.f32.xlu0 %v3035
    %v3037 = vpop.xlane.xlu0 %3036
    %v3038 = vsel %vm785, %v3030, -inf
    %3039 = vmax.xlane.f32.xlu0 %v3038
    %v3040 = vpop.xlane.xlu0 %3039
    %v3041 = vsel %vm785, %v3031, -inf
    %3042 = vmax.xlane.f32.xlu0 %v3041
    %v3043 = vpop.xlane.xlu0 %3042
    %v3044 = vsub.f32 %v3028, %v3034
    %v3045 = vsub.f32 %v3029, %v3037
    %v3046 = vsub.f32 %v3030, %v3040
    %v3047 = vsub.f32 %v3031, %v3043
    %v3048 = vmul.f32 %v3044, 1.442695
    %v3049 = vpow.pop %v3048
    %v3050 = vmul.f32 %v3045, 1.442695
    %v3051 = vpow.pop %v3050
    %v3052 = vmul.f32 %v3046, 1.442695
    %v3053 = vpow.pop %v3052
    %v3054 = vmul.f32 %v3047, 1.442695
    %v3055 = vpow.pop %v3054
    %v3056 = vsel %vm785, %v3049, 0.0
    %3057 = vadd.xlane.f32.xlu0 %v3056
    %v3058 = vpop.xlane.xlu0 %3057
    %v3059 = vsel %vm785, %v3051, 0.0
    %3060 = vadd.xlane.f32.xlu0 %v3059
    %v3061 = vpop.xlane.xlu0 %3060
    %v3062 = vsel %vm785, %v3053, 0.0
    %3063 = vadd.xlane.f32.xlu0 %v3062
    %v3064 = vpop.xlane.xlu0 %3063
    %v3065 = vsel %vm785, %v3055, 0.0
    %3066 = vadd.xlane.f32.xlu0 %v3065
    %v3067 = vpop.xlane.xlu0 %3066
    %v3068 = vrcp.pop %v3058
    %v3069 = vrcp.pop %v3061
    %v3070 = vrcp.pop %v3064
    %v3071 = vrcp.pop %v3067
    %v3072 = vmul.f32 %v3049, %v3068
    %v3073 = vmul.f32 %v3051, %v3069
    %v3074 = vmul.f32 %v3053, %v3070
    %v3075 = vmul.f32 %v3055, %v3071
    %s3076 = scalar_lea.vmem %s5, 8
    %v3077 = vld [vmem:[%s3076] sm:$0xf]
    %v3080 = vunpack.c.l.s4 1966171168
    %v3081 = vunpack.c.0.s8 %v3080
    %v3082 = vlaneseq
    %v3083 = vshrl.u32 %v3082, 7
    %v3084 = vsub.s32 %v3081, %v3083
    %v3085 = vrot.slane %v3077, %v3084
    %v3086 = vcombine.high %v3085, %v3085
    %v3088 = vunpack.c.l.s4 1966171168
    %v3089 = vunpack.c.0.s8 %v3088
    %v3090 = vlaneseq
    %v3091 = vshrl.u32 %v3090, 7
    %v3092 = vsub.s32 %v3089, %v3091
    %v3093 = vrot.slane %v3085, %v3092
    %v3095 = vunpack.c.l.s4 1966171168
    %v3096 = vunpack.c.0.s8 %v3095
    %v3097 = vlaneseq
    %v3098 = vshrl.u32 %v3097, 7
    %v3099 = vsub.s32 %v3096, %v3098
    %v3100 = vrot.slane %v3086, %v3099
    %v3101 = vcombine.high %v3093, %v3093
    %v3102 = vcombine.high %v3100, %v3100
    %v3103 = vlaneseq
    %v3104 = vshrl.u32 %v3103, 7
    %v3105 = vsub.s32 0, %v3104
    %v3106 = vrot.slane %v3093, %v3105
    %v3107 = vlaneseq
    %v3108 = vshrl.u32 %v3107, 7
    %v3109 = vsub.s32 0, %v3108
    %v3110 = vrot.slane %v3100, %v3109
    %v3111 = vlaneseq
    %v3112 = vshrl.u32 %v3111, 7
    %v3113 = vsub.s32 0, %v3112
    %v3114 = vrot.slane %v3101, %v3113
    %v3115 = vlaneseq
    %v3116 = vshrl.u32 %v3115, 7
    %v3117 = vsub.s32 0, %v3116
    %v3118 = vrot.slane %v3102, %v3117
    %v3124 = vsel %vm785, %v3072, 0
    %3126 = vmatprep.subr.mxu0 0.0
    %3127 = vmatpush1.msra.mxu0 %v2826
    %3128 = vmatprep.subr.mxu0 0.0
    %3129 = vmatpush1.msra.mxu0 0.0
    %3130 = vmatprep.subr.mxu0 0.0
    %3131 = vmatpush1.msra.mxu0 0.0
    %3132 = vmatprep.subr.mxu0 0.0
    %3133 = vmatpush1.msra.mxu0 0.0
    %3134 = vmatprep.subr.mxu0 0.0
    %3135 = vmatpush1.msra.mxu0 0.0
    %3136 = vmatprep.subr.mxu0 0.0
    %3137 = vmatpush1.msra.mxu0 0.0
    %3138 = vmatprep.subr.mxu0 0.0
    %3139 = vmatpush1.msra.mxu0 0.0
    %3140 = vmatprep.subr.mxu0 0.0
    %3141 = vmatpush1.msra.mxu0 0.0
    %3142 = vmatprep.subr.mxu0 0.0
    %3143 = vmatpush1.msra.mxu0 0.0
    %3144 = vmatprep.subr.mxu0 0.0
    %3145 = vmatpush1.msra.mxu0 0.0
    %3146 = vmatprep.subr.mxu0 0.0
    %3147 = vmatpush1.msra.mxu0 0.0
    %3148 = vmatprep.subr.mxu0 0.0
    %3149 = vmatpush1.msra.mxu0 0.0
    %3150 = vmatprep.subr.mxu0 0.0
    %3151 = vmatpush1.msra.mxu0 0.0
    %3152 = vmatprep.subr.mxu0 0.0
    %3153 = vmatpush1.msra.mxu0 0.0
    %3154 = vmatprep.subr.mxu0 0.0
    %3155 = vmatpush1.msra.mxu0 0.0
    %3156 = vmatprep.subr.mxu0 0.0
    %3157 = vmatpush1.msra.mxu0 0.0
    %3158 = vmatprep.subr.mxu0 0.0
    %3159 = vmatpush1.msra.mxu0 0.0
    %3160 = vmatprep.subr.mxu0 0.0
    %3161 = vmatpush1.msra.mxu0 0.0
    %3162 = vmatprep.subr.mxu0 0.0
    %3163 = vmatpush1.msra.mxu0 0.0
    %3164 = vmatprep.subr.mxu0 0.0
    %3165 = vmatpush1.msra.mxu0 0.0
    %3166 = vmatprep.subr.mxu0 0.0
    %3167 = vmatpush1.msra.mxu0 0.0
    %3168 = vmatprep.subr.mxu0 0.0
    %3169 = vmatpush1.msra.mxu0 0.0
    %3170 = vmatprep.subr.mxu0 0.0
    %3171 = vmatpush1.msra.mxu0 0.0
    %3172 = vmatprep.subr.mxu0 0.0
    %3173 = vmatpush1.msra.mxu0 0.0
    %3174 = vmatprep.subr.mxu0 0.0
    %3175 = vmatpush1.msra.mxu0 0.0
    %3176 = vmatprep.subr.mxu0 0.0
    %3177 = vmatpush1.msra.mxu0 0.0
    %3178 = vmatprep.subr.mxu0 0.0
    %3179 = vmatpush1.msra.mxu0 0.0
    %3180 = vmatprep.subr.mxu0 0.0
    %3181 = vmatpush1.msra.mxu0 0.0
    %3182 = vmatprep.subr.mxu0 0.0
    %3183 = vmatpush1.msra.mxu0 0.0
    %3184 = vmatprep.subr.mxu0 0.0
    %3185 = vmatpush1.msra.mxu0 0.0
    %3186 = vmatprep.subr.mxu0 0.0
    %3187 = vmatpush1.msra.mxu0 0.0
    %3188 = vmatprep.subr.mxu0 0.0
    %3189 = vmatpush1.msra.mxu0 0.0
    %3190 = vmatprep.mubr.f32.mxu0 0.0
    %3191 = vmatmul.mubr.f32.gmra.mrb[0].mxu0 %v3124
    %v3192 = vpop.f32.mrb[0].mxu0
    %v3193 = vadd.f32 %v3106, %v3192
    %v3194 = vpop.f32.mrb[0].mxu0
    %3195 = vdwg.mxu0
    %v3197 = vsel %vm785, %v3073, 0
    %3199 = vmatprep.subr.mxu0 0.0
    %3200 = vmatpush1.msra.mxu0 %v2831
    %3201 = vmatprep.subr.mxu0 0.0
    %3202 = vmatpush1.msra.mxu0 0.0
    %3203 = vmatprep.subr.mxu0 0.0
    %3204 = vmatpush1.msra.mxu0 0.0
    %3205 = vmatprep.subr.mxu0 0.0
    %3206 = vmatpush1.msra.mxu0 0.0
    %3207 = vmatprep.subr.mxu0 0.0
    %3208 = vmatpush1.msra.mxu0 0.0
    %3209 = vmatprep.subr.mxu0 0.0
    %3210 = vmatpush1.msra.mxu0 0.0
    %3211 = vmatprep.subr.mxu0 0.0
    %3212 = vmatpush1.msra.mxu0 0.0
    %3213 = vmatprep.subr.mxu0 0.0
    %3214 = vmatpush1.msra.mxu0 0.0
    %3215 = vmatprep.subr.mxu0 0.0
    %3216 = vmatpush1.msra.mxu0 0.0
    %3217 = vmatprep.subr.mxu0 0.0
    %3218 = vmatpush1.msra.mxu0 0.0
    %3219 = vmatprep.subr.mxu0 0.0
    %3220 = vmatpush1.msra.mxu0 0.0
    %3221 = vmatprep.subr.mxu0 0.0
    %3222 = vmatpush1.msra.mxu0 0.0
    %3223 = vmatprep.subr.mxu0 0.0
    %3224 = vmatpush1.msra.mxu0 0.0
    %3225 = vmatprep.subr.mxu0 0.0
    %3226 = vmatpush1.msra.mxu0 0.0
    %3227 = vmatprep.subr.mxu0 0.0
    %3228 = vmatpush1.msra.mxu0 0.0
    %3229 = vmatprep.subr.mxu0 0.0
    %3230 = vmatpush1.msra.mxu0 0.0
    %3231 = vmatprep.subr.mxu0 0.0
    %3232 = vmatpush1.msra.mxu0 0.0
    %3233 = vmatprep.subr.mxu0 0.0
    %3234 = vmatpush1.msra.mxu0 0.0
    %3235 = vmatprep.subr.mxu0 0.0
    %3236 = vmatpush1.msra.mxu0 0.0
    %3237 = vmatprep.subr.mxu0 0.0
    %3238 = vmatpush1.msra.mxu0 0.0
    %3239 = vmatprep.subr.mxu0 0.0
    %3240 = vmatpush1.msra.mxu0 0.0
    %3241 = vmatprep.subr.mxu0 0.0
    %3242 = vmatpush1.msra.mxu0 0.0
    %3243 = vmatprep.subr.mxu0 0.0
    %3244 = vmatpush1.msra.mxu0 0.0
    %3245 = vmatprep.subr.mxu0 0.0
    %3246 = vmatpush1.msra.mxu0 0.0
    %3247 = vmatprep.subr.mxu0 0.0
    %3248 = vmatpush1.msra.mxu0 0.0
    %3249 = vmatprep.subr.mxu0 0.0
    %3250 = vmatpush1.msra.mxu0 0.0
    %3251 = vmatprep.subr.mxu0 0.0
    %3252 = vmatpush1.msra.mxu0 0.0
    %3253 = vmatprep.subr.mxu0 0.0
    %3254 = vmatpush1.msra.mxu0 0.0
    %3255 = vmatprep.subr.mxu0 0.0
    %3256 = vmatpush1.msra.mxu0 0.0
    %3257 = vmatprep.subr.mxu0 0.0
    %3258 = vmatpush1.msra.mxu0 0.0
    %3259 = vmatprep.subr.mxu0 0.0
    %3260 = vmatpush1.msra.mxu0 0.0
    %3261 = vmatprep.subr.mxu0 0.0
    %3262 = vmatpush1.msra.mxu0 0.0
    %3263 = vmatprep.mubr.f32.mxu0 0.0
    %3264 = vmatmul.mubr.f32.gmra.mrb[0].mxu0 %v3197
    %v3265 = vpop.f32.mrb[0].mxu0
    %v3266 = vadd.f32 %v3110, %v3265
    %v3267 = vpop.f32.mrb[0].mxu0
    %3268 = vdwg.mxu0
    %v3270 = vsel %vm785, %v3074, 0
    %3272 = vmatprep.subr.mxu0 0.0
    %3273 = vmatpush1.msra.mxu0 %v2834
    %3274 = vmatprep.subr.mxu0 0.0
    %3275 = vmatpush1.msra.mxu0 0.0
    %3276 = vmatprep.subr.mxu0 0.0
    %3277 = vmatpush1.msra.mxu0 0.0
    %3278 = vmatprep.subr.mxu0 0.0
    %3279 = vmatpush1.msra.mxu0 0.0
    %3280 = vmatprep.subr.mxu0 0.0
    %3281 = vmatpush1.msra.mxu0 0.0
    %3282 = vmatprep.subr.mxu0 0.0
    %3283 = vmatpush1.msra.mxu0 0.0
    %3284 = vmatprep.subr.mxu0 0.0
    %3285 = vmatpush1.msra.mxu0 0.0
    %3286 = vmatprep.subr.mxu0 0.0
    %3287 = vmatpush1.msra.mxu0 0.0
    %3288 = vmatprep.subr.mxu0 0.0
    %3289 = vmatpush1.msra.mxu0 0.0
    %3290 = vmatprep.subr.mxu0 0.0
    %3291 = vmatpush1.msra.mxu0 0.0
    %3292 = vmatprep.subr.mxu0 0.0
    %3293 = vmatpush1.msra.mxu0 0.0
    %3294 = vmatprep.subr.mxu0 0.0
    %3295 = vmatpush1.msra.mxu0 0.0
    %3296 = vmatprep.subr.mxu0 0.0
    %3297 = vmatpush1.msra.mxu0 0.0
    %3298 = vmatprep.subr.mxu0 0.0
    %3299 = vmatpush1.msra.mxu0 0.0
    %3300 = vmatprep.subr.mxu0 0.0
    %3301 = vmatpush1.msra.mxu0 0.0
    %3302 = vmatprep.subr.mxu0 0.0
    %3303 = vmatpush1.msra.mxu0 0.0
    %3304 = vmatprep.subr.mxu0 0.0
    %3305 = vmatpush1.msra.mxu0 0.0
    %3306 = vmatprep.subr.mxu0 0.0
    %3307 = vmatpush1.msra.mxu0 0.0
    %3308 = vmatprep.subr.mxu0 0.0
    %3309 = vmatpush1.msra.mxu0 0.0
    %3310 = vmatprep.subr.mxu0 0.0
    %3311 = vmatpush1.msra.mxu0 0.0
    %3312 = vmatprep.subr.mxu0 0.0
    %3313 = vmatpush1.msra.mxu0 0.0
    %3314 = vmatprep.subr.mxu0 0.0
    %3315 = vmatpush1.msra.mxu0 0.0
    %3316 = vmatprep.subr.mxu0 0.0
    %3317 = vmatpush1.msra.mxu0 0.0
    %3318 = vmatprep.subr.mxu0 0.0
    %3319 = vmatpush1.msra.mxu0 0.0
    %3320 = vmatprep.subr.mxu0 0.0
    %3321 = vmatpush1.msra.mxu0 0.0
    %3322 = vmatprep.subr.mxu0 0.0
    %3323 = vmatpush1.msra.mxu0 0.0
    %3324 = vmatprep.subr.mxu0 0.0
    %3325 = vmatpush1.msra.mxu0 0.0
    %3326 = vmatprep.subr.mxu0 0.0
    %3327 = vmatpush1.msra.mxu0 0.0
    %3328 = vmatprep.subr.mxu0 0.0
    %3329 = vmatpush1.msra.mxu0 0.0
    %3330 = vmatprep.subr.mxu0 0.0
    %3331 = vmatpush1.msra.mxu0 0.0
    %3332 = vmatprep.subr.mxu0 0.0
    %3333 = vmatpush1.msra.mxu0 0.0
    %3334 = vmatprep.subr.mxu0 0.0
    %3335 = vmatpush1.msra.mxu0 0.0
    %3336 = vmatprep.mubr.f32.mxu0 0.0
    %3337 = vmatmul.mubr.f32.gmra.mrb[0].mxu0 %v3270
    %v3338 = vpop.f32.mrb[0].mxu0
    %v3339 = vadd.f32 %v3114, %v3338
    %v3340 = vpop.f32.mrb[0].mxu0
    %3341 = vdwg.mxu0
    %v3343 = vsel %vm785, %v3075, 0
    %3345 = vmatprep.subr.mxu0 0.0
    %3346 = vmatpush1.msra.mxu0 %v2837
    %3347 = vmatprep.subr.mxu0 0.0
    %3348 = vmatpush1.msra.mxu0 0.0
    %3349 = vmatprep.subr.mxu0 0.0
    %3350 = vmatpush1.msra.mxu0 0.0
    %3351 = vmatprep.subr.mxu0 0.0
    %3352 = vmatpush1.msra.mxu0 0.0
    %3353 = vmatprep.subr.mxu0 0.0
    %3354 = vmatpush1.msra.mxu0 0.0
    %3355 = vmatprep.subr.mxu0 0.0
    %3356 = vmatpush1.msra.mxu0 0.0
    %3357 = vmatprep.subr.mxu0 0.0
    %3358 = vmatpush1.msra.mxu0 0.0
    %3359 = vmatprep.subr.mxu0 0.0
    %3360 = vmatpush1.msra.mxu0 0.0
    %3361 = vmatprep.subr.mxu0 0.0
    %3362 = vmatpush1.msra.mxu0 0.0
    %3363 = vmatprep.subr.mxu0 0.0
    %3364 = vmatpush1.msra.mxu0 0.0
    %3365 = vmatprep.subr.mxu0 0.0
    %3366 = vmatpush1.msra.mxu0 0.0
    %3367 = vmatprep.subr.mxu0 0.0
    %3368 = vmatpush1.msra.mxu0 0.0
    %3369 = vmatprep.subr.mxu0 0.0
    %3370 = vmatpush1.msra.mxu0 0.0
    %3371 = vmatprep.subr.mxu0 0.0
    %3372 = vmatpush1.msra.mxu0 0.0
    %3373 = vmatprep.subr.mxu0 0.0
    %3374 = vmatpush1.msra.mxu0 0.0
    %3375 = vmatprep.subr.mxu0 0.0
    %3376 = vmatpush1.msra.mxu0 0.0
    %3377 = vmatprep.subr.mxu0 0.0
    %3378 = vmatpush1.msra.mxu0 0.0
    %3379 = vmatprep.subr.mxu0 0.0
    %3380 = vmatpush1.msra.mxu0 0.0
    %3381 = vmatprep.subr.mxu0 0.0
    %3382 = vmatpush1.msra.mxu0 0.0
    %3383 = vmatprep.subr.mxu0 0.0
    %3384 = vmatpush1.msra.mxu0 0.0
    %3385 = vmatprep.subr.mxu0 0.0
    %3386 = vmatpush1.msra.mxu0 0.0
    %3387 = vmatprep.subr.mxu0 0.0
    %3388 = vmatpush1.msra.mxu0 0.0
    %3389 = vmatprep.subr.mxu0 0.0
    %3390 = vmatpush1.msra.mxu0 0.0
    %3391 = vmatprep.subr.mxu0 0.0
    %3392 = vmatpush1.msra.mxu0 0.0
    %3393 = vmatprep.subr.mxu0 0.0
    %3394 = vmatpush1.msra.mxu0 0.0
    %3395 = vmatprep.subr.mxu0 0.0
    %3396 = vmatpush1.msra.mxu0 0.0
    %3397 = vmatprep.subr.mxu0 0.0
    %3398 = vmatpush1.msra.mxu0 0.0
    %3399 = vmatprep.subr.mxu0 0.0
    %3400 = vmatpush1.msra.mxu0 0.0
    %3401 = vmatprep.subr.mxu0 0.0
    %3402 = vmatpush1.msra.mxu0 0.0
    %3403 = vmatprep.subr.mxu0 0.0
    %3404 = vmatpush1.msra.mxu0 0.0
    %3405 = vmatprep.subr.mxu0 0.0
    %3406 = vmatpush1.msra.mxu0 0.0
    %3407 = vmatprep.subr.mxu0 0.0
    %3408 = vmatpush1.msra.mxu0 0.0
    %3409 = vmatprep.mubr.f32.mxu0 0.0
    %3410 = vmatmul.mubr.f32.gmra.mrb[0].mxu0 %v3343
    %v3411 = vpop.f32.mrb[0].mxu0
    %v3412 = vadd.f32 %v3118, %v3411
    %v3413 = vpop.f32.mrb[0].mxu0
    %3414 = vdwg.mxu0
    %v3415 = vmax.f32 %v3193, 0.0
    %v3416 = vmax.f32 %v3266, 0.0
    %v3417 = vmax.f32 %v3339, 0.0
    %v3418 = vmax.f32 %v3412, 0.0
    %v3419 = vld [vmem:[%s6] sm:$0xff]
    %v3420 = vld [vmem:[%s6 + $0x8] sm:$0xff]
    %v3421 = vld [vmem:[%s6 + $0x10] sm:$0xff]
    %v3422 = vld [vmem:[%s6 + $0x18] sm:$0xff]
    %v3424 = vsel %vm785, %v3415, 0
    %3426 = vmatprep.subr.mxu0 0.0
    %3427 = vmatpush1.msra.mxu0 %v3419
    %3428 = vmatprep.subr.mxu0 0.0
    %3429 = vmatpush1.msra.mxu0 0.0
    %3430 = vmatprep.subr.mxu0 0.0
    %3431 = vmatpush1.msra.mxu0 0.0
    %3432 = vmatprep.subr.mxu0 0.0
    %3433 = vmatpush1.msra.mxu0 0.0
    %3434 = vmatprep.subr.mxu0 0.0
    %3435 = vmatpush1.msra.mxu0 0.0
    %3436 = vmatprep.subr.mxu0 0.0
    %3437 = vmatpush1.msra.mxu0 0.0
    %3438 = vmatprep.subr.mxu0 0.0
    %3439 = vmatpush1.msra.mxu0 0.0
    %3440 = vmatprep.subr.mxu0 0.0
    %3441 = vmatpush1.msra.mxu0 0.0
    %3442 = vmatprep.subr.mxu0 0.0
    %3443 = vmatpush1.msra.mxu0 0.0
    %3444 = vmatprep.subr.mxu0 0.0
    %3445 = vmatpush1.msra.mxu0 0.0
    %3446 = vmatprep.subr.mxu0 0.0
    %3447 = vmatpush1.msra.mxu0 0.0
    %3448 = vmatprep.subr.mxu0 0.0
    %3449 = vmatpush1.msra.mxu0 0.0
    %3450 = vmatprep.subr.mxu0 0.0
    %3451 = vmatpush1.msra.mxu0 0.0
    %3452 = vmatprep.subr.mxu0 0.0
    %3453 = vmatpush1.msra.mxu0 0.0
    %3454 = vmatprep.subr.mxu0 0.0
    %3455 = vmatpush1.msra.mxu0 0.0
    %3456 = vmatprep.subr.mxu0 0.0
    %3457 = vmatpush1.msra.mxu0 0.0
    %3458 = vmatprep.subr.mxu0 0.0
    %3459 = vmatpush1.msra.mxu0 0.0
    %3460 = vmatprep.subr.mxu0 0.0
    %3461 = vmatpush1.msra.mxu0 0.0
    %3462 = vmatprep.subr.mxu0 0.0
    %3463 = vmatpush1.msra.mxu0 0.0
    %3464 = vmatprep.subr.mxu0 0.0
    %3465 = vmatpush1.msra.mxu0 0.0
    %3466 = vmatprep.subr.mxu0 0.0
    %3467 = vmatpush1.msra.mxu0 0.0
    %3468 = vmatprep.subr.mxu0 0.0
    %3469 = vmatpush1.msra.mxu0 0.0
    %3470 = vmatprep.subr.mxu0 0.0
    %3471 = vmatpush1.msra.mxu0 0.0
    %3472 = vmatprep.subr.mxu0 0.0
    %3473 = vmatpush1.msra.mxu0 0.0
    %3474 = vmatprep.subr.mxu0 0.0
    %3475 = vmatpush1.msra.mxu0 0.0
    %3476 = vmatprep.subr.mxu0 0.0
    %3477 = vmatpush1.msra.mxu0 0.0
    %3478 = vmatprep.subr.mxu0 0.0
    %3479 = vmatpush1.msra.mxu0 0.0
    %3480 = vmatprep.subr.mxu0 0.0
    %3481 = vmatpush1.msra.mxu0 0.0
    %3482 = vmatprep.subr.mxu0 0.0
    %3483 = vmatpush1.msra.mxu0 0.0
    %3484 = vmatprep.subr.mxu0 0.0
    %3485 = vmatpush1.msra.mxu0 0.0
    %3486 = vmatprep.subr.mxu0 0.0
    %3487 = vmatpush1.msra.mxu0 0.0
    %3488 = vmatprep.subr.mxu0 0.0
    %3489 = vmatpush1.msra.mxu0 0.0
    %3490 = vmatprep.mubr.f32.mxu0 0.0
    %3491 = vmatmul.mubr.f32.gmra.mrb[0].mxu0 %v3424
    %v3492 = vpop.f32.mrb[0].mxu0
    %v3493 = vadd.f32 0.0, %v3492
    %v3494 = vpop.f32.mrb[0].mxu0
    %3495 = vdwg.mxu0
    %v3497 = vsel %vm785, %v3416, 0
    %3499 = vmatprep.subr.mxu0 0.0
    %3500 = vmatpush1.msra.mxu0 %v3420
    %3501 = vmatprep.subr.mxu0 0.0
    %3502 = vmatpush1.msra.mxu0 0.0
    %3503 = vmatprep.subr.mxu0 0.0
    %3504 = vmatpush1.msra.mxu0 0.0
    %3505 = vmatprep.subr.mxu0 0.0
    %3506 = vmatpush1.msra.mxu0 0.0
    %3507 = vmatprep.subr.mxu0 0.0
    %3508 = vmatpush1.msra.mxu0 0.0
    %3509 = vmatprep.subr.mxu0 0.0
    %3510 = vmatpush1.msra.mxu0 0.0
    %3511 = vmatprep.subr.mxu0 0.0
    %3512 = vmatpush1.msra.mxu0 0.0
    %3513 = vmatprep.subr.mxu0 0.0
    %3514 = vmatpush1.msra.mxu0 0.0
    %3515 = vmatprep.subr.mxu0 0.0
    %3516 = vmatpush1.msra.mxu0 0.0
    %3517 = vmatprep.subr.mxu0 0.0
    %3518 = vmatpush1.msra.mxu0 0.0
    %3519 = vmatprep.subr.mxu0 0.0
    %3520 = vmatpush1.msra.mxu0 0.0
    %3521 = vmatprep.subr.mxu0 0.0
    %3522 = vmatpush1.msra.mxu0 0.0
    %3523 = vmatprep.subr.mxu0 0.0
    %3524 = vmatpush1.msra.mxu0 0.0
    %3525 = vmatprep.subr.mxu0 0.0
    %3526 = vmatpush1.msra.mxu0 0.0
    %3527 = vmatprep.subr.mxu0 0.0
    %3528 = vmatpush1.msra.mxu0 0.0
    %3529 = vmatprep.subr.mxu0 0.0
    %3530 = vmatpush1.msra.mxu0 0.0
    %3531 = vmatprep.subr.mxu0 0.0
    %3532 = vmatpush1.msra.mxu0 0.0
    %3533 = vmatprep.subr.mxu0 0.0
    %3534 = vmatpush1.msra.mxu0 0.0
    %3535 = vmatprep.subr.mxu0 0.0
    %3536 = vmatpush1.msra.mxu0 0.0
    %3537 = vmatprep.subr.mxu0 0.0
    %3538 = vmatpush1.msra.mxu0 0.0
    %3539 = vmatprep.subr.mxu0 0.0
    %3540 = vmatpush1.msra.mxu0 0.0
    %3541 = vmatprep.subr.mxu0 0.0
    %3542 = vmatpush1.msra.mxu0 0.0
    %3543 = vmatprep.subr.mxu0 0.0
    %3544 = vmatpush1.msra.mxu0 0.0
    %3545 = vmatprep.subr.mxu0 0.0
    %3546 = vmatpush1.msra.mxu0 0.0
    %3547 = vmatprep.subr.mxu0 0.0
    %3548 = vmatpush1.msra.mxu0 0.0
    %3549 = vmatprep.subr.mxu0 0.0
    %3550 = vmatpush1.msra.mxu0 0.0
    %3551 = vmatprep.subr.mxu0 0.0
    %3552 = vmatpush1.msra.mxu0 0.0
    %3553 = vmatprep.subr.mxu0 0.0
    %3554 = vmatpush1.msra.mxu0 0.0
    %3555 = vmatprep.subr.mxu0 0.0
    %3556 = vmatpush1.msra.mxu0 0.0
    %3557 = vmatprep.subr.mxu0 0.0
    %3558 = vmatpush1.msra.mxu0 0.0
    %3559 = vmatprep.subr.mxu0 0.0
    %3560 = vmatpush1.msra.mxu0 0.0
    %3561 = vmatprep.subr.mxu0 0.0
    %3562 = vmatpush1.msra.mxu0 0.0
    %3563 = vmatprep.mubr.f32.mxu0 0.0
    %3564 = vmatmul.mubr.f32.gmra.mrb[0].mxu0 %v3497
    %v3565 = vpop.f32.mrb[0].mxu0
    %v3566 = vadd.f32 0.0, %v3565
    %v3567 = vpop.f32.mrb[0].mxu0
    %3568 = vdwg.mxu0
    %v3570 = vsel %vm785, %v3417, 0
    %3572 = vmatprep.subr.mxu0 0.0
    %3573 = vmatpush1.msra.mxu0 %v3421
    %3574 = vmatprep.subr.mxu0 0.0
    %3575 = vmatpush1.msra.mxu0 0.0
    %3576 = vmatprep.subr.mxu0 0.0
    %3577 = vmatpush1.msra.mxu0 0.0
    %3578 = vmatprep.subr.mxu0 0.0
    %3579 = vmatpush1.msra.mxu0 0.0
    %3580 = vmatprep.subr.mxu0 0.0
    %3581 = vmatpush1.msra.mxu0 0.0
    %3582 = vmatprep.subr.mxu0 0.0
    %3583 = vmatpush1.msra.mxu0 0.0
    %3584 = vmatprep.subr.mxu0 0.0
    %3585 = vmatpush1.msra.mxu0 0.0
    %3586 = vmatprep.subr.mxu0 0.0
    %3587 = vmatpush1.msra.mxu0 0.0
    %3588 = vmatprep.subr.mxu0 0.0
    %3589 = vmatpush1.msra.mxu0 0.0
    %3590 = vmatprep.subr.mxu0 0.0
    %3591 = vmatpush1.msra.mxu0 0.0
    %3592 = vmatprep.subr.mxu0 0.0
    %3593 = vmatpush1.msra.mxu0 0.0
    %3594 = vmatprep.subr.mxu0 0.0
    %3595 = vmatpush1.msra.mxu0 0.0
    %3596 = vmatprep.subr.mxu0 0.0
    %3597 = vmatpush1.msra.mxu0 0.0
    %3598 = vmatprep.subr.mxu0 0.0
    %3599 = vmatpush1.msra.mxu0 0.0
    %3600 = vmatprep.subr.mxu0 0.0
    %3601 = vmatpush1.msra.mxu0 0.0
    %3602 = vmatprep.subr.mxu0 0.0
    %3603 = vmatpush1.msra.mxu0 0.0
    %3604 = vmatprep.subr.mxu0 0.0
    %3605 = vmatpush1.msra.mxu0 0.0
    %3606 = vmatprep.subr.mxu0 0.0
    %3607 = vmatpush1.msra.mxu0 0.0
    %3608 = vmatprep.subr.mxu0 0.0
    %3609 = vmatpush1.msra.mxu0 0.0
    %3610 = vmatprep.subr.mxu0 0.0
    %3611 = vmatpush1.msra.mxu0 0.0
    %3612 = vmatprep.subr.mxu0 0.0
    %3613 = vmatpush1.msra.mxu0 0.0
    %3614 = vmatprep.subr.mxu0 0.0
    %3615 = vmatpush1.msra.mxu0 0.0
    %3616 = vmatprep.subr.mxu0 0.0
    %3617 = vmatpush1.msra.mxu0 0.0
    %3618 = vmatprep.subr.mxu0 0.0
    %3619 = vmatpush1.msra.mxu0 0.0
    %3620 = vmatprep.subr.mxu0 0.0
    %3621 = vmatpush1.msra.mxu0 0.0
    %3622 = vmatprep.subr.mxu0 0.0
    %3623 = vmatpush1.msra.mxu0 0.0
    %3624 = vmatprep.subr.mxu0 0.0
    %3625 = vmatpush1.msra.mxu0 0.0
    %3626 = vmatprep.subr.mxu0 0.0
    %3627 = vmatpush1.msra.mxu0 0.0
    %3628 = vmatprep.subr.mxu0 0.0
    %3629 = vmatpush1.msra.mxu0 0.0
    %3630 = vmatprep.subr.mxu0 0.0
    %3631 = vmatpush1.msra.mxu0 0.0
    %3632 = vmatprep.subr.mxu0 0.0
    %3633 = vmatpush1.msra.mxu0 0.0
    %3634 = vmatprep.subr.mxu0 0.0
    %3635 = vmatpush1.msra.mxu0 0.0
    %3636 = vmatprep.mubr.f32.mxu0 0.0
    %3637 = vmatmul.mubr.f32.gmra.mrb[0].mxu0 %v3570
    %v3638 = vpop.f32.mrb[0].mxu0
    %v3639 = vadd.f32 0.0, %v3638
    %v3640 = vpop.f32.mrb[0].mxu0
    %3641 = vdwg.mxu0
    %v3643 = vsel %vm785, %v3418, 0
    %3645 = vmatprep.subr.mxu0 0.0
    %3646 = vmatpush1.msra.mxu0 %v3422
    %3647 = vmatprep.subr.mxu0 0.0
    %3648 = vmatpush1.msra.mxu0 0.0
    %3649 = vmatprep.subr.mxu0 0.0
    %3650 = vmatpush1.msra.mxu0 0.0
    %3651 = vmatprep.subr.mxu0 0.0
    %3652 = vmatpush1.msra.mxu0 0.0
    %3653 = vmatprep.subr.mxu0 0.0
    %3654 = vmatpush1.msra.mxu0 0.0
    %3655 = vmatprep.subr.mxu0 0.0
    %3656 = vmatpush1.msra.mxu0 0.0
    %3657 = vmatprep.subr.mxu0 0.0
    %3658 = vmatpush1.msra.mxu0 0.0
    %3659 = vmatprep.subr.mxu0 0.0
    %3660 = vmatpush1.msra.mxu0 0.0
    %3661 = vmatprep.subr.mxu0 0.0
    %3662 = vmatpush1.msra.mxu0 0.0
    %3663 = vmatprep.subr.mxu0 0.0
    %3664 = vmatpush1.msra.mxu0 0.0
    %3665 = vmatprep.subr.mxu0 0.0
    %3666 = vmatpush1.msra.mxu0 0.0
    %3667 = vmatprep.subr.mxu0 0.0
    %3668 = vmatpush1.msra.mxu0 0.0
    %3669 = vmatprep.subr.mxu0 0.0
    %3670 = vmatpush1.msra.mxu0 0.0
    %3671 = vmatprep.subr.mxu0 0.0
    %3672 = vmatpush1.msra.mxu0 0.0
    %3673 = vmatprep.subr.mxu0 0.0
    %3674 = vmatpush1.msra.mxu0 0.0
    %3675 = vmatprep.subr.mxu0 0.0
    %3676 = vmatpush1.msra.mxu0 0.0
    %3677 = vmatprep.subr.mxu0 0.0
    %3678 = vmatpush1.msra.mxu0 0.0
    %3679 = vmatprep.subr.mxu0 0.0
    %3680 = vmatpush1.msra.mxu0 0.0
    %3681 = vmatprep.subr.mxu0 0.0
    %3682 = vmatpush1.msra.mxu0 0.0
    %3683 = vmatprep.subr.mxu0 0.0
    %3684 = vmatpush1.msra.mxu0 0.0
    %3685 = vmatprep.subr.mxu0 0.0
    %3686 = vmatpush1.msra.mxu0 0.0
    %3687 = vmatprep.subr.mxu0 0.0
    %3688 = vmatpush1.msra.mxu0 0.0
    %3689 = vmatprep.subr.mxu0 0.0
    %3690 = vmatpush1.msra.mxu0 0.0
    %3691 = vmatprep.subr.mxu0 0.0
    %3692 = vmatpush1.msra.mxu0 0.0
    %3693 = vmatprep.subr.mxu0 0.0
    %3694 = vmatpush1.msra.mxu0 0.0
    %3695 = vmatprep.subr.mxu0 0.0
    %3696 = vmatpush1.msra.mxu0 0.0
    %3697 = vmatprep.subr.mxu0 0.0
    %3698 = vmatpush1.msra.mxu0 0.0
    %3699 = vmatprep.subr.mxu0 0.0
    %3700 = vmatpush1.msra.mxu0 0.0
    %3701 = vmatprep.subr.mxu0 0.0
    %3702 = vmatpush1.msra.mxu0 0.0
    %3703 = vmatprep.subr.mxu0 0.0
    %3704 = vmatpush1.msra.mxu0 0.0
    %3705 = vmatprep.subr.mxu0 0.0
    %3706 = vmatpush1.msra.mxu0 0.0
    %3707 = vmatprep.subr.mxu0 0.0
    %3708 = vmatpush1.msra.mxu0 0.0
    %3709 = vmatprep.mubr.f32.mxu0 0.0
    %3710 = vmatmul.mubr.f32.gmra.mrb[0].mxu0 %v3643
    %v3711 = vpop.f32.mrb[0].mxu0
    %v3712 = vadd.f32 0.0, %v3711
    %v3713 = vpop.f32.mrb[0].mxu0
    %3714 = vdwg.mxu0
    %v3715 = vsel %vm2719, %v3493, 0.0
    %v3716 = vsel %vm2719, %v3566, 0.0
    %v3717 = vadd.f32 %v3715, %v3716
    %v3718 = vsel %vm2719, %v3639, 0.0
    %v3719 = vadd.f32 %v3717, %v3718
    %v3720 = vsel %vm2719, %v3712, 0.0
    %v3721 = vadd.f32 %v3719, %v3720
    %3723 = vrot.lane.b32.xlu0 %v3721, 120
    %v3724 = vpop.permute.xlu0 %3723
    %3726 = vrot.lane.b32.xlu0 %v3721, 112
    %v3727 = vpop.permute.xlu0 %3726
    %3729 = vrot.lane.b32.xlu0 %v3721, 104
    %v3730 = vpop.permute.xlu0 %3729
    %s3732 = scalar_lea.vmem %s5, 12
    %v3733 = vld [vmem:[%s3732] sm:$0xf]
    %s3734 = scalar_lea.vmem %s5, 16
    %v3735 = vld [vmem:[%s3734] sm:$0xf]
    %v3738 = vunpack.c.l.s4 1966171168
    %v3739 = vunpack.c.0.s8 %v3738
    %v3740 = vlaneseq
    %v3741 = vshrl.u32 %v3740, 7
    %v3742 = vsub.s32 %v3739, %v3741
    %v3743 = vrot.slane %v3735, %v3742
    %v3744 = vcombine.high %v3743, %v3743
    %v3746 = vunpack.c.l.s4 1966171168
    %v3747 = vunpack.c.0.s8 %v3746
    %v3748 = vlaneseq
    %v3749 = vshrl.u32 %v3748, 7
    %v3750 = vsub.s32 %v3747, %v3749
    %v3751 = vrot.slane %v3743, %v3750
    %v3753 = vunpack.c.l.s4 1966171168
    %v3754 = vunpack.c.0.s8 %v3753
    %v3755 = vlaneseq
    %v3756 = vshrl.u32 %v3755, 7
    %v3757 = vsub.s32 %v3754, %v3756
    %v3758 = vrot.slane %v3744, %v3757
    %v3759 = vcombine.high %v3751, %v3751
    %v3760 = vcombine.high %v3758, %v3758
    %v3761 = vlaneseq
    %v3762 = vshrl.u32 %v3761, 7
    %v3763 = vsub.s32 0, %v3762
    %v3764 = vrot.slane %v3751, %v3763
    %v3765 = vlaneseq
    %v3766 = vshrl.u32 %v3765, 7
    %v3767 = vsub.s32 0, %v3766
    %v3768 = vrot.slane %v3758, %v3767
    %v3769 = vlaneseq
    %v3770 = vshrl.u32 %v3769, 7
    %v3771 = vsub.s32 0, %v3770
    %v3772 = vrot.slane %v3759, %v3771
    %v3773 = vlaneseq
    %v3774 = vshrl.u32 %v3773, 7
    %v3775 = vsub.s32 0, %v3774
    %v3776 = vrot.slane %v3760, %v3775
    %v3781 = vmul.f32 %v3721, %v3764
    %v3782 = vmul.f32 %v3724, %v3768
    %v3783 = vmul.f32 %v3727, %v3772
    %v3784 = vmul.f32 %v3730, %v3776
    %v3785 = vsel %vm785, %v3781, 0.0
    %3786 = vadd.xlane.f32.xlu0 %v3785
    %v3787 = vpop.xlane.xlu0 %3786
    %v3788 = vsel %vm785, %v3782, 0.0
    %3789 = vadd.xlane.f32.xlu0 %v3788
    %v3790 = vpop.xlane.xlu0 %3789
    %v3791 = vsel %vm785, %v3783, 0.0
    %3792 = vadd.xlane.f32.xlu0 %v3791
    %v3793 = vpop.xlane.xlu0 %3792
    %v3794 = vsel %vm785, %v3784, 0.0
    %3795 = vadd.xlane.f32.xlu0 %v3794
    %v3796 = vpop.xlane.xlu0 %3795
    %v3799 = vunpack.c.l.s4 1966171168
    %v3800 = vunpack.c.0.s8 %v3799
    %v3801 = vlaneseq
    %v3802 = vshrl.u32 %v3801, 7
    %v3803 = vsub.s32 %v3800, %v3802
    %v3804 = vrot.slane %v3733, %v3803
    %v3805 = vcombine.high %v3804, %v3804
    %v3807 = vunpack.c.l.s4 1966171168
    %v3808 = vunpack.c.0.s8 %v3807
    %v3809 = vlaneseq
    %v3810 = vshrl.u32 %v3809, 7
    %v3811 = vsub.s32 %v3808, %v3810
    %v3812 = vrot.slane %v3804, %v3811
    %v3814 = vunpack.c.l.s4 1966171168
    %v3815 = vunpack.c.0.s8 %v3814
    %v3816 = vlaneseq
    %v3817 = vshrl.u32 %v3816, 7
    %v3818 = vsub.s32 %v3815, %v3817
    %v3819 = vrot.slane %v3805, %v3818
    %v3820 = vcombine.high %v3812, %v3812
    %v3821 = vcombine.high %v3819, %v3819
    %v3822 = vlaneseq
    %v3823 = vshrl.u32 %v3822, 7
    %v3824 = vsub.s32 0, %v3823
    %v3825 = vrot.slane %v3812, %v3824
    %v3826 = vlaneseq
    %v3827 = vshrl.u32 %v3826, 7
    %v3828 = vsub.s32 0, %v3827
    %v3829 = vrot.slane %v3819, %v3828
    %v3830 = vlaneseq
    %v3831 = vshrl.u32 %v3830, 7
    %v3832 = vsub.s32 0, %v3831
    %v3833 = vrot.slane %v3820, %v3832
    %v3834 = vlaneseq
    %v3835 = vshrl.u32 %v3834, 7
    %v3836 = vsub.s32 0, %v3835
    %v3837 = vrot.slane %v3821, %v3836
    %v3842 = vmul.f32 %v3721, %v3825
    %v3843 = vmul.f32 %v3724, %v3829
    %v3844 = vmul.f32 %v3727, %v3833
    %v3845 = vmul.f32 %v3730, %v3837
    %v3846 = vsel %vm785, %v3842, 0.0
    %3847 = vadd.xlane.f32.xlu0 %v3846
    %v3848 = vpop.xlane.xlu0 %3847
    %v3849 = vsel %vm785, %v3843, 0.0
    %3850 = vadd.xlane.f32.xlu0 %v3849
    %v3851 = vpop.xlane.xlu0 %3850
    %v3852 = vsel %vm785, %v3844, 0.0
    %3853 = vadd.xlane.f32.xlu0 %v3852
    %v3854 = vpop.xlane.xlu0 %3853
    %v3855 = vsel %vm785, %v3845, 0.0
    %3856 = vadd.xlane.f32.xlu0 %v3855
    %v3857 = vpop.xlane.xlu0 %3856
    %v3862 = vlaneseq
    %v3863 = vshrl.u32 %v3862, 7
    %v3864 = vsub.s32 %v586, %v3863
    %v3865 = vrot.slane %v3848, %v3864
    %v3866 = vlaneseq
    %v3867 = vshrl.u32 %v3866, 7
    %v3868 = vsub.s32 %v586, %v3867
    %v3869 = vrot.slane %v3851, %v3868
    %v3870 = vlaneseq
    %v3871 = vshrl.u32 %v3870, 7
    %v3872 = vsub.s32 %v586, %v3871
    %v3873 = vrot.slane %v3854, %v3872
    %v3874 = vlaneseq
    %v3875 = vshrl.u32 %v3874, 7
    %v3876 = vsub.s32 %v586, %v3875
    %v3877 = vrot.slane %v3857, %v3876
    %v3878 = vsel %vm635, %v3865, %v3865
    %v3879 = vsel %vm637, %v3865, %v3878
    %v3880 = vsel %vm639, %v3865, %v3879
    %v3881 = vsel %vm641, %v3865, %v3880
    %v3882 = vsel %vm643, %v3865, %v3881
    %v3883 = vsel %vm645, %v3865, %v3882
    %v3884 = vsel %vm635, %v3869, %v3869
    %v3885 = vsel %vm637, %v3869, %v3884
    %v3886 = vsel %vm639, %v3869, %v3885
    %v3887 = vsel %vm641, %v3869, %v3886
    %v3888 = vsel %vm643, %v3869, %v3887
    %v3889 = vsel %vm645, %v3869, %v3888
    %v3890 = vsel %vm635, %v3873, %v3873
    %v3891 = vsel %vm637, %v3873, %v3890
    %v3892 = vsel %vm639, %v3873, %v3891
    %v3893 = vsel %vm641, %v3873, %v3892
    %v3894 = vsel %vm643, %v3873, %v3893
    %v3895 = vsel %vm645, %v3873, %v3894
    %v3896 = vsel %vm635, %v3877, %v3877
    %v3897 = vsel %vm637, %v3877, %v3896
    %v3898 = vsel %vm639, %v3877, %v3897
    %v3899 = vsel %vm641, %v3877, %v3898
    %v3900 = vsel %vm643, %v3877, %v3899
    %v3901 = vsel %vm645, %v3877, %v3900
    %v3906 = vadd.f32 %v3787, %v3883
    %v3907 = vadd.f32 %v3790, %v3889
    %v3908 = vadd.f32 %v3793, %v3895
    %v3909 = vadd.f32 %v3796, %v3901
    %v3910 = vadd.f32 %v3906, %v2751
    %v3911 = vadd.f32 %v3907, %v2751
    %v3912 = vadd.f32 %v3908, %v2751
    %v3913 = vadd.f32 %v3909, %v2751
    %vm3914 = vcmp.ge.f32.partialorder %v3910, 0.0
    %vm3915 = vcmp.ge.f32.partialorder %v3911, 0.0
    %vm3916 = vcmp.ge.f32.partialorder %v3912, 0.0
    %vm3917 = vcmp.ge.f32.partialorder %v3913, 0.0
    %v3918 = vmul.f32 %v3910, 0.2
    %v3919 = vmul.f32 %v3911, 0.2
    %v3920 = vmul.f32 %v3912, 0.2
    %v3921 = vmul.f32 %v3913, 0.2
    %v3922 = vsel %vm3914, %v3910, %v3918
    %v3923 = vsel %vm3915, %v3911, %v3919
    %v3924 = vsel %vm3916, %v3912, %v3920
    %v3925 = vsel %vm3917, %v3913, %v3921
    %v3926 = vsel %vm785, %v3922, -inf
    %3927 = vmax.xlane.f32.xlu0 %v3926
    %v3928 = vpop.xlane.xlu0 %3927
    %v3929 = vsel %vm785, %v3923, -inf
    %3930 = vmax.xlane.f32.xlu0 %v3929
    %v3931 = vpop.xlane.xlu0 %3930
    %v3932 = vsel %vm785, %v3924, -inf
    %3933 = vmax.xlane.f32.xlu0 %v3932
    %v3934 = vpop.xlane.xlu0 %3933
    %v3935 = vsel %vm785, %v3925, -inf
    %3936 = vmax.xlane.f32.xlu0 %v3935
    %v3937 = vpop.xlane.xlu0 %3936
    %v3938 = vsub.f32 %v3922, %v3928
    %v3939 = vsub.f32 %v3923, %v3931
    %v3940 = vsub.f32 %v3924, %v3934
    %v3941 = vsub.f32 %v3925, %v3937
    %v3942 = vmul.f32 %v3938, 1.442695
    %v3943 = vpow.pop %v3942
    %v3944 = vmul.f32 %v3939, 1.442695
    %v3945 = vpow.pop %v3944
    %v3946 = vmul.f32 %v3940, 1.442695
    %v3947 = vpow.pop %v3946
    %v3948 = vmul.f32 %v3941, 1.442695
    %v3949 = vpow.pop %v3948
    %v3950 = vsel %vm785, %v3943, 0.0
    %3951 = vadd.xlane.f32.xlu0 %v3950
    %v3952 = vpop.xlane.xlu0 %3951
    %v3953 = vsel %vm785, %v3945, 0.0
    %3954 = vadd.xlane.f32.xlu0 %v3953
    %v3955 = vpop.xlane.xlu0 %3954
    %v3956 = vsel %vm785, %v3947, 0.0
    %3957 = vadd.xlane.f32.xlu0 %v3956
    %v3958 = vpop.xlane.xlu0 %3957
    %v3959 = vsel %vm785, %v3949, 0.0
    %3960 = vadd.xlane.f32.xlu0 %v3959
    %v3961 = vpop.xlane.xlu0 %3960
    %v3962 = vrcp.pop %v3952
    %v3963 = vrcp.pop %v3955
    %v3964 = vrcp.pop %v3958
    %v3965 = vrcp.pop %v3961
    %v3966 = vmul.f32 %v3943, %v3962
    %v3967 = vmul.f32 %v3945, %v3963
    %v3968 = vmul.f32 %v3947, %v3964
    %v3969 = vmul.f32 %v3949, %v3965
    %s3970 = scalar_lea.vmem %s5, 20
    %v3971 = vld [vmem:[%s3970] sm:$0xf]
    %v3974 = vunpack.c.l.s4 1966171168
    %v3975 = vunpack.c.0.s8 %v3974
    %v3976 = vlaneseq
    %v3977 = vshrl.u32 %v3976, 7
    %v3978 = vsub.s32 %v3975, %v3977
    %v3979 = vrot.slane %v3971, %v3978
    %v3980 = vcombine.high %v3979, %v3979
    %v3982 = vunpack.c.l.s4 1966171168
    %v3983 = vunpack.c.0.s8 %v3982
    %v3984 = vlaneseq
    %v3985 = vshrl.u32 %v3984, 7
    %v3986 = vsub.s32 %v3983, %v3985
    %v3987 = vrot.slane %v3979, %v3986
    %v3989 = vunpack.c.l.s4 1966171168
    %v3990 = vunpack.c.0.s8 %v3989
    %v3991 = vlaneseq
    %v3992 = vshrl.u32 %v3991, 7
    %v3993 = vsub.s32 %v3990, %v3992
    %v3994 = vrot.slane %v3980, %v3993
    %v3995 = vcombine.high %v3987, %v3987
    %v3996 = vcombine.high %v3994, %v3994
    %v3997 = vlaneseq
    %v3998 = vshrl.u32 %v3997, 7
    %v3999 = vsub.s32 0, %v3998
    %v4000 = vrot.slane %v3987, %v3999
    %v4001 = vlaneseq
    %v4002 = vshrl.u32 %v4001, 7
    %v4003 = vsub.s32 0, %v4002
    %v4004 = vrot.slane %v3994, %v4003
    %v4005 = vlaneseq
    %v4006 = vshrl.u32 %v4005, 7
    %v4007 = vsub.s32 0, %v4006
    %v4008 = vrot.slane %v3995, %v4007
    %v4009 = vlaneseq
    %v4010 = vshrl.u32 %v4009, 7
    %v4011 = vsub.s32 0, %v4010
    %v4012 = vrot.slane %v3996, %v4011
    %v4018 = vsel %vm785, %v3966, 0
    %4020 = vmatprep.subr.mxu0 0.0
    %4021 = vmatpush1.msra.mxu0 %v3721
    %4022 = vmatprep.subr.mxu0 0.0
    %4023 = vmatpush1.msra.mxu0 0.0
    %4024 = vmatprep.subr.mxu0 0.0
    %4025 = vmatpush1.msra.mxu0 0.0
    %4026 = vmatprep.subr.mxu0 0.0
    %4027 = vmatpush1.msra.mxu0 0.0
    %4028 = vmatprep.subr.mxu0 0.0
    %4029 = vmatpush1.msra.mxu0 0.0
    %4030 = vmatprep.subr.mxu0 0.0
    %4031 = vmatpush1.msra.mxu0 0.0
    %4032 = vmatprep.subr.mxu0 0.0
    %4033 = vmatpush1.msra.mxu0 0.0
    %4034 = vmatprep.subr.mxu0 0.0
    %4035 = vmatpush1.msra.mxu0 0.0
    %4036 = vmatprep.subr.mxu0 0.0
    %4037 = vmatpush1.msra.mxu0 0.0
    %4038 = vmatprep.subr.mxu0 0.0
    %4039 = vmatpush1.msra.mxu0 0.0
    %4040 = vmatprep.subr.mxu0 0.0
    %4041 = vmatpush1.msra.mxu0 0.0
    %4042 = vmatprep.subr.mxu0 0.0
    %4043 = vmatpush1.msra.mxu0 0.0
    %4044 = vmatprep.subr.mxu0 0.0
    %4045 = vmatpush1.msra.mxu0 0.0
    %4046 = vmatprep.subr.mxu0 0.0
    %4047 = vmatpush1.msra.mxu0 0.0
    %4048 = vmatprep.subr.mxu0 0.0
    %4049 = vmatpush1.msra.mxu0 0.0
    %4050 = vmatprep.subr.mxu0 0.0
    %4051 = vmatpush1.msra.mxu0 0.0
    %4052 = vmatprep.subr.mxu0 0.0
    %4053 = vmatpush1.msra.mxu0 0.0
    %4054 = vmatprep.subr.mxu0 0.0
    %4055 = vmatpush1.msra.mxu0 0.0
    %4056 = vmatprep.subr.mxu0 0.0
    %4057 = vmatpush1.msra.mxu0 0.0
    %4058 = vmatprep.subr.mxu0 0.0
    %4059 = vmatpush1.msra.mxu0 0.0
    %4060 = vmatprep.subr.mxu0 0.0
    %4061 = vmatpush1.msra.mxu0 0.0
    %4062 = vmatprep.subr.mxu0 0.0
    %4063 = vmatpush1.msra.mxu0 0.0
    %4064 = vmatprep.subr.mxu0 0.0
    %4065 = vmatpush1.msra.mxu0 0.0
    %4066 = vmatprep.subr.mxu0 0.0
    %4067 = vmatpush1.msra.mxu0 0.0
    %4068 = vmatprep.subr.mxu0 0.0
    %4069 = vmatpush1.msra.mxu0 0.0
    %4070 = vmatprep.subr.mxu0 0.0
    %4071 = vmatpush1.msra.mxu0 0.0
    %4072 = vmatprep.subr.mxu0 0.0
    %4073 = vmatpush1.msra.mxu0 0.0
    %4074 = vmatprep.subr.mxu0 0.0
    %4075 = vmatpush1.msra.mxu0 0.0
    %4076 = vmatprep.subr.mxu0 0.0
    %4077 = vmatpush1.msra.mxu0 0.0
    %4078 = vmatprep.subr.mxu0 0.0
    %4079 = vmatpush1.msra.mxu0 0.0
    %4080 = vmatprep.subr.mxu0 0.0
    %4081 = vmatpush1.msra.mxu0 0.0
    %4082 = vmatprep.subr.mxu0 0.0
    %4083 = vmatpush1.msra.mxu0 0.0
    %4084 = vmatprep.mubr.f32.mxu0 0.0
    %4085 = vmatmul.mubr.f32.gmra.mrb[0].mxu0 %v4018
    %v4086 = vpop.f32.mrb[0].mxu0
    %v4087 = vadd.f32 %v4000, %v4086
    %v4088 = vpop.f32.mrb[0].mxu0
    %4089 = vdwg.mxu0
    %v4091 = vsel %vm785, %v3967, 0
    %4093 = vmatprep.subr.mxu0 0.0
    %4094 = vmatpush1.msra.mxu0 %v3724
    %4095 = vmatprep.subr.mxu0 0.0
    %4096 = vmatpush1.msra.mxu0 0.0
    %4097 = vmatprep.subr.mxu0 0.0
    %4098 = vmatpush1.msra.mxu0 0.0
    %4099 = vmatprep.subr.mxu0 0.0
    %4100 = vmatpush1.msra.mxu0 0.0
    %4101 = vmatprep.subr.mxu0 0.0
    %4102 = vmatpush1.msra.mxu0 0.0
    %4103 = vmatprep.subr.mxu0 0.0
    %4104 = vmatpush1.msra.mxu0 0.0
    %4105 = vmatprep.subr.mxu0 0.0
    %4106 = vmatpush1.msra.mxu0 0.0
    %4107 = vmatprep.subr.mxu0 0.0
    %4108 = vmatpush1.msra.mxu0 0.0
    %4109 = vmatprep.subr.mxu0 0.0
    %4110 = vmatpush1.msra.mxu0 0.0
    %4111 = vmatprep.subr.mxu0 0.0
    %4112 = vmatpush1.msra.mxu0 0.0
    %4113 = vmatprep.subr.mxu0 0.0
    %4114 = vmatpush1.msra.mxu0 0.0
    %4115 = vmatprep.subr.mxu0 0.0
    %4116 = vmatpush1.msra.mxu0 0.0
    %4117 = vmatprep.subr.mxu0 0.0
    %4118 = vmatpush1.msra.mxu0 0.0
    %4119 = vmatprep.subr.mxu0 0.0
    %4120 = vmatpush1.msra.mxu0 0.0
    %4121 = vmatprep.subr.mxu0 0.0
    %4122 = vmatpush1.msra.mxu0 0.0
    %4123 = vmatprep.subr.mxu0 0.0
    %4124 = vmatpush1.msra.mxu0 0.0
    %4125 = vmatprep.subr.mxu0 0.0
    %4126 = vmatpush1.msra.mxu0 0.0
    %4127 = vmatprep.subr.mxu0 0.0
    %4128 = vmatpush1.msra.mxu0 0.0
    %4129 = vmatprep.subr.mxu0 0.0
    %4130 = vmatpush1.msra.mxu0 0.0
    %4131 = vmatprep.subr.mxu0 0.0
    %4132 = vmatpush1.msra.mxu0 0.0
    %4133 = vmatprep.subr.mxu0 0.0
    %4134 = vmatpush1.msra.mxu0 0.0
    %4135 = vmatprep.subr.mxu0 0.0
    %4136 = vmatpush1.msra.mxu0 0.0
    %4137 = vmatprep.subr.mxu0 0.0
    %4138 = vmatpush1.msra.mxu0 0.0
    %4139 = vmatprep.subr.mxu0 0.0
    %4140 = vmatpush1.msra.mxu0 0.0
    %4141 = vmatprep.subr.mxu0 0.0
    %4142 = vmatpush1.msra.mxu0 0.0
    %4143 = vmatprep.subr.mxu0 0.0
    %4144 = vmatpush1.msra.mxu0 0.0
    %4145 = vmatprep.subr.mxu0 0.0
    %4146 = vmatpush1.msra.mxu0 0.0
    %4147 = vmatprep.subr.mxu0 0.0
    %4148 = vmatpush1.msra.mxu0 0.0
    %4149 = vmatprep.subr.mxu0 0.0
    %4150 = vmatpush1.msra.mxu0 0.0
    %4151 = vmatprep.subr.mxu0 0.0
    %4152 = vmatpush1.msra.mxu0 0.0
    %4153 = vmatprep.subr.mxu0 0.0
    %4154 = vmatpush1.msra.mxu0 0.0
    %4155 = vmatprep.subr.mxu0 0.0
    %4156 = vmatpush1.msra.mxu0 0.0
    %4157 = vmatprep.mubr.f32.mxu0 0.0
    %4158 = vmatmul.mubr.f32.gmra.mrb[0].mxu0 %v4091
    %v4159 = vpop.f32.mrb[0].mxu0
    %v4160 = vadd.f32 %v4004, %v4159
    %v4161 = vpop.f32.mrb[0].mxu0
    %4162 = vdwg.mxu0
    %v4164 = vsel %vm785, %v3968, 0
    %4166 = vmatprep.subr.mxu0 0.0
    %4167 = vmatpush1.msra.mxu0 %v3727
    %4168 = vmatprep.subr.mxu0 0.0
    %4169 = vmatpush1.msra.mxu0 0.0
    %4170 = vmatprep.subr.mxu0 0.0
    %4171 = vmatpush1.msra.mxu0 0.0
    %4172 = vmatprep.subr.mxu0 0.0
    %4173 = vmatpush1.msra.mxu0 0.0
    %4174 = vmatprep.subr.mxu0 0.0
    %4175 = vmatpush1.msra.mxu0 0.0
    %4176 = vmatprep.subr.mxu0 0.0
    %4177 = vmatpush1.msra.mxu0 0.0
    %4178 = vmatprep.subr.mxu0 0.0
    %4179 = vmatpush1.msra.mxu0 0.0
    %4180 = vmatprep.subr.mxu0 0.0
    %4181 = vmatpush1.msra.mxu0 0.0
    %4182 = vmatprep.subr.mxu0 0.0
    %4183 = vmatpush1.msra.mxu0 0.0
    %4184 = vmatprep.subr.mxu0 0.0
    %4185 = vmatpush1.msra.mxu0 0.0
    %4186 = vmatprep.subr.mxu0 0.0
    %4187 = vmatpush1.msra.mxu0 0.0
    %4188 = vmatprep.subr.mxu0 0.0
    %4189 = vmatpush1.msra.mxu0 0.0
    %4190 = vmatprep.subr.mxu0 0.0
    %4191 = vmatpush1.msra.mxu0 0.0
    %4192 = vmatprep.subr.mxu0 0.0
    %4193 = vmatpush1.msra.mxu0 0.0
    %4194 = vmatprep.subr.mxu0 0.0
    %4195 = vmatpush1.msra.mxu0 0.0
    %4196 = vmatprep.subr.mxu0 0.0
    %4197 = vmatpush1.msra.mxu0 0.0
    %4198 = vmatprep.subr.mxu0 0.0
    %4199 = vmatpush1.msra.mxu0 0.0
    %4200 = vmatprep.subr.mxu0 0.0
    %4201 = vmatpush1.msra.mxu0 0.0
    %4202 = vmatprep.subr.mxu0 0.0
    %4203 = vmatpush1.msra.mxu0 0.0
    %4204 = vmatprep.subr.mxu0 0.0
    %4205 = vmatpush1.msra.mxu0 0.0
    %4206 = vmatprep.subr.mxu0 0.0
    %4207 = vmatpush1.msra.mxu0 0.0
    %4208 = vmatprep.subr.mxu0 0.0
    %4209 = vmatpush1.msra.mxu0 0.0
    %4210 = vmatprep.subr.mxu0 0.0
    %4211 = vmatpush1.msra.mxu0 0.0
    %4212 = vmatprep.subr.mxu0 0.0
    %4213 = vmatpush1.msra.mxu0 0.0
    %4214 = vmatprep.subr.mxu0 0.0
    %4215 = vmatpush1.msra.mxu0 0.0
    %4216 = vmatprep.subr.mxu0 0.0
    %4217 = vmatpush1.msra.mxu0 0.0
    %4218 = vmatprep.subr.mxu0 0.0
    %4219 = vmatpush1.msra.mxu0 0.0
    %4220 = vmatprep.subr.mxu0 0.0
    %4221 = vmatpush1.msra.mxu0 0.0
    %4222 = vmatprep.subr.mxu0 0.0
    %4223 = vmatpush1.msra.mxu0 0.0
    %4224 = vmatprep.subr.mxu0 0.0
    %4225 = vmatpush1.msra.mxu0 0.0
    %4226 = vmatprep.subr.mxu0 0.0
    %4227 = vmatpush1.msra.mxu0 0.0
    %4228 = vmatprep.subr.mxu0 0.0
    %4229 = vmatpush1.msra.mxu0 0.0
    %4230 = vmatprep.mubr.f32.mxu0 0.0
    %4231 = vmatmul.mubr.f32.gmra.mrb[0].mxu0 %v4164
    %v4232 = vpop.f32.mrb[0].mxu0
    %v4233 = vadd.f32 %v4008, %v4232
    %v4234 = vpop.f32.mrb[0].mxu0
    %4235 = vdwg.mxu0
    %v4237 = vsel %vm785, %v3969, 0
    %4239 = vmatprep.subr.mxu0 0.0
    %4240 = vmatpush1.msra.mxu0 %v3730
    %4241 = vmatprep.subr.mxu0 0.0
    %4242 = vmatpush1.msra.mxu0 0.0
    %4243 = vmatprep.subr.mxu0 0.0
    %4244 = vmatpush1.msra.mxu0 0.0
    %4245 = vmatprep.subr.mxu0 0.0
    %4246 = vmatpush1.msra.mxu0 0.0
    %4247 = vmatprep.subr.mxu0 0.0
    %4248 = vmatpush1.msra.mxu0 0.0
    %4249 = vmatprep.subr.mxu0 0.0
    %4250 = vmatpush1.msra.mxu0 0.0
    %4251 = vmatprep.subr.mxu0 0.0
    %4252 = vmatpush1.msra.mxu0 0.0
    %4253 = vmatprep.subr.mxu0 0.0
    %4254 = vmatpush1.msra.mxu0 0.0
    %4255 = vmatprep.subr.mxu0 0.0
    %4256 = vmatpush1.msra.mxu0 0.0
    %4257 = vmatprep.subr.mxu0 0.0
    %4258 = vmatpush1.msra.mxu0 0.0
    %4259 = vmatprep.subr.mxu0 0.0
    %4260 = vmatpush1.msra.mxu0 0.0
    %4261 = vmatprep.subr.mxu0 0.0
    %4262 = vmatpush1.msra.mxu0 0.0
    %4263 = vmatprep.subr.mxu0 0.0
    %4264 = vmatpush1.msra.mxu0 0.0
    %4265 = vmatprep.subr.mxu0 0.0
    %4266 = vmatpush1.msra.mxu0 0.0
    %4267 = vmatprep.subr.mxu0 0.0
    %4268 = vmatpush1.msra.mxu0 0.0
    %4269 = vmatprep.subr.mxu0 0.0
    %4270 = vmatpush1.msra.mxu0 0.0
    %4271 = vmatprep.subr.mxu0 0.0
    %4272 = vmatpush1.msra.mxu0 0.0
    %4273 = vmatprep.subr.mxu0 0.0
    %4274 = vmatpush1.msra.mxu0 0.0
    %4275 = vmatprep.subr.mxu0 0.0
    %4276 = vmatpush1.msra.mxu0 0.0
    %4277 = vmatprep.subr.mxu0 0.0
    %4278 = vmatpush1.msra.mxu0 0.0
    %4279 = vmatprep.subr.mxu0 0.0
    %4280 = vmatpush1.msra.mxu0 0.0
    %4281 = vmatprep.subr.mxu0 0.0
    %4282 = vmatpush1.msra.mxu0 0.0
    %4283 = vmatprep.subr.mxu0 0.0
    %4284 = vmatpush1.msra.mxu0 0.0
    %4285 = vmatprep.subr.mxu0 0.0
    %4286 = vmatpush1.msra.mxu0 0.0
    %4287 = vmatprep.subr.mxu0 0.0
    %4288 = vmatpush1.msra.mxu0 0.0
    %4289 = vmatprep.subr.mxu0 0.0
    %4290 = vmatpush1.msra.mxu0 0.0
    %4291 = vmatprep.subr.mxu0 0.0
    %4292 = vmatpush1.msra.mxu0 0.0
    %4293 = vmatprep.subr.mxu0 0.0
    %4294 = vmatpush1.msra.mxu0 0.0
    %4295 = vmatprep.subr.mxu0 0.0
    %4296 = vmatpush1.msra.mxu0 0.0
    %4297 = vmatprep.subr.mxu0 0.0
    %4298 = vmatpush1.msra.mxu0 0.0
    %4299 = vmatprep.subr.mxu0 0.0
    %4300 = vmatpush1.msra.mxu0 0.0
    %4301 = vmatprep.subr.mxu0 0.0
    %4302 = vmatpush1.msra.mxu0 0.0
    %4303 = vmatprep.mubr.f32.mxu0 0.0
    %4304 = vmatmul.mubr.f32.gmra.mrb[0].mxu0 %v4237
    %v4305 = vpop.f32.mrb[0].mxu0
    %v4306 = vadd.f32 %v4012, %v4305
    %v4307 = vpop.f32.mrb[0].mxu0
    %4308 = vdwg.mxu0
    %v4309 = vmax.f32 %v4087, 0.0
    %v4310 = vmax.f32 %v4160, 0.0
    %v4311 = vmax.f32 %v4233, 0.0
    %v4312 = vmax.f32 %v4306, 0.0
    %v4313 = vld [vmem:[%s7] sm:$0xff]
    %v4314 = vld [vmem:[%s7 + $0x8] sm:$0xff]
    %v4315 = vld [vmem:[%s7 + $0x10] sm:$0xff]
    %v4316 = vld [vmem:[%s7 + $0x18] sm:$0xff]
    %v4318 = vsel %vm785, %v4309, 0
    %4320 = vmatprep.subr.mxu0 0.0
    %4321 = vmatpush1.msra.mxu0 %v4313
    %4322 = vmatprep.subr.mxu0 0.0
    %4323 = vmatpush1.msra.mxu0 0.0
    %4324 = vmatprep.subr.mxu0 0.0
    %4325 = vmatpush1.msra.mxu0 0.0
    %4326 = vmatprep.subr.mxu0 0.0
    %4327 = vmatpush1.msra.mxu0 0.0
    %4328 = vmatprep.subr.mxu0 0.0
    %4329 = vmatpush1.msra.mxu0 0.0
    %4330 = vmatprep.subr.mxu0 0.0
    %4331 = vmatpush1.msra.mxu0 0.0
    %4332 = vmatprep.subr.mxu0 0.0
    %4333 = vmatpush1.msra.mxu0 0.0
    %4334 = vmatprep.subr.mxu0 0.0
    %4335 = vmatpush1.msra.mxu0 0.0
    %4336 = vmatprep.subr.mxu0 0.0
    %4337 = vmatpush1.msra.mxu0 0.0
    %4338 = vmatprep.subr.mxu0 0.0
    %4339 = vmatpush1.msra.mxu0 0.0
    %4340 = vmatprep.subr.mxu0 0.0
    %4341 = vmatpush1.msra.mxu0 0.0
    %4342 = vmatprep.subr.mxu0 0.0
    %4343 = vmatpush1.msra.mxu0 0.0
    %4344 = vmatprep.subr.mxu0 0.0
    %4345 = vmatpush1.msra.mxu0 0.0
    %4346 = vmatprep.subr.mxu0 0.0
    %4347 = vmatpush1.msra.mxu0 0.0
    %4348 = vmatprep.subr.mxu0 0.0
    %4349 = vmatpush1.msra.mxu0 0.0
    %4350 = vmatprep.subr.mxu0 0.0
    %4351 = vmatpush1.msra.mxu0 0.0
    %4352 = vmatprep.subr.mxu0 0.0
    %4353 = vmatpush1.msra.mxu0 0.0
    %4354 = vmatprep.subr.mxu0 0.0
    %4355 = vmatpush1.msra.mxu0 0.0
    %4356 = vmatprep.subr.mxu0 0.0
    %4357 = vmatpush1.msra.mxu0 0.0
    %4358 = vmatprep.subr.mxu0 0.0
    %4359 = vmatpush1.msra.mxu0 0.0
    %4360 = vmatprep.subr.mxu0 0.0
    %4361 = vmatpush1.msra.mxu0 0.0
    %4362 = vmatprep.subr.mxu0 0.0
    %4363 = vmatpush1.msra.mxu0 0.0
    %4364 = vmatprep.subr.mxu0 0.0
    %4365 = vmatpush1.msra.mxu0 0.0
    %4366 = vmatprep.subr.mxu0 0.0
    %4367 = vmatpush1.msra.mxu0 0.0
    %4368 = vmatprep.subr.mxu0 0.0
    %4369 = vmatpush1.msra.mxu0 0.0
    %4370 = vmatprep.subr.mxu0 0.0
    %4371 = vmatpush1.msra.mxu0 0.0
    %4372 = vmatprep.subr.mxu0 0.0
    %4373 = vmatpush1.msra.mxu0 0.0
    %4374 = vmatprep.subr.mxu0 0.0
    %4375 = vmatpush1.msra.mxu0 0.0
    %4376 = vmatprep.subr.mxu0 0.0
    %4377 = vmatpush1.msra.mxu0 0.0
    %4378 = vmatprep.subr.mxu0 0.0
    %4379 = vmatpush1.msra.mxu0 0.0
    %4380 = vmatprep.subr.mxu0 0.0
    %4381 = vmatpush1.msra.mxu0 0.0
    %4382 = vmatprep.subr.mxu0 0.0
    %4383 = vmatpush1.msra.mxu0 0.0
    %4384 = vmatprep.mubr.f32.mxu0 0.0
    %4385 = vmatmul.mubr.f32.gmra.mrb[0].mxu0 %v4318
    %v4386 = vpop.f32.mrb[0].mxu0
    %v4387 = vadd.f32 0.0, %v4386
    %v4388 = vpop.f32.mrb[0].mxu0
    %4389 = vdwg.mxu0
    %v4391 = vsel %vm785, %v4310, 0
    %4393 = vmatprep.subr.mxu0 0.0
    %4394 = vmatpush1.msra.mxu0 %v4314
    %4395 = vmatprep.subr.mxu0 0.0
    %4396 = vmatpush1.msra.mxu0 0.0
    %4397 = vmatprep.subr.mxu0 0.0
    %4398 = vmatpush1.msra.mxu0 0.0
    %4399 = vmatprep.subr.mxu0 0.0
    %4400 = vmatpush1.msra.mxu0 0.0
    %4401 = vmatprep.subr.mxu0 0.0
    %4402 = vmatpush1.msra.mxu0 0.0
    %4403 = vmatprep.subr.mxu0 0.0
    %4404 = vmatpush1.msra.mxu0 0.0
    %4405 = vmatprep.subr.mxu0 0.0
    %4406 = vmatpush1.msra.mxu0 0.0
    %4407 = vmatprep.subr.mxu0 0.0
    %4408 = vmatpush1.msra.mxu0 0.0
    %4409 = vmatprep.subr.mxu0 0.0
    %4410 = vmatpush1.msra.mxu0 0.0
    %4411 = vmatprep.subr.mxu0 0.0
    %4412 = vmatpush1.msra.mxu0 0.0
    %4413 = vmatprep.subr.mxu0 0.0
    %4414 = vmatpush1.msra.mxu0 0.0
    %4415 = vmatprep.subr.mxu0 0.0
    %4416 = vmatpush1.msra.mxu0 0.0
    %4417 = vmatprep.subr.mxu0 0.0
    %4418 = vmatpush1.msra.mxu0 0.0
    %4419 = vmatprep.subr.mxu0 0.0
    %4420 = vmatpush1.msra.mxu0 0.0
    %4421 = vmatprep.subr.mxu0 0.0
    %4422 = vmatpush1.msra.mxu0 0.0
    %4423 = vmatprep.subr.mxu0 0.0
    %4424 = vmatpush1.msra.mxu0 0.0
    %4425 = vmatprep.subr.mxu0 0.0
    %4426 = vmatpush1.msra.mxu0 0.0
    %4427 = vmatprep.subr.mxu0 0.0
    %4428 = vmatpush1.msra.mxu0 0.0
    %4429 = vmatprep.subr.mxu0 0.0
    %4430 = vmatpush1.msra.mxu0 0.0
    %4431 = vmatprep.subr.mxu0 0.0
    %4432 = vmatpush1.msra.mxu0 0.0
    %4433 = vmatprep.subr.mxu0 0.0
    %4434 = vmatpush1.msra.mxu0 0.0
    %4435 = vmatprep.subr.mxu0 0.0
    %4436 = vmatpush1.msra.mxu0 0.0
    %4437 = vmatprep.subr.mxu0 0.0
    %4438 = vmatpush1.msra.mxu0 0.0
    %4439 = vmatprep.subr.mxu0 0.0
    %4440 = vmatpush1.msra.mxu0 0.0
    %4441 = vmatprep.subr.mxu0 0.0
    %4442 = vmatpush1.msra.mxu0 0.0
    %4443 = vmatprep.subr.mxu0 0.0
    %4444 = vmatpush1.msra.mxu0 0.0
    %4445 = vmatprep.subr.mxu0 0.0
    %4446 = vmatpush1.msra.mxu0 0.0
    %4447 = vmatprep.subr.mxu0 0.0
    %4448 = vmatpush1.msra.mxu0 0.0
    %4449 = vmatprep.subr.mxu0 0.0
    %4450 = vmatpush1.msra.mxu0 0.0
    %4451 = vmatprep.subr.mxu0 0.0
    %4452 = vmatpush1.msra.mxu0 0.0
    %4453 = vmatprep.subr.mxu0 0.0
    %4454 = vmatpush1.msra.mxu0 0.0
    %4455 = vmatprep.subr.mxu0 0.0
    %4456 = vmatpush1.msra.mxu0 0.0
    %4457 = vmatprep.mubr.f32.mxu0 0.0
    %4458 = vmatmul.mubr.f32.gmra.mrb[0].mxu0 %v4391
    %v4459 = vpop.f32.mrb[0].mxu0
    %v4460 = vadd.f32 0.0, %v4459
    %v4461 = vpop.f32.mrb[0].mxu0
    %4462 = vdwg.mxu0
    %v4464 = vsel %vm785, %v4311, 0
    %4466 = vmatprep.subr.mxu0 0.0
    %4467 = vmatpush1.msra.mxu0 %v4315
    %4468 = vmatprep.subr.mxu0 0.0
    %4469 = vmatpush1.msra.mxu0 0.0
    %4470 = vmatprep.subr.mxu0 0.0
    %4471 = vmatpush1.msra.mxu0 0.0
    %4472 = vmatprep.subr.mxu0 0.0
    %4473 = vmatpush1.msra.mxu0 0.0
    %4474 = vmatprep.subr.mxu0 0.0
    %4475 = vmatpush1.msra.mxu0 0.0
    %4476 = vmatprep.subr.mxu0 0.0
    %4477 = vmatpush1.msra.mxu0 0.0
    %4478 = vmatprep.subr.mxu0 0.0
    %4479 = vmatpush1.msra.mxu0 0.0
    %4480 = vmatprep.subr.mxu0 0.0
    %4481 = vmatpush1.msra.mxu0 0.0
    %4482 = vmatprep.subr.mxu0 0.0
    %4483 = vmatpush1.msra.mxu0 0.0
    %4484 = vmatprep.subr.mxu0 0.0
    %4485 = vmatpush1.msra.mxu0 0.0
    %4486 = vmatprep.subr.mxu0 0.0
    %4487 = vmatpush1.msra.mxu0 0.0
    %4488 = vmatprep.subr.mxu0 0.0
    %4489 = vmatpush1.msra.mxu0 0.0
    %4490 = vmatprep.subr.mxu0 0.0
    %4491 = vmatpush1.msra.mxu0 0.0
    %4492 = vmatprep.subr.mxu0 0.0
    %4493 = vmatpush1.msra.mxu0 0.0
    %4494 = vmatprep.subr.mxu0 0.0
    %4495 = vmatpush1.msra.mxu0 0.0
    %4496 = vmatprep.subr.mxu0 0.0
    %4497 = vmatpush1.msra.mxu0 0.0
    %4498 = vmatprep.subr.mxu0 0.0
    %4499 = vmatpush1.msra.mxu0 0.0
    %4500 = vmatprep.subr.mxu0 0.0
    %4501 = vmatpush1.msra.mxu0 0.0
    %4502 = vmatprep.subr.mxu0 0.0
    %4503 = vmatpush1.msra.mxu0 0.0
    %4504 = vmatprep.subr.mxu0 0.0
    %4505 = vmatpush1.msra.mxu0 0.0
    %4506 = vmatprep.subr.mxu0 0.0
    %4507 = vmatpush1.msra.mxu0 0.0
    %4508 = vmatprep.subr.mxu0 0.0
    %4509 = vmatpush1.msra.mxu0 0.0
    %4510 = vmatprep.subr.mxu0 0.0
    %4511 = vmatpush1.msra.mxu0 0.0
    %4512 = vmatprep.subr.mxu0 0.0
    %4513 = vmatpush1.msra.mxu0 0.0
    %4514 = vmatprep.subr.mxu0 0.0
    %4515 = vmatpush1.msra.mxu0 0.0
    %4516 = vmatprep.subr.mxu0 0.0
    %4517 = vmatpush1.msra.mxu0 0.0
    %4518 = vmatprep.subr.mxu0 0.0
    %4519 = vmatpush1.msra.mxu0 0.0
    %4520 = vmatprep.subr.mxu0 0.0
    %4521 = vmatpush1.msra.mxu0 0.0
    %4522 = vmatprep.subr.mxu0 0.0
    %4523 = vmatpush1.msra.mxu0 0.0
    %4524 = vmatprep.subr.mxu0 0.0
    %4525 = vmatpush1.msra.mxu0 0.0
    %4526 = vmatprep.subr.mxu0 0.0
    %4527 = vmatpush1.msra.mxu0 0.0
    %4528 = vmatprep.subr.mxu0 0.0
    %4529 = vmatpush1.msra.mxu0 0.0
    %4530 = vmatprep.mubr.f32.mxu0 0.0
    %4531 = vmatmul.mubr.f32.gmra.mrb[0].mxu0 %v4464
    %v4532 = vpop.f32.mrb[0].mxu0
    %v4533 = vadd.f32 0.0, %v4532
    %v4534 = vpop.f32.mrb[0].mxu0
    %4535 = vdwg.mxu0
    %v4537 = vsel %vm785, %v4312, 0
    %4539 = vmatprep.subr.mxu0 0.0
    %4540 = vmatpush1.msra.mxu0 %v4316
    %4541 = vmatprep.subr.mxu0 0.0
    %4542 = vmatpush1.msra.mxu0 0.0
    %4543 = vmatprep.subr.mxu0 0.0
    %4544 = vmatpush1.msra.mxu0 0.0
    %4545 = vmatprep.subr.mxu0 0.0
    %4546 = vmatpush1.msra.mxu0 0.0
    %4547 = vmatprep.subr.mxu0 0.0
    %4548 = vmatpush1.msra.mxu0 0.0
    %4549 = vmatprep.subr.mxu0 0.0
    %4550 = vmatpush1.msra.mxu0 0.0
    %4551 = vmatprep.subr.mxu0 0.0
    %4552 = vmatpush1.msra.mxu0 0.0
    %4553 = vmatprep.subr.mxu0 0.0
    %4554 = vmatpush1.msra.mxu0 0.0
    %4555 = vmatprep.subr.mxu0 0.0
    %4556 = vmatpush1.msra.mxu0 0.0
    %4557 = vmatprep.subr.mxu0 0.0
    %4558 = vmatpush1.msra.mxu0 0.0
    %4559 = vmatprep.subr.mxu0 0.0
    %4560 = vmatpush1.msra.mxu0 0.0
    %4561 = vmatprep.subr.mxu0 0.0
    %4562 = vmatpush1.msra.mxu0 0.0
    %4563 = vmatprep.subr.mxu0 0.0
    %4564 = vmatpush1.msra.mxu0 0.0
    %4565 = vmatprep.subr.mxu0 0.0
    %4566 = vmatpush1.msra.mxu0 0.0
    %4567 = vmatprep.subr.mxu0 0.0
    %4568 = vmatpush1.msra.mxu0 0.0
    %4569 = vmatprep.subr.mxu0 0.0
    %4570 = vmatpush1.msra.mxu0 0.0
    %4571 = vmatprep.subr.mxu0 0.0
    %4572 = vmatpush1.msra.mxu0 0.0
    %4573 = vmatprep.subr.mxu0 0.0
    %4574 = vmatpush1.msra.mxu0 0.0
    %4575 = vmatprep.subr.mxu0 0.0
    %4576 = vmatpush1.msra.mxu0 0.0
    %4577 = vmatprep.subr.mxu0 0.0
    %4578 = vmatpush1.msra.mxu0 0.0
    %4579 = vmatprep.subr.mxu0 0.0
    %4580 = vmatpush1.msra.mxu0 0.0
    %4581 = vmatprep.subr.mxu0 0.0
    %4582 = vmatpush1.msra.mxu0 0.0
    %4583 = vmatprep.subr.mxu0 0.0
    %4584 = vmatpush1.msra.mxu0 0.0
    %4585 = vmatprep.subr.mxu0 0.0
    %4586 = vmatpush1.msra.mxu0 0.0
    %4587 = vmatprep.subr.mxu0 0.0
    %4588 = vmatpush1.msra.mxu0 0.0
    %4589 = vmatprep.subr.mxu0 0.0
    %4590 = vmatpush1.msra.mxu0 0.0
    %4591 = vmatprep.subr.mxu0 0.0
    %4592 = vmatpush1.msra.mxu0 0.0
    %4593 = vmatprep.subr.mxu0 0.0
    %4594 = vmatpush1.msra.mxu0 0.0
    %4595 = vmatprep.subr.mxu0 0.0
    %4596 = vmatpush1.msra.mxu0 0.0
    %4597 = vmatprep.subr.mxu0 0.0
    %4598 = vmatpush1.msra.mxu0 0.0
    %4599 = vmatprep.subr.mxu0 0.0
    %4600 = vmatpush1.msra.mxu0 0.0
    %4601 = vmatprep.subr.mxu0 0.0
    %4602 = vmatpush1.msra.mxu0 0.0
    %4603 = vmatprep.mubr.f32.mxu0 0.0
    %4604 = vmatmul.mubr.f32.gmra.mrb[0].mxu0 %v4537
    %v4605 = vpop.f32.mrb[0].mxu0
    %v4606 = vadd.f32 0.0, %v4605
    %v4607 = vpop.f32.mrb[0].mxu0
    %4608 = vdwg.mxu0
    %vm4609 = vcmask 130048
    %v4610 = vsel %vm4609, %v4387, 0.0
    %v4611 = vsel %vm4609, %v4460, 0.0
    %v4612 = vadd.f32 %v4610, %v4611
    %v4613 = vsel %vm4609, %v4533, 0.0
    %v4614 = vadd.f32 %v4612, %v4613
    %v4615 = vsel %vm4609, %v4606, 0.0
    %v4616 = vadd.f32 %v4614, %v4615
    %v4617 = vld [vmem:[%s8 + $0x1] sm:$0x1]
    %v4618 = vlaneseq
    %v4619 = vshrl.u32 %v4618, 7
    %v4620 = vsub.s32 0, %v4619
    %v4621 = vrot.slane %v4617, %v4620
    %v4622 = vadd.f32 %v4616, %v4621
    %v4623 = vmax.f32 %v4622, 0.0
    %v4624 = vld [vmem:[%s8 + $0x3] sm:$0xff]
    %v4625 = vld [vmem:[%s8 + $0xb] sm:$0xff]
    %v4626 = vld [vmem:[%s8 + $0x2] sm:$0x1]
    %v4627 = vlaneseq
    %v4628 = vshrl.u32 %v4627, 7
    %v4629 = vsub.s32 0, %v4628
    %v4630 = vrot.slane %v4626, %v4629
    %v4632 = vsel %vm4609, %v4623, 0
    %4634 = vmatprep.subr.mxu0 0.0
    %4635 = vmatpush1.msra.mxu0 %v4624
    %4636 = vmatprep.subr.mxu0 0.0
    %4637 = vmatpush1.msra.mxu0 %v4625
    %4638 = vmatprep.subr.mxu0 0.0
    %4639 = vmatpush1.msra.mxu0 0.0
    %4640 = vmatprep.subr.mxu0 0.0
    %4641 = vmatpush1.msra.mxu0 0.0
    %4642 = vmatprep.subr.mxu0 0.0
    %4643 = vmatpush1.msra.mxu0 0.0
    %4644 = vmatprep.subr.mxu0 0.0
    %4645 = vmatpush1.msra.mxu0 0.0
    %4646 = vmatprep.subr.mxu0 0.0
    %4647 = vmatpush1.msra.mxu0 0.0
    %4648 = vmatprep.subr.mxu0 0.0
    %4649 = vmatpush1.msra.mxu0 0.0
    %4650 = vmatprep.subr.mxu0 0.0
    %4651 = vmatpush1.msra.mxu0 0.0
    %4652 = vmatprep.subr.mxu0 0.0
    %4653 = vmatpush1.msra.mxu0 0.0
    %4654 = vmatprep.subr.mxu0 0.0
    %4655 = vmatpush1.msra.mxu0 0.0
    %4656 = vmatprep.subr.mxu0 0.0
    %4657 = vmatpush1.msra.mxu0 0.0
    %4658 = vmatprep.subr.mxu0 0.0
    %4659 = vmatpush1.msra.mxu0 0.0
    %4660 = vmatprep.subr.mxu0 0.0
    %4661 = vmatpush1.msra.mxu0 0.0
    %4662 = vmatprep.subr.mxu0 0.0
    %4663 = vmatpush1.msra.mxu0 0.0
    %4664 = vmatprep.subr.mxu0 0.0
    %4665 = vmatpush1.msra.mxu0 0.0
    %4666 = vmatprep.subr.mxu0 0.0
    %4667 = vmatpush1.msra.mxu0 0.0
    %4668 = vmatprep.subr.mxu0 0.0
    %4669 = vmatpush1.msra.mxu0 0.0
    %4670 = vmatprep.subr.mxu0 0.0
    %4671 = vmatpush1.msra.mxu0 0.0
    %4672 = vmatprep.subr.mxu0 0.0
    %4673 = vmatpush1.msra.mxu0 0.0
    %4674 = vmatprep.subr.mxu0 0.0
    %4675 = vmatpush1.msra.mxu0 0.0
    %4676 = vmatprep.subr.mxu0 0.0
    %4677 = vmatpush1.msra.mxu0 0.0
    %4678 = vmatprep.subr.mxu0 0.0
    %4679 = vmatpush1.msra.mxu0 0.0
    %4680 = vmatprep.subr.mxu0 0.0
    %4681 = vmatpush1.msra.mxu0 0.0
    %4682 = vmatprep.subr.mxu0 0.0
    %4683 = vmatpush1.msra.mxu0 0.0
    %4684 = vmatprep.subr.mxu0 0.0
    %4685 = vmatpush1.msra.mxu0 0.0
    %4686 = vmatprep.subr.mxu0 0.0
    %4687 = vmatpush1.msra.mxu0 0.0
    %4688 = vmatprep.subr.mxu0 0.0
    %4689 = vmatpush1.msra.mxu0 0.0
    %4690 = vmatprep.subr.mxu0 0.0
    %4691 = vmatpush1.msra.mxu0 0.0
    %4692 = vmatprep.subr.mxu0 0.0
    %4693 = vmatpush1.msra.mxu0 0.0
    %4694 = vmatprep.subr.mxu0 0.0
    %4695 = vmatpush1.msra.mxu0 0.0
    %4696 = vmatprep.subr.mxu0 0.0
    %4697 = vmatpush1.msra.mxu0 0.0
    %4698 = vmatprep.mubr.f32.mxu0 0.0
    %4699 = vmatmul.mubr.f32.gmra.mrb[0].mxu0 %v4632
    %v4700 = vpop.f32.mrb[0].mxu0
    %v4701 = vadd.f32 %v4630, %v4700
    %v4702 = vpop.f32.mrb[0].mxu0
    %4703 = vdwg.mxu0
    %vm4704 = vcmask 39936
    %v4705 = vsel %vm4704, %v4701, -inf
    %4706 = vmax.xlane.f32.xlu0 %v4705
    %v4707 = vpop.xlane.xlu0 %4706
    %v4708 = vsub.f32 %v4701, %v4707
    %v4709 = vmul.f32 %v4708, 1.442695
    %v4710 = vpow.pop %v4709
    %v4711 = vsel %vm4704, %v4710, 0.0
    %4712 = vadd.xlane.f32.xlu0 %v4711
    %v4713 = vpop.xlane.xlu0 %4712
    %v4714 = vlog2.pop %v4713
    %v4715 = vmul.f32 %v4714, 0.6931472
    %v4716 = vadd.f32 %v4707, %v4715
    %v4717 = vsub.f32 %v4701, %v4716
    %4718 = vst.msk [vmem:[#allocation2] sm:$0xff] %vm4704, %v4717
    // Predicated region
    $region38: #{gap_aware_gnn_forward.1} parent=1 // pred_check
      _
    $region39: #{gap_aware_gnn_forward.1} parent=1 // pred_check_branch
      %4720 = sbr.rel (0) target = $region41
    $region40: #{gap_aware_gnn_forward.1} parent=1 // pred_region
      %s4722 = ssub.s32 128, 128
      %4723 = vsyncadd [#allocation3], %s4722
      %s4725 = sshll.u32 [#allocation2], 4
      %s4726 = int_to_ptr.vmem [resolvable:$true] %s4725
      %4728 = dma.vmem_to_hbm [thread:$0]  %s4726, 128, %s9, [#allocation3]
    $region41: #{gap_aware_gnn_forward.1} parent=1 // pred_fallthru
      _
    // Predicated region
    $region42: #{gap_aware_gnn_forward.1} parent=1 // pred_check
      _
    $region43: #{gap_aware_gnn_forward.1} parent=1 // pred_check_branch
      %4730 = sbr.rel (0) target = $region45
    $region44: #{gap_aware_gnn_forward.1} parent=1 // pred_region
      %4731 = dma.done [#allocation3], 128
    $region45: #{gap_aware_gnn_forward.1} parent=1 // pred_fallthru
      _
    %4732 = vsyncpa [#allocation3], 1

</llo_original>
